<compile_context>
chip_gen: v7x
topology: tpu7x:2x2x1
jax: 0.10.0
libtpu: 0.0.40
codegen_flags: <defaults>
</compile_context>

<pallas_src>
import functools
import numpy as np

import jax
import jax.numpy as jnp
from jax.experimental import pallas as pl
from jax.experimental.pallas import tpu as pltpu

BN_EPS = 1e-5


# --------------------------------------------------------------------------------------
# Kernel 1: (folded-BN affine + PReLU) -> 3x3 conv (pad=1, stride=1) -> per-image BN
#           partials.  Used twice: once with an identity affine (conv1), once with the
#           folded BN1 scale/shift + PReLU (conv2), so the inter-conv activation never
#           touches HBM.
# --------------------------------------------------------------------------------------
def _fused_conv_kernel(x_ref, par_ref, w_ref, conv_ref, pstats_ref, pad_ref):
    """x_ref     : (1, H, W, Cin)   bf16   incoming activation (raw conv1 out or x)
       par_ref   : (3, Cin)         f32    rows = [scale, shift, prelu_alpha]
       w_ref     : (3, 3*Cin, Cout) bf16   conv weights, kx folded into K
       conv_ref  : (1, H, W, Cout)  bf16   raw conv output (pre-BN)
       pstats_ref: (1, 2, Cout)     f32    per-image [sum, mean-shifted sum-of-squares]
       pad_ref   : (H+2, W+2, Cin)  bf16   VMEM scratch (zero-padded activation)
    """
    _, H, W, Cout = conv_ref.shape
    Cin = x_ref.shape[3]

    # Folded BN affine + PReLU in f32, then back to bf16 (MXU operand dtype).
    scale = par_ref[0:1, :].reshape(1, 1, Cin)
    shift = par_ref[1:2, :].reshape(1, 1, Cin)
    alpha = par_ref[2:3, :].reshape(1, 1, Cin)
    y = x_ref[0].astype(jnp.float32) * scale + shift
    y = jnp.where(y > 0, y, alpha * y).astype(jnp.bfloat16)

    # Assemble the zero-padded image in VMEM (no HBM padding pass).
    pad_ref[...] = jnp.zeros_like(pad_ref)
    pad_ref[pl.ds(1, H), pl.ds(1, W), :] = y

    # 3x3 conv as 3 per-ky matmuls with the kx taps folded into K = 3*Cin.
    # Straight dot+add chain so the MXU accumulator path can be used.
    acc = jnp.zeros((H * W, Cout), jnp.float32)
    for ky in range(3):
        parts = [pad_ref[pl.ds(ky, H), pl.ds(kx, W), :] for kx in range(3)]
        slab = jnp.concatenate(parts, axis=-1).reshape(H * W, 3 * Cin)   # bf16
        acc = acc + jnp.dot(slab, w_ref[ky], preferred_element_type=jnp.float32)

    conv_ref[...] = acc.reshape(1, H, W, Cout).astype(conv_ref.dtype)

    # Per-image BN partials (training mode): [sum, sum((x - image_mean)^2)].
    # Combined across images with a Chan/Welford merge in the wrapper (numerically
    # safer than E[x^2] - mean^2).
    s1 = jnp.sum(acc, axis=0, keepdims=True)                    # (1, Cout)
    mean_i = s1 * (1.0 / (H * W))
    m2 = jnp.sum(jnp.square(acc - mean_i), axis=0, keepdims=True)
    pstats_ref[...] = jnp.concatenate([s1, m2], axis=0).reshape(1, 2, Cout)


def fused_conv(x_bf16, par3, w_folded):
    """x_bf16: (N,H,W,Cin) bf16, par3: (3,Cin) f32, w_folded: (3,3*Cin,Cout) bf16."""
    N, H, W, Cin = x_bf16.shape
    Cout = w_folded.shape[-1]
    flops = int(2 * 9 * H * W * Cin * Cout * N)
    bytes_accessed = int(N * H * W * Cin * 2 + 3 * 3 * Cin * Cout * 2
                         + N * H * W * Cout * 2 + N * 2 * Cout * 4 + 3 * Cin * 4)
    return pl.pallas_call(
        _fused_conv_kernel,
        out_shape=(jax.ShapeDtypeStruct((N, H, W, Cout), jnp.bfloat16),
                   jax.ShapeDtypeStruct((N, 2, Cout), jnp.float32)),
        grid=(N,),
        in_specs=[
            pl.BlockSpec((1, H, W, Cin), lambda n: (n, 0, 0, 0)),
            pl.BlockSpec((3, Cin), lambda n: (0, 0)),
            pl.BlockSpec((3, 3 * Cin, Cout), lambda n: (0, 0, 0)),
        ],
        out_specs=(
            pl.BlockSpec((1, H, W, Cout), lambda n: (n, 0, 0, 0)),
            pl.BlockSpec((1, 2, Cout), lambda n: (n, 0, 0)),
        ),
        scratch_shapes=[pltpu.VMEM((H + 2, W + 2, Cin), jnp.bfloat16)],
        compiler_params=pltpu.CompilerParams(
            dimension_semantics=("parallel",),
            vmem_limit_bytes=32 * 1024 * 1024),
        cost_estimate=pl.CostEstimate(flops=flops, transcendentals=0,
                                      bytes_accessed=bytes_accessed),
    )(x_bf16, par3, w_folded)


# --------------------------------------------------------------------------------------
# Kernel 2: folded BN2 scale/shift + residual add on a lane-dense (N, R, 128) view.
# --------------------------------------------------------------------------------------
def _bn_residual_kernel(conv_ref, x_ref, par_ref, out_ref):
    """conv_ref: (1, R, L) bf16   raw conv2 output (flattened view)
       x_ref   : (1, R, L) f32    residual input (flattened view)
       par_ref : (2, L)    f32    rows = [scale, shift] tiled to L lanes
       out_ref : (1, R, L) f32
    """
    scale = par_ref[0:1, :]
    shift = par_ref[1:2, :]
    y = conv_ref[...].astype(jnp.float32) * scale + shift
    out_ref[...] = x_ref[...] + y


def bn_residual_apply(conv2, x_f32, scale, shift):
    N, H, W, C = conv2.shape
    total = H * W * C
    # Lane-dense view: pack spatial positions into 128 lanes when possible.
    if total % 128 == 0 and 128 % C == 0:
        L = 128
    else:
        L = C
    R = total // L
    rep = L // C
    par = jnp.stack([jnp.tile(scale, rep), jnp.tile(shift, rep)], axis=0)   # (2, L)
    out = pl.pallas_call(
        _bn_residual_kernel,
        out_shape=jax.ShapeDtypeStruct((N, R, L), jnp.float32),
        grid=(N,),
        in_specs=[
            pl.BlockSpec((1, R, L), lambda n: (n, 0, 0)),
            pl.BlockSpec((1, R, L), lambda n: (n, 0, 0)),
            pl.BlockSpec((2, L), lambda n: (0, 0)),
        ],
        out_specs=pl.BlockSpec((1, R, L), lambda n: (n, 0, 0)),
        compiler_params=pltpu.CompilerParams(
            dimension_semantics=("parallel",),
            vmem_limit_bytes=32 * 1024 * 1024),
    )(conv2.reshape(N, R, L), x_f32.reshape(N, R, L), par)
    return out.reshape(N, H, W, C)


# --------------------------------------------------------------------------------------
# Tiny plain-JAX BN fold (training-mode batch stats) from per-image partials.
# --------------------------------------------------------------------------------------
def fold_bn(pstats, gamma, beta, count_per_image, n_images):
    """pstats: (N, 2, C) f32 per-image [sum, mean-shifted sum-of-squares]."""
    sums = pstats[:, 0, :]                               # (N, C)
    m2s = pstats[:, 1, :]                                # (N, C)
    mean_i = sums / count_per_image                      # per-image means
    gmean = jnp.mean(mean_i, axis=0)                     # (C,)
    # Chan parallel combine (equal counts): biased variance, as PyTorch uses in forward.
    var = (jnp.sum(m2s, axis=0)
           + count_per_image * jnp.sum(jnp.square(mean_i - gmean), axis=0)
           ) / (count_per_image * n_images)
    scale = gamma * jax.lax.rsqrt(var + BN_EPS)
    shift = beta - gmean * scale
    return scale, shift


# --------------------------------------------------------------------------------------
# Module wrapper
# --------------------------------------------------------------------------------------
def residual_block_forward(x_nchw, params):
    """Pallas implementation of ResidualBlock.forward(x) = x + block(x)."""
    (w1, b1, g1, be1, alpha, w2, b2, g2, be2) = params
    # Conv biases b1/b2 are mathematically cancelled by training-mode BatchNorm
    # (the batch mean contains the bias), so they are not applied in the kernel.
    del b1, b2

    x = jnp.transpose(x_nchw, (0, 2, 3, 1)).astype(jnp.float32)   # NCHW -> NHWC
    N, H, W, C = x.shape
    cnt = float(H * W)

    x_bf = x.astype(jnp.bfloat16)
    w1f = w1.reshape(3, 3 * C, C).astype(jnp.bfloat16)            # (ky, kx*Cin, Cout)
    w2f = w2.reshape(3, 3 * C, C).astype(jnp.bfloat16)

    ones = jnp.ones((C,), jnp.float32)
    zeros = jnp.zeros((C,), jnp.float32)
    par_id = jnp.stack([ones, zeros, ones], axis=0)               # identity affine

    # --- conv1 + per-image BN1 partials -----------------------------------------------
    conv1, st1 = fused_conv(x_bf, par_id, w1f)
    scale1, shift1 = fold_bn(st1, g1, be1, cnt, N)
    par1 = jnp.stack([scale1, shift1, jnp.full((C,), alpha, jnp.float32)], axis=0)

    # --- BN1 + PReLU fused into conv2 + per-image BN2 partials ------------------------
    conv2, st2 = fused_conv(conv1, par1, w2f)
    scale2, shift2 = fold_bn(st2, g2, be2, cnt, N)

    # --- BN2 + residual add (lane-dense) ----------------------------------------------
    out = bn_residual_apply(conv2, x, scale2, shift2)

    return jnp.transpose(out, (0, 3, 1, 2))                        # back to NCHW


def init_params(key, channels):
    """Deterministic synthetic parameters with the module's shapes (weights in HWIO)."""
    k = jax.random.split(key, 8)
    fan = 9 * channels
    w1 = jax.random.normal(k[0], (3, 3, channels, channels), jnp.float32) / np.sqrt(fan)
    b1 = 0.01 * jax.random.normal(k[1], (channels,), jnp.float32)
    g1 = 1.0 + 0.1 * jax.random.normal(k[2], (channels,), jnp.float32)
    be1 = 0.1 * jax.random.normal(k[3], (channels,), jnp.float32)
    alpha = jnp.float32(0.25)                        # nn.PReLU() default single parameter
    w2 = jax.random.normal(k[4], (3, 3, channels, channels), jnp.float32) / np.sqrt(fan)
    b2 = 0.01 * jax.random.normal(k[5], (channels,), jnp.float32)
    g2 = 1.0 + 0.1 * jax.random.normal(k[6], (channels,), jnp.float32)
    be2 = 0.1 * jax.random.normal(k[7], (channels,), jnp.float32)
    return (w1, b1, g1, be1, alpha, w2, b2, g2, be2)


def reference_forward(x_nchw, params):
    """Pure-JAX f32 reference (lax.conv, with conv bias) for a correctness check."""
    (w1, b1, g1, be1, alpha, w2, b2, g2, be2) = params
    x = jnp.transpose(x_nchw, (0, 2, 3, 1)).astype(jnp.float32)

    def conv(t, w, b):
        return jax.lax.conv_general_dilated(
            t, w, (1, 1), ((1, 1), (1, 1)),
            dimension_numbers=('NHWC', 'HWIO', 'NHWC'),
            precision=jax.lax.Precision.HIGHEST) + b

    def bn(t, g, be):
        mean = jnp.mean(t, axis=(0, 1, 2), keepdims=True)
        var = jnp.mean(jnp.square(t - mean), axis=(0, 1, 2), keepdims=True)
        return (t - mean) * jax.lax.rsqrt(var + BN_EPS) * g + be

    y = bn(conv(x, w1, b1), g1, be1)
    y = jnp.where(y > 0, y, alpha * y)                 # PReLU (single shared alpha)
    y = bn(conv(y, w2, b2), g2, be2)
    out = x + y
    return jnp.transpose(out, (0, 3, 1, 2))


if __name__ == "__main__":
    key = jax.random.PRNGKey(0)
    key, xkey = jax.random.split(key)

    # SRGAN-style residual block: 64 channels, small spatial patch.
    N, C, H, W = 4, 64, 16, 16
    x = jax.random.normal(xkey, (N, C, H, W), jnp.float32)
    params = init_params(key, C)

    out = jax.jit(residual_block_forward)(x, params)
    out = jax.block_until_ready(out)
    assert out.shape == (N, C, H, W), out.shape

    ref = jax.block_until_ready(reference_forward(x, params))
    max_err = float(jnp.max(jnp.abs(out - ref)))
    # bf16 MXU operands / bf16 intermediates with f32 accumulation vs f32 reference.
    assert np.allclose(np.asarray(out), np.asarray(ref), atol=5e-2, rtol=5e-2), max_err

    print("KERNEL_OK")
</pallas_src>

<mosaic_0001>
module attributes {stable_mosaic.version = 11 : i64} {
  func.func @_fused_conv_kernel(%arg0: i32, %arg1: memref<1x16x16x64xbf16, #tpu.memory_space<vmem>>, %arg2: memref<3x64xf32, #tpu.memory_space<vmem>>, %arg3: memref<3x192x64xbf16, #tpu.memory_space<vmem>>, %arg4: memref<1x16x16x64xbf16, #tpu.memory_space<vmem>>, %arg5: memref<1x2x64xf32, #tpu.memory_space<vmem>>, %arg6: memref<18x18x64xbf16, #tpu.memory_space<vmem>>) attributes {dimension_semantics = [#tpu.dimension_semantics<parallel>], iteration_bounds = array<i64: 4>, scalar_prefetch = 0 : i64, scratch_operands = 1 : i64, tpu.core_type = #tpu.core_type<tc>, window_params = [{transform_indices = @transform_0, window_bounds = array<i64: 1, 16, 16, 64>}, {pipeline_mode = #tpu.pipeline_mode<synchronous>, transform_indices = @transform_1, window_bounds = array<i64: 3, 64>}, {pipeline_mode = #tpu.pipeline_mode<synchronous>, transform_indices = @transform_2, window_bounds = array<i64: 3, 192, 64>}, {transform_indices = @transform_3, window_bounds = array<i64: 1, 16, 16, 64>}, {transform_indices = @transform_4, window_bounds = array<i64: 1, 2, 64>}]} {
    %c0 = arith.constant 0 : index
    %c0_0 = arith.constant 0 : index
    %0 = vector.load %arg2[%c0, %c0_0] : memref<3x64xf32, #tpu.memory_space<vmem>>, vector<1x64xf32>
    %1 = vector.shape_cast %0 : vector<1x64xf32> to vector<1x1x64xf32>
    %c1 = arith.constant 1 : index
    %c0_1 = arith.constant 0 : index
    %2 = vector.load %arg2[%c1, %c0_1] : memref<3x64xf32, #tpu.memory_space<vmem>>, vector<1x64xf32>
    %3 = vector.shape_cast %2 : vector<1x64xf32> to vector<1x1x64xf32>
    %c2 = arith.constant 2 : index
    %c0_2 = arith.constant 0 : index
    %4 = vector.load %arg2[%c2, %c0_2] : memref<3x64xf32, #tpu.memory_space<vmem>>, vector<1x64xf32>
    %5 = vector.shape_cast %4 : vector<1x64xf32> to vector<1x1x64xf32>
    %c0_3 = arith.constant 0 : index
    %c0_4 = arith.constant 0 : index
    %c0_5 = arith.constant 0 : index
    %c0_6 = arith.constant 0 : index
    %6 = vector.load %arg1[%c0_3, %c0_4, %c0_5, %c0_6] : memref<1x16x16x64xbf16, #tpu.memory_space<vmem>>, vector<1x16x16x64xbf16>
    %7 = vector.shape_cast %6 : vector<1x16x16x64xbf16> to vector<16x16x64xbf16>
    %8 = arith.extf %7 : vector<16x16x64xbf16> to vector<16x16x64xf32>
    %9 = vector.broadcast %1 : vector<1x1x64xf32> to vector<16x16x64xf32>
    %10 = arith.mulf %8, %9 : vector<16x16x64xf32>
    %11 = vector.broadcast %3 : vector<1x1x64xf32> to vector<16x16x64xf32>
    %12 = arith.addf %10, %11 : vector<16x16x64xf32>
    %cst = arith.constant 0.000000e+00 : f32
    %13 = vector.broadcast %cst : f32 to vector<16x16x64xf32>
    %14 = arith.cmpf ogt, %12, %13 : vector<16x16x64xf32>
    %15 = vector.broadcast %5 : vector<1x1x64xf32> to vector<16x16x64xf32>
    %16 = arith.mulf %15, %12 : vector<16x16x64xf32>
    %17 = arith.select %14, %12, %16 : vector<16x16x64xi1>, vector<16x16x64xf32>
    %18 = arith.truncf %17 : vector<16x16x64xf32> to vector<16x16x64xbf16>
    %cst_7 = arith.constant 0.000000e+00 : bf16
    %19 = vector.broadcast %cst_7 : bf16 to vector<18x18x64xbf16>
    %c0_8 = arith.constant 0 : index
    %c0_9 = arith.constant 0 : index
    %c0_10 = arith.constant 0 : index
    %20 = vector.load %arg6[%c0_8, %c0_9, %c0_10] : memref<18x18x64xbf16, #tpu.memory_space<vmem>>, vector<18x18x64xbf16>
    tpu.vector_store %arg6[%c0_8, %c0_9, %c0_10], %19 {strides = array<i32>} : memref<18x18x64xbf16, #tpu.memory_space<vmem>>, vector<18x18x64xbf16>,
    %c1_11 = arith.constant 1 : index
    %c1_12 = arith.constant 1 : index
    %c0_13 = arith.constant 0 : index
    %21 = vector.load %arg6[%c1_11, %c1_12, %c0_13] : memref<18x18x64xbf16, #tpu.memory_space<vmem>>, vector<16x16x64xbf16>
    tpu.vector_store %arg6[%c1_11, %c1_12, %c0_13], %18 {strides = array<i32>} : memref<18x18x64xbf16, #tpu.memory_space<vmem>>, vector<16x16x64xbf16>,
    %cst_14 = arith.constant 0.000000e+00 : f32
    %22 = vector.broadcast %cst_14 : f32 to vector<256x64xf32>
    %c0_15 = arith.constant 0 : index
    %c0_16 = arith.constant 0 : index
    %c0_17 = arith.constant 0 : index
    %23 = vector.load %arg6[%c0_15, %c0_16, %c0_17] : memref<18x18x64xbf16, #tpu.memory_space<vmem>>, vector<16x16x64xbf16>
    %c0_18 = arith.constant 0 : index
    %c1_19 = arith.constant 1 : index
    %c0_20 = arith.constant 0 : index
    %24 = vector.load %arg6[%c0_18, %c1_19, %c0_20] : memref<18x18x64xbf16, #tpu.memory_space<vmem>>, vector<16x16x64xbf16>
    %c0_21 = arith.constant 0 : index
    %c2_22 = arith.constant 2 : index
    %c0_23 = arith.constant 0 : index
    %25 = vector.load %arg6[%c0_21, %c2_22, %c0_23] : memref<18x18x64xbf16, #tpu.memory_space<vmem>>, vector<16x16x64xbf16>
    %26 = tpu.concatenate %23, %24, %25 in 2 : vector<16x16x64xbf16>, vector<16x16x64xbf16>, vector<16x16x64xbf16> -> vector<16x16x192xbf16>
    %27 = vector.shape_cast %26 : vector<16x16x192xbf16> to vector<256x192xbf16>
    %c0_24 = arith.constant 0 : index
    %c0_25 = arith.constant 0 : index
    %c0_26 = arith.constant 0 : index
    %28 = vector.load %arg3[%c0_24, %c0_25, %c0_26] : memref<3x192x64xbf16, #tpu.memory_space<vmem>>, vector<1x192x64xbf16>
    %29 = vector.shape_cast %28 : vector<1x192x64xbf16> to vector<192x64xbf16>
    %cst_27 = arith.constant dense<0.000000e+00> : vector<256x64xf32>
    %30 = tpu.matmul %27, %29, %cst_27 {dimension_numbers = #tpu.dot_dimension_numbers<[1], [0], [0], [1], [0, 0, 1, 1], [], []>} : vector<256x192xbf16>, vector<192x64xbf16>, vector<256x64xf32> -> vector<256x64xf32>
    %31 = arith.addf %22, %30 : vector<256x64xf32>
    %c1_28 = arith.constant 1 : index
    %c0_29 = arith.constant 0 : index
    %c0_30 = arith.constant 0 : index
    %32 = vector.load %arg6[%c1_28, %c0_29, %c0_30] : memref<18x18x64xbf16, #tpu.memory_space<vmem>>, vector<16x16x64xbf16>
    %c1_31 = arith.constant 1 : index
    %c1_32 = arith.constant 1 : index
    %c0_33 = arith.constant 0 : index
    %33 = vector.load %arg6[%c1_31, %c1_32, %c0_33] : memref<18x18x64xbf16, #tpu.memory_space<vmem>>, vector<16x16x64xbf16>
    %c1_34 = arith.constant 1 : index
    %c2_35 = arith.constant 2 : index
    %c0_36 = arith.constant 0 : index
    %34 = vector.load %arg6[%c1_34, %c2_35, %c0_36] : memref<18x18x64xbf16, #tpu.memory_space<vmem>>, vector<16x16x64xbf16>
    %35 = tpu.concatenate %32, %33, %34 in 2 : vector<16x16x64xbf16>, vector<16x16x64xbf16>, vector<16x16x64xbf16> -> vector<16x16x192xbf16>
    %36 = vector.shape_cast %35 : vector<16x16x192xbf16> to vector<256x192xbf16>
    %c1_37 = arith.constant 1 : index
    %c0_38 = arith.constant 0 : index
    %c0_39 = arith.constant 0 : index
    %37 = vector.load %arg3[%c1_37, %c0_38, %c0_39] : memref<3x192x64xbf16, #tpu.memory_space<vmem>>, vector<1x192x64xbf16>
    %38 = vector.shape_cast %37 : vector<1x192x64xbf16> to vector<192x64xbf16>
    %cst_40 = arith.constant dense<0.000000e+00> : vector<256x64xf32>
    %39 = tpu.matmul %36, %38, %cst_40 {dimension_numbers = #tpu.dot_dimension_numbers<[1], [0], [0], [1], [0, 0, 1, 1], [], []>} : vector<256x192xbf16>, vector<192x64xbf16>, vector<256x64xf32> -> vector<256x64xf32>
    %40 = arith.addf %31, %39 : vector<256x64xf32>
    %c2_41 = arith.constant 2 : index
    %c0_42 = arith.constant 0 : index
    %c0_43 = arith.constant 0 : index
    %41 = vector.load %arg6[%c2_41, %c0_42, %c0_43] : memref<18x18x64xbf16, #tpu.memory_space<vmem>>, vector<16x16x64xbf16>
    %c2_44 = arith.constant 2 : index
    %c1_45 = arith.constant 1 : index
    %c0_46 = arith.constant 0 : index
    %42 = vector.load %arg6[%c2_44, %c1_45, %c0_46] : memref<18x18x64xbf16, #tpu.memory_space<vmem>>, vector<16x16x64xbf16>
    %c2_47 = arith.constant 2 : index
    %c2_48 = arith.constant 2 : index
    %c0_49 = arith.constant 0 : index
    %43 = vector.load %arg6[%c2_47, %c2_48, %c0_49] : memref<18x18x64xbf16, #tpu.memory_space<vmem>>, vector<16x16x64xbf16>
    %44 = tpu.concatenate %41, %42, %43 in 2 : vector<16x16x64xbf16>, vector<16x16x64xbf16>, vector<16x16x64xbf16> -> vector<16x16x192xbf16>
    %45 = vector.shape_cast %44 : vector<16x16x192xbf16> to vector<256x192xbf16>
    %c2_50 = arith.constant 2 : index
    %c0_51 = arith.constant 0 : index
    %c0_52 = arith.constant 0 : index
    %46 = vector.load %arg3[%c2_50, %c0_51, %c0_52] : memref<3x192x64xbf16, #tpu.memory_space<vmem>>, vector<1x192x64xbf16>
    %47 = vector.shape_cast %46 : vector<1x192x64xbf16> to vector<192x64xbf16>
    %cst_53 = arith.constant dense<0.000000e+00> : vector<256x64xf32>
    %48 = tpu.matmul %45, %47, %cst_53 {dimension_numbers = #tpu.dot_dimension_numbers<[1], [0], [0], [1], [0, 0, 1, 1], [], []>} : vector<256x192xbf16>, vector<192x64xbf16>, vector<256x64xf32> -> vector<256x64xf32>
    %49 = arith.addf %40, %48 : vector<256x64xf32>
    %50 = vector.shape_cast %49 : vector<256x64xf32> to vector<1x16x16x64xf32>
    %51 = arith.truncf %50 : vector<1x16x16x64xf32> to vector<1x16x16x64xbf16>
    %c0_54 = arith.constant 0 : index
    %c0_55 = arith.constant 0 : index
    %c0_56 = arith.constant 0 : index
    %c0_57 = arith.constant 0 : index
    %52 = vector.load %arg4[%c0_54, %c0_55, %c0_56, %c0_57] : memref<1x16x16x64xbf16, #tpu.memory_space<vmem>>, vector<1x16x16x64xbf16>
    tpu.vector_store %arg4[%c0_54, %c0_55, %c0_56, %c0_57], %51 {strides = array<i32>} : memref<1x16x16x64xbf16, #tpu.memory_space<vmem>>, vector<1x16x16x64xbf16>,
    %cst_58 = arith.constant dense<0.000000e+00> : vector<64xf32>
    %53 = vector.multi_reduction <add>, %49, %cst_58 [0] : vector<256x64xf32> to vector<64xf32>
    %54 = vector.shape_cast %53 : vector<64xf32> to vector<1x64xf32>
    %cst_59 = arith.constant 3.906250e-03 : f32
    %55 = vector.broadcast %cst_59 : f32 to vector<1x64xf32>
    %56 = arith.mulf %54, %55 : vector<1x64xf32>
    %57 = vector.broadcast %56 : vector<1x64xf32> to vector<256x64xf32>
    %58 = arith.subf %49, %57 : vector<256x64xf32>
    %59 = arith.mulf %58, %58 : vector<256x64xf32>
    %cst_60 = arith.constant dense<0.000000e+00> : vector<64xf32>
    %60 = vector.multi_reduction <add>, %59, %cst_60 [0] : vector<256x64xf32> to vector<64xf32>
    %61 = vector.shape_cast %60 : vector<64xf32> to vector<1x64xf32>
    %62 = tpu.concatenate %54, %61 in 0 : vector<1x64xf32>, vector<1x64xf32> -> vector<2x64xf32>
    %63 = vector.shape_cast %62 : vector<2x64xf32> to vector<1x2x64xf32>
    %c0_61 = arith.constant 0 : index
    %c0_62 = arith.constant 0 : index
    %c0_63 = arith.constant 0 : index
    %64 = vector.load %arg5[%c0_61, %c0_62, %c0_63] : memref<1x2x64xf32, #tpu.memory_space<vmem>>, vector<1x2x64xf32>
    tpu.vector_store %arg5[%c0_61, %c0_62, %c0_63], %63 {strides = array<i32>} : memref<1x2x64xf32, #tpu.memory_space<vmem>>, vector<1x2x64xf32>,
    return
  }
  func.func @transform_0(%arg0: i32) -> (i32, i32, i32, i32) {
    %c0_i32 = arith.constant 0 : i32
    %c0_i32_0 = arith.constant 0 : i32
    %c0_i32_1 = arith.constant 0 : i32
    %c0_i32_2 = arith.constant 0 : i32
    return %arg0, %c0_i32, %c0_i32_0, %c0_i32_1 : i32, i32, i32, i32
  }
  func.func @transform_1(%arg0: i32) -> (i32, i32) {
    %c0_i32 = arith.constant 0 : i32
    %c0_i32_0 = arith.constant 0 : i32
    %c0_i32_1 = arith.constant 0 : i32
    return %c0_i32, %c0_i32_0 : i32, i32
  }
  func.func @transform_2(%arg0: i32) -> (i32, i32, i32) {
    %c0_i32 = arith.constant 0 : i32
    %c0_i32_0 = arith.constant 0 : i32
    %c0_i32_1 = arith.constant 0 : i32
    %c0_i32_2 = arith.constant 0 : i32
    return %c0_i32, %c0_i32_0, %c0_i32_1 : i32, i32, i32
  }
  func.func @transform_3(%arg0: i32) -> (i32, i32, i32, i32) {
    %c0_i32 = arith.constant 0 : i32
    %c0_i32_0 = arith.constant 0 : i32
    %c0_i32_1 = arith.constant 0 : i32
    %c0_i32_2 = arith.constant 0 : i32
    return %arg0, %c0_i32, %c0_i32_0, %c0_i32_1 : i32, i32, i32, i32
  }
  func.func @transform_4(%arg0: i32) -> (i32, i32, i32) {
    %c0_i32 = arith.constant 0 : i32
    %c0_i32_0 = arith.constant 0 : i32
    %c0_i32_1 = arith.constant 0 : i32
    return %arg0, %c0_i32, %c0_i32_0 : i32, i32, i32
  }
}

module attributes {stable_mosaic.version = 11 : i64} {
  func.func @_bn_residual_kernel(%arg0: i32, %arg1: memref<1x128x128xbf16, #tpu.memory_space<vmem>>, %arg2: memref<1x128x128xf32, #tpu.memory_space<vmem>>, %arg3: memref<2x128xf32, #tpu.memory_space<vmem>>, %arg4: memref<1x128x128xf32, #tpu.memory_space<vmem>>) attributes {dimension_semantics = [#tpu.dimension_semantics<parallel>], iteration_bounds = array<i64: 4>, scalar_prefetch = 0 : i64, scratch_operands = 0 : i64, tpu.core_type = #tpu.core_type<tc>, window_params = [{transform_indices = @transform_0, window_bounds = array<i64: 1, 128, 128>}, {transform_indices = @transform_1, window_bounds = array<i64: 1, 128, 128>}, {pipeline_mode = #tpu.pipeline_mode<synchronous>, transform_indices = @transform_2, window_bounds = array<i64: 2, 128>}, {transform_indices = @transform_3, window_bounds = array<i64: 1, 128, 128>}]} {
    %c0 = arith.constant 0 : index
    %c0_0 = arith.constant 0 : index
    %0 = vector.load %arg3[%c0, %c0_0] : memref<2x128xf32, #tpu.memory_space<vmem>>, vector<1x128xf32>
    %c1 = arith.constant 1 : index
    %c0_1 = arith.constant 0 : index
    %1 = vector.load %arg3[%c1, %c0_1] : memref<2x128xf32, #tpu.memory_space<vmem>>, vector<1x128xf32>
    %c0_2 = arith.constant 0 : index
    %c0_3 = arith.constant 0 : index
    %c0_4 = arith.constant 0 : index
    %2 = vector.load %arg1[%c0_2, %c0_3, %c0_4] : memref<1x128x128xbf16, #tpu.memory_space<vmem>>, vector<1x128x128xbf16>
    %3 = arith.extf %2 : vector<1x128x128xbf16> to vector<1x128x128xf32>
    %4 = vector.shape_cast %0 : vector<1x128xf32> to vector<1x1x128xf32>
    %5 = vector.broadcast %4 : vector<1x1x128xf32> to vector<1x128x128xf32>
    %6 = arith.mulf %3, %5 : vector<1x128x128xf32>
    %7 = vector.shape_cast %1 : vector<1x128xf32> to vector<1x1x128xf32>
    %8 = vector.broadcast %7 : vector<1x1x128xf32> to vector<1x128x128xf32>
    %9 = arith.addf %6, %8 : vector<1x128x128xf32>
    %c0_5 = arith.constant 0 : index
    %c0_6 = arith.constant 0 : index
    %c0_7 = arith.constant 0 : index
    %10 = vector.load %arg2[%c0_5, %c0_6, %c0_7] : memref<1x128x128xf32, #tpu.memory_space<vmem>>, vector<1x128x128xf32>
    %11 = arith.addf %10, %9 : vector<1x128x128xf32>
    %c0_8 = arith.constant 0 : index
    %c0_9 = arith.constant 0 : index
    %c0_10 = arith.constant 0 : index
    %12 = vector.load %arg4[%c0_8, %c0_9, %c0_10] : memref<1x128x128xf32, #tpu.memory_space<vmem>>, vector<1x128x128xf32>
    tpu.vector_store %arg4[%c0_8, %c0_9, %c0_10], %11 {strides = array<i32>} : memref<1x128x128xf32, #tpu.memory_space<vmem>>, vector<1x128x128xf32>,
    return
  }
  func.func @transform_0(%arg0: i32) -> (i32, i32, i32) {
    %c0_i32 = arith.constant 0 : i32
    %c0_i32_0 = arith.constant 0 : i32
    %c0_i32_1 = arith.constant 0 : i32
    return %arg0, %c0_i32, %c0_i32_0 : i32, i32, i32
  }
  func.func @transform_1(%arg0: i32) -> (i32, i32, i32) {
    %c0_i32 = arith.constant 0 : i32
    %c0_i32_0 = arith.constant 0 : i32
    %c0_i32_1 = arith.constant 0 : i32
    return %arg0, %c0_i32, %c0_i32_0 : i32, i32, i32
  }
  func.func @transform_2(%arg0: i32) -> (i32, i32) {
    %c0_i32 = arith.constant 0 : i32
    %c0_i32_0 = arith.constant 0 : i32
    %c0_i32_1 = arith.constant 0 : i32
    return %c0_i32, %c0_i32_0 : i32, i32
  }
  func.func @transform_3(%arg0: i32) -> (i32, i32, i32) {
    %c0_i32 = arith.constant 0 : i32
    %c0_i32_0 = arith.constant 0 : i32
    %c0_i32_1 = arith.constant 0 : i32
    return %arg0, %c0_i32, %c0_i32_0 : i32, i32, i32
  }
}

</mosaic_0001>

<llo_original>
// kernel: tile.13
$region0: #{tile.13}
  #allocation0 [shape = 's32[1]{0}', space=sflag, size = 0x4, scoped, tag = 'scoped memory for tile.13']
  %s0 = inlined_call_operand.vmem [shape: f32[64], index: 0, kind: input, shape index: {}]
  %s1 = inlined_call_operand.vmem [shape: f32[2,64], index: 1, kind: output, shape index: {}]
  // Predicated region
  $region2: #{tile.13} parent=0 // pred_check
    _
  $region3: #{tile.13} parent=0 // pred_check_branch
    %3 = sbr.rel (0) target = $region5
  $region4: #{tile.13} parent=0 // pred_region
    _
  $region5: #{tile.13} parent=0 // pred_fallthru
    _
  %v4 = vld [vmem:[%s0] ss:$0 sm:$0xff]
  %5 = vst [vmem:[%s1] sm:$0x3] %v4

// kernel: tile.18
$region0: #{tile.18}
  %s0 = inlined_call_operand.vmem [shape: f32[2,64], index: 0, kind: input, shape index: {}]
  %s1 = inlined_call_operand.vmem [shape: f32[1,128], index: 1, kind: output, shape index: {}]
  $region1: #{tile.18} parent=0
    #allocation0 [shape = 'u8[4096]{0}', space=vmem, size = 0x1000, scoped, tag = 'scoped mem for output reshape']
    #allocation1 [shape = 'u8[4096]{0}', space=vmem, size = 0x1000, scoped, tag = 'scoped mem for input reshape']
    %s3 = sshllo.u32 0, 2
    %v4 = vld [vmem:[%s0] sm:%s3]
    %5 = vst [vmem:[#allocation1] sm:%s3] %v4
    %v6 = vld [vmem:[#allocation1] sm:$0x1]
    %vm7 = vcmask 523264
    %8 = vst.msk [vmem:[#allocation0] sm:$0x1] %vm7, %v6
    %s9 = scalar_lea.vmem [#allocation1], 1
    %v10 = vld [vmem:[%s9] sm:$0x1]
    %11 = vrot.lane.b32.xlu0 %v10, 64
    %v12 = vpop.permute.xlu0 %11
    %vm13 = vcmask 1048064
    %14 = vst.msk [vmem:[#allocation0] sm:$0x1] %vm13, %v12
    %s16 = sshllo.u32 0, 1
    %v18 = vld [vmem:[#allocation0] sm:%s16]
    %s19 = sshllo.u32 0, 1
    %20 = vst [vmem:[%s1] sm:%s19] %v18

// kernel: residual_block_forward.5
$region0: #{residual_block_forward.5}
  #allocation0 [shape = 'u32[]', space=smem, size = 0x4, offset = 0x4, fixed_abs, tag = 'smem constant byte address 0x4 - core index']
  #allocation1 [shape = 'u32[144,128]{1,0:T(1,128)}', space=vmem, size = 0x12000, scoped, tag = 'internal scratch']
  %s0 = inlined_call_operand.vmem [shape: bf16[4,128,128], index: 0, kind: input, shape index: {}]
  %s1 = inlined_call_operand.vmem [shape: f32[4,128,128], index: 1, kind: input, shape index: {}]
  %s2 = inlined_call_operand.vmem [shape: f32[2,128], index: 2, kind: input, shape index: {}]
  %s3 = inlined_call_operand.vmem [shape: f32[4,128,128], index: 3, kind: output, shape index: {}]
  %s4 = sld [smem:[#allocation0]]
  $region45: #{residual_block_forward.5} parent=0
    _
  %s6 = ssub.s32 1, %s4
  %s7 = scalar_select 0, %s6, %s4
  loop: start=0, step=1, limit=6
  $region2: #{residual_block_forward.5} parent=0 // loop_pre_header
    _
  $region3: #{residual_block_forward.5} parent=0 // loop_header
    %s9 = sphi 0, %s13
    %p10 = scmp.ge.s32.totalorder %s9, 6
    %s19 = sphi 0, %s21
    %s22 = sphi 0, %s19
    %s23 = sphi 0, %s22
    %s39 = sphi 0, %s23
    %s45 = sphi 0, %s47
    %s48 = sphi 0, %s45
    %s49 = sphi 0, %s48
    %s65 = sphi 0, %s49
    %s69 = sphi 0, %s69
    %s71 = sphi 0, %s69
    %s72 = sphi 0, %s71
    %s86 = sphi 0, %s72
    %s92 = sphi 0, %s94
    %s95 = sphi 0, %s92
    %s96 = sphi 0, %s95
    %s112 = sphi 0, %s96
  $region4: #{residual_block_forward.5} parent=0 // loop_header_branch
    %12 = sbr.rel (%p10) target = $region8
  $region5: #{residual_block_forward.5} parent=0 // loop_body
    %s14 = ssub.s32 %s9, 1
    %s15 = ssub.s32 %s9, 2
    %s16 = sadd.s32 %s9, 1
    %s17 = ssub.s32 %s9, %s16
    %p18 = scmp.eq.s32.totalorder %s17, 0
    %s20 = sadd.s32 %s19, 1
    %s21 = scalar_select %p18, %s19, %s20
    %p24 = pneg %p18
    %p25 = scmp.eq.s32.totalorder %s9, 3
    %p26 = por %p24, %p25
    %p27 = scmp.ne.s32.totalorder %s19, %s22
    %p28 = scmp.eq.s32.totalorder %s9, 0
    %p29 = por %p27, %p28
    %p30 = scmp.ne.s32.totalorder %s19, %s22
    %p31 = scmp.eq.s32.totalorder %s14, 3
    %p32 = por %p30, %p31
    %p33 = scmp.ne.s32.totalorder %s22, %s23
    %p34 = scmp.eq.s32.totalorder %s14, 0
    %p35 = por %p33, %p34
    %p36 = scmp.ne.s32.totalorder %s22, %s23
    %p37 = scmp.eq.s32.totalorder %s15, 3
    %p38 = por %p36, %p37
    %p40 = scmp.ne.s32.totalorder %s23, %s39
    %p41 = scmp.eq.s32.totalorder %s15, 0
    %p42 = por %p40, %p41
    %s43 = ssub.s32 %s9, %s16
    %p44 = scmp.eq.s32.totalorder %s43, 0
    %s46 = sadd.s32 %s45, 1
    %s47 = scalar_select %p44, %s45, %s46
    %p50 = pneg %p44
    %p51 = scmp.eq.s32.totalorder %s9, 3
    %p52 = por %p50, %p51
    %p53 = scmp.ne.s32.totalorder %s45, %s48
    %p54 = scmp.eq.s32.totalorder %s9, 0
    %p55 = por %p53, %p54
    %p56 = scmp.ne.s32.totalorder %s45, %s48
    %p57 = scmp.eq.s32.totalorder %s14, 3
    %p58 = por %p56, %p57
    %p59 = scmp.ne.s32.totalorder %s48, %s49
    %p60 = scmp.eq.s32.totalorder %s14, 0
    %p61 = por %p59, %p60
    %p62 = scmp.ne.s32.totalorder %s48, %s49
    %p63 = scmp.eq.s32.totalorder %s15, 3
    %p64 = por %p62, %p63
    %p66 = scmp.ne.s32.totalorder %s49, %s65
    %p67 = scmp.eq.s32.totalorder %s15, 0
    %p68 = por %p66, %p67
    %s70 = sadd.s32 %s69, 1
    %p73 = scmp.eq.s32.totalorder %s9, 3
    %p74 = scmp.ne.s32.totalorder %s69, %s71
    %p75 = scmp.eq.s32.totalorder %s9, 0
    %p76 = por %p74, %p75
    %p77 = scmp.ne.s32.totalorder %s69, %s71
    %p78 = scmp.eq.s32.totalorder %s14, 3
    %p79 = por %p77, %p78
    %p80 = scmp.ne.s32.totalorder %s71, %s72
    %p81 = scmp.eq.s32.totalorder %s14, 0
    %p82 = por %p80, %p81
    %p83 = scmp.ne.s32.totalorder %s71, %s72
    %p84 = scmp.eq.s32.totalorder %s15, 3
    %p85 = por %p83, %p84
    %p87 = scmp.ne.s32.totalorder %s72, %s86
    %p88 = scmp.eq.s32.totalorder %s15, 0
    %p89 = por %p87, %p88
    %s90 = ssub.s32 %s9, %s16
    %p91 = scmp.eq.s32.totalorder %s90, 0
    %s93 = sadd.s32 %s92, 1
    %s94 = scalar_select %p91, %s92, %s93
    %p97 = pneg %p91
    %p98 = scmp.eq.s32.totalorder %s9, 3
    %p99 = por %p97, %p98
    %p100 = scmp.ne.s32.totalorder %s92, %s95
    %p101 = scmp.eq.s32.totalorder %s9, 0
    %p102 = por %p100, %p101
    %p103 = scmp.ne.s32.totalorder %s92, %s95
    %p104 = scmp.eq.s32.totalorder %s14, 3
    %p105 = por %p103, %p104
    %p106 = scmp.ne.s32.totalorder %s95, %s96
    %p107 = scmp.eq.s32.totalorder %s14, 0
    %p108 = por %p106, %p107
    %p109 = scmp.ne.s32.totalorder %s95, %s96
    %p110 = scmp.eq.s32.totalorder %s15, 3
    %p111 = por %p109, %p110
    %p113 = scmp.ne.s32.totalorder %s96, %s112
    %p114 = scmp.eq.s32.totalorder %s15, 0
    %p115 = por %p113, %p114
    %p116 = scmp.le.s32.totalorder 1, %s9
    %p117 = scmp.lt.s32.totalorder %s9, 5
    %p118 = pnand %p116, %p117
    %p119 = pneg %p118
    // Predicated region
    $region9: #{residual_block_forward.5} parent=5 // pred_check
      _
    $region10: #{residual_block_forward.5} parent=5 // pred_check_branch
      %121 = sbr.rel (%p118) target = $region12
    $region11: #{residual_block_forward.5} parent=5 // pred_region
      %s122 = ssub.s32 %s9, 1
      // Predicated region
      $region13: #{residual_block_forward.5} parent=11 // pred_check
        %p123 = pneg %p82
      $region14: #{residual_block_forward.5} parent=11 // pred_check_branch
        %125 = sbr.rel (%p123) target = $region16
      $region15: #{residual_block_forward.5} parent=11 // pred_region
        _
      $region16: #{residual_block_forward.5} parent=11 // pred_fallthru
        _
    $region12: #{residual_block_forward.5} parent=5 // pred_fallthru
      _
    %p126 = scmp.lt.s32.totalorder %s9, 4
    // Predicated region
    $region17: #{residual_block_forward.5} parent=5 // pred_check
      %p127 = pneg %p126
    $region18: #{residual_block_forward.5} parent=5 // pred_check_branch
      %129 = sbr.rel (%p127) target = $region20
    $region19: #{residual_block_forward.5} parent=5 // pred_region
      // Predicated region
      $region21: #{residual_block_forward.5} parent=19 // pred_check
        %p130 = pneg %p29
      $region22: #{residual_block_forward.5} parent=19 // pred_check_branch
        %132 = sbr.rel (%p130) target = $region24
      $region23: #{residual_block_forward.5} parent=19 // pred_region
        %p133 = scmp.lt.s32.totalorder %s9, 3
        %s134 = scalar_select %p133, %s9, 3
        %s135 = smul.addr %s134, 16
        %s136 = smul.addr %s135, 4
        %s137 = scalar_lea.vmem %s0, %s136
      $region24: #{residual_block_forward.5} parent=19 // pred_fallthru
        _
      // Predicated region
      $region25: #{residual_block_forward.5} parent=19 // pred_check
        %p138 = pneg %p55
      $region26: #{residual_block_forward.5} parent=19 // pred_check_branch
        %140 = sbr.rel (%p138) target = $region28
      $region27: #{residual_block_forward.5} parent=19 // pred_region
        %p141 = scmp.lt.s32.totalorder %s9, 3
        %s142 = scalar_select %p141, %s9, 3
        %s143 = smul.addr %s142, 16
        %s144 = smul.addr %s143, 8
        %s145 = scalar_lea.vmem %s1, %s144
      $region28: #{residual_block_forward.5} parent=19 // pred_fallthru
        _
    $region20: #{residual_block_forward.5} parent=5 // pred_fallthru
      _
    %p146 = scmp.le.s32.totalorder 1, %s9
    %p147 = scmp.lt.s32.totalorder %s9, 5
    %p148 = pnand %p146, %p147
    %p149 = pneg %p148
    // Predicated region
    $region29: #{residual_block_forward.5} parent=5 // pred_check
      _
    $region30: #{residual_block_forward.5} parent=5 // pred_check_branch
      %151 = sbr.rel (%p148) target = $region32
    $region31: #{residual_block_forward.5} parent=5 // pred_region
      %s152 = ssub.s32 %s9, 1
      %p153 = scmp.lt.s32.totalorder %s14, 3
      %s154 = scalar_select %p153, %s14, 3
      %s155 = smul.addr %s154, 16
      %s156 = smul.addr %s155, 4
      %s157 = scalar_lea.vmem %s0, %s156
      %p158 = pneg %p35
      %p159 = pneg %p32
      %p160 = scmp.lt.s32.totalorder %s14, 3
      %s161 = scalar_select %p160, %s14, 3
      %s162 = smul.addr %s161, 16
      %s163 = smul.addr %s162, 8
      %s164 = scalar_lea.vmem %s1, %s163
      %p165 = pneg %p61
      %p166 = pneg %p58
      %p167 = pneg %p82
      %p168 = pneg %p79
      %p169 = pneg %p108
      %p170 = pneg %p105
      %p171 = scmp.lt.s32.totalorder %s14, 3
      %s172 = scalar_select %p171, %s14, 3
      %s173 = smul.addr %s172, 16
      %s174 = smul.addr %s173, 8
      %s175 = scalar_lea.vmem %s3, %s174
      %p176 = scmp.lt.s32.totalorder %s14, 3
      %s177 = scalar_select %p176, %s14, 3
      %s178 = smul.addr %s177, 16
      %s179 = smul.addr %s178, 4
      %s180 = scalar_lea.vmem %s0, %s179
      %p181 = scmp.lt.s32.totalorder %s14, 3
      %s182 = scalar_select %p181, %s14, 3
      %s183 = smul.addr %s182, 16
      %s184 = smul.addr %s183, 8
      %s185 = scalar_lea.vmem %s1, %s184
      %p186 = scmp.lt.s32.totalorder %s14, 3
      %s187 = scalar_select %p186, %s14, 3
      %s188 = smul.addr %s187, 16
      %s189 = smul.addr %s188, 8
      %s190 = scalar_lea.vmem %s3, %s189
      %v191 = vld [vmem:[%s2] sm:$0x1]
      %v192 = vld [vmem:[%s2 + $0x1] sm:$0x1]
      %v193 = vld [vmem:[%s180] sm:$0xf]
      %v194 = vld [vmem:[%s180 + $0x4] sm:$0xf]
      %v195 = vld [vmem:[%s180 + $0x8] sm:$0xf]
      %v196 = vld [vmem:[%s180 + $0xc] sm:$0xf]
      %v197 = vld [vmem:[%s180 + $0x10] sm:$0xf]
      %v198 = vld [vmem:[%s180 + $0x14] sm:$0xf]
      %v199 = vld [vmem:[%s180 + $0x18] sm:$0xf]
      %v200 = vld [vmem:[%s180 + $0x1c] sm:$0xf]
      %v201 = vld [vmem:[%s180 + $0x20] sm:$0xf]
      %v202 = vld [vmem:[%s180 + $0x24] sm:$0xf]
      %v203 = vld [vmem:[%s180 + $0x28] sm:$0xf]
      %v204 = vld [vmem:[%s180 + $0x2c] sm:$0xf]
      %v205 = vld [vmem:[%s180 + $0x30] sm:$0xf]
      %v206 = vld [vmem:[%s180 + $0x34] sm:$0xf]
      %v207 = vld [vmem:[%s180 + $0x38] sm:$0xf]
      %v208 = vld [vmem:[%s180 + $0x3c] sm:$0xf]
      %v209 = vunpack.c.l.bf16 %v193
      %v210 = vunpack.c.l.bf16 %v194
      %v211 = vunpack.c.l.bf16 %v195
      %v212 = vunpack.c.l.bf16 %v196
      %v213 = vunpack.c.l.bf16 %v197
      %v214 = vunpack.c.l.bf16 %v198
      %v215 = vunpack.c.l.bf16 %v199
      %v216 = vunpack.c.l.bf16 %v200
      %v217 = vunpack.c.l.bf16 %v201
      %v218 = vunpack.c.l.bf16 %v202
      %v219 = vunpack.c.l.bf16 %v203
      %v220 = vunpack.c.l.bf16 %v204
      %v221 = vunpack.c.l.bf16 %v205
      %v222 = vunpack.c.l.bf16 %v206
      %v223 = vunpack.c.l.bf16 %v207
      %v224 = vunpack.c.l.bf16 %v208
      %v225 = vlaneseq
      %v226 = vshrl.u32 %v225, 7
      %v227 = vsub.s32 0, %v226
      %v228 = vrot.slane %v191, %v227
      %v229 = vmul.f32 %v209, %v228
      %v230 = vmul.f32 %v210, %v228
      %v231 = vmul.f32 %v211, %v228
      %v232 = vmul.f32 %v212, %v228
      %v233 = vmul.f32 %v213, %v228
      %v234 = vmul.f32 %v214, %v228
      %v235 = vmul.f32 %v215, %v228
      %v236 = vmul.f32 %v216, %v228
      %v237 = vmul.f32 %v217, %v228
      %v238 = vmul.f32 %v218, %v228
      %v239 = vmul.f32 %v219, %v228
      %v240 = vmul.f32 %v220, %v228
      %v241 = vmul.f32 %v221, %v228
      %v242 = vmul.f32 %v222, %v228
      %v243 = vmul.f32 %v223, %v228
      %v244 = vmul.f32 %v224, %v228
      %v245 = vlaneseq
      %v246 = vshrl.u32 %v245, 7
      %v247 = vsub.s32 0, %v246
      %v248 = vrot.slane %v192, %v247
      %v249 = vadd.f32 %v229, %v248
      %v250 = vadd.f32 %v230, %v248
      %v251 = vadd.f32 %v231, %v248
      %v252 = vadd.f32 %v232, %v248
      %v253 = vadd.f32 %v233, %v248
      %v254 = vadd.f32 %v234, %v248
      %v255 = vadd.f32 %v235, %v248
      %v256 = vadd.f32 %v236, %v248
      %v257 = vadd.f32 %v237, %v248
      %v258 = vadd.f32 %v238, %v248
      %v259 = vadd.f32 %v239, %v248
      %v260 = vadd.f32 %v240, %v248
      %v261 = vadd.f32 %v241, %v248
      %v262 = vadd.f32 %v242, %v248
      %v263 = vadd.f32 %v243, %v248
      %v264 = vadd.f32 %v244, %v248
      %v265 = vld [vmem:[%s185] sm:$0xff]
      %v266 = vld [vmem:[%s185 + $0x8] sm:$0xff]
      %v267 = vld [vmem:[%s185 + $0x10] sm:$0xff]
      %v268 = vld [vmem:[%s185 + $0x18] sm:$0xff]
      %v269 = vld [vmem:[%s185 + $0x20] sm:$0xff]
      %v270 = vld [vmem:[%s185 + $0x28] sm:$0xff]
      %v271 = vld [vmem:[%s185 + $0x30] sm:$0xff]
      %v272 = vld [vmem:[%s185 + $0x38] sm:$0xff]
      %v273 = vld [vmem:[%s185 + $0x40] sm:$0xff]
      %v274 = vld [vmem:[%s185 + $0x48] sm:$0xff]
      %v275 = vld [vmem:[%s185 + $0x50] sm:$0xff]
      %v276 = vld [vmem:[%s185 + $0x58] sm:$0xff]
      %v277 = vld [vmem:[%s185 + $0x60] sm:$0xff]
      %v278 = vld [vmem:[%s185 + $0x68] sm:$0xff]
      %v279 = vld [vmem:[%s185 + $0x70] sm:$0xff]
      %v280 = vld [vmem:[%s185 + $0x78] sm:$0xff]
      %v281 = vadd.f32 %v265, %v249
      %v282 = vadd.f32 %v266, %v250
      %v283 = vadd.f32 %v267, %v251
      %v284 = vadd.f32 %v268, %v252
      %v285 = vadd.f32 %v269, %v253
      %v286 = vadd.f32 %v270, %v254
      %v287 = vadd.f32 %v271, %v255
      %v288 = vadd.f32 %v272, %v256
      %v289 = vadd.f32 %v273, %v257
      %v290 = vadd.f32 %v274, %v258
      %v291 = vadd.f32 %v275, %v259
      %v292 = vadd.f32 %v276, %v260
      %v293 = vadd.f32 %v277, %v261
      %v294 = vadd.f32 %v278, %v262
      %v295 = vadd.f32 %v279, %v263
      %v296 = vadd.f32 %v280, %v264
      %297 = vst [vmem:[%s190] sm:$0xff] %v281
      %298 = vst [vmem:[%s190 + $0x8] sm:$0xff] %v282
      %299 = vst [vmem:[%s190 + $0x10] sm:$0xff] %v283
      %300 = vst [vmem:[%s190 + $0x18] sm:$0xff] %v284
      %301 = vst [vmem:[%s190 + $0x20] sm:$0xff] %v285
      %302 = vst [vmem:[%s190 + $0x28] sm:$0xff] %v286
      %303 = vst [vmem:[%s190 + $0x30] sm:$0xff] %v287
      %304 = vst [vmem:[%s190 + $0x38] sm:$0xff] %v288
      %305 = vst [vmem:[%s190 + $0x40] sm:$0xff] %v289
      %306 = vst [vmem:[%s190 + $0x48] sm:$0xff] %v290
      %307 = vst [vmem:[%s190 + $0x50] sm:$0xff] %v291
      %308 = vst [vmem:[%s190 + $0x58] sm:$0xff] %v292
      %309 = vst [vmem:[%s190 + $0x60] sm:$0xff] %v293
      %310 = vst [vmem:[%s190 + $0x68] sm:$0xff] %v294
      %311 = vst [vmem:[%s190 + $0x70] sm:$0xff] %v295
      %312 = vst [vmem:[%s190 + $0x78] sm:$0xff] %v296
      %p313 = scmp.lt.s32.totalorder %s14, 3
      %s314 = scalar_select %p313, %s14, 3
      %s315 = smul.addr %s314, 16
      %s316 = smul.addr %s315, 8
      %s317 = scalar_lea.vmem %s3, %s316
      // Predicated region
      $region33: #{residual_block_forward.5} parent=31 // pred_check
        %p318 = pneg %p105
      $region34: #{residual_block_forward.5} parent=31 // pred_check_branch
        %320 = sbr.rel (%p318) target = $region36
      $region35: #{residual_block_forward.5} parent=31 // pred_region
        _
      $region36: #{residual_block_forward.5} parent=31 // pred_fallthru
        _
    $region32: #{residual_block_forward.5} parent=5 // pred_fallthru
      _
    %p321 = scmp.le.s32.totalorder 2, %s9
    // Predicated region
    $region37: #{residual_block_forward.5} parent=5 // pred_check
      %p322 = pneg %p321
    $region38: #{residual_block_forward.5} parent=5 // pred_check_branch
      %324 = sbr.rel (%p322) target = $region40
    $region39: #{residual_block_forward.5} parent=5 // pred_region
      %s325 = ssub.s32 %s9, 2
      // Predicated region
      $region41: #{residual_block_forward.5} parent=39 // pred_check
        %p326 = pneg %p111
      $region42: #{residual_block_forward.5} parent=39 // pred_check_branch
        %328 = sbr.rel (%p326) target = $region44
      $region43: #{residual_block_forward.5} parent=39 // pred_region
        %p329 = scmp.lt.s32.totalorder %s15, 3
        %s330 = scalar_select %p329, %s15, 3
        %s331 = smul.addr %s330, 16
        %s332 = smul.addr %s331, 8
        %s333 = scalar_lea.vmem %s3, %s332
      $region44: #{residual_block_forward.5} parent=39 // pred_fallthru
        _
    $region40: #{residual_block_forward.5} parent=5 // pred_fallthru
      _
  $region6: #{residual_block_forward.5} parent=0 // loop_footer
    %s13 = sadd.s32 1, %s9
  $region7: #{residual_block_forward.5} parent=0 // loop_footer_branch
    %8 = sbr.rel target = $region3
  $region8: #{residual_block_forward.5} parent=0 // loop_exit
    _

// kernel: residual_block_forward.3
$region0: #{residual_block_forward.3}
  #allocation0 [shape = 'u32[]', space=smem, size = 0x4, offset = 0x4, fixed_abs, tag = 'smem constant byte address 0x4 - core index']
  #allocation1 [shape = 'u32[144,128]{1,0:T(1,128)}', space=vmem, size = 0x12000, scoped, tag = 'internal scratch']
  #allocation2 [shape = 'bf16[18,18,64]{2,1,0:T(8,128)(2,1)}', space=vmem, size = 0x1b000, scoped, tag = 'scratch operand']
  %s0 = inlined_call_operand.vmem [shape: bf16[4,16,16,64], index: 0, kind: input, shape index: {}]
  %s1 = inlined_call_operand.vmem [shape: f32[3,64], index: 1, kind: input, shape index: {}]
  %s2 = inlined_call_operand.vmem [shape: bf16[3,192,64], index: 2, kind: input, shape index: {}]
  %s3 = inlined_call_operand.vmem [shape: bf16[4,16,16,64], index: 3, kind: output, shape index: {0}]
  %s4 = inlined_call_operand.vmem [shape: f32[4,2,64], index: 4, kind: output, shape index: {1}]
  %5 = xla_tuple %s3, %s4
  %s6 = sld [smem:[#allocation0]]
  $region53: #{residual_block_forward.3} parent=0
    _
  %s8 = ssub.s32 1, %s6
  %s9 = scalar_select 0, %s8, %s6
  loop: start=0, step=1, limit=6
  $region2: #{residual_block_forward.3} parent=0 // loop_pre_header
    _
  $region3: #{residual_block_forward.3} parent=0 // loop_header
    %s11 = sphi 0, %s15
    %p12 = scmp.ge.s32.totalorder %s11, 6
    %s21 = sphi 0, %s23
    %s24 = sphi 0, %s21
    %s25 = sphi 0, %s24
    %s41 = sphi 0, %s25
    %s45 = sphi 0, %s45
    %s47 = sphi 0, %s45
    %s48 = sphi 0, %s47
    %s62 = sphi 0, %s48
    %s66 = sphi 0, %s66
    %s68 = sphi 0, %s66
    %s69 = sphi 0, %s68
    %s83 = sphi 0, %s69
    %s89 = sphi 0, %s91
    %s92 = sphi 0, %s89
    %s93 = sphi 0, %s92
    %s109 = sphi 0, %s93
    %s115 = sphi 0, %s117
    %s118 = sphi 0, %s115
    %s119 = sphi 0, %s118
    %s135 = sphi 0, %s119
  $region4: #{residual_block_forward.3} parent=0 // loop_header_branch
    %14 = sbr.rel (%p12) target = $region8
  $region5: #{residual_block_forward.3} parent=0 // loop_body
    %s16 = ssub.s32 %s11, 1
    %s17 = ssub.s32 %s11, 2
    %s18 = sadd.s32 %s11, 1
    %s19 = ssub.s32 %s11, %s18
    %p20 = scmp.eq.s32.totalorder %s19, 0
    %s22 = sadd.s32 %s21, 1
    %s23 = scalar_select %p20, %s21, %s22
    %p26 = pneg %p20
    %p27 = scmp.eq.s32.totalorder %s11, 3
    %p28 = por %p26, %p27
    %p29 = scmp.ne.s32.totalorder %s21, %s24
    %p30 = scmp.eq.s32.totalorder %s11, 0
    %p31 = por %p29, %p30
    %p32 = scmp.ne.s32.totalorder %s21, %s24
    %p33 = scmp.eq.s32.totalorder %s16, 3
    %p34 = por %p32, %p33
    %p35 = scmp.ne.s32.totalorder %s24, %s25
    %p36 = scmp.eq.s32.totalorder %s16, 0
    %p37 = por %p35, %p36
    %p38 = scmp.ne.s32.totalorder %s24, %s25
    %p39 = scmp.eq.s32.totalorder %s17, 3
    %p40 = por %p38, %p39
    %p42 = scmp.ne.s32.totalorder %s25, %s41
    %p43 = scmp.eq.s32.totalorder %s17, 0
    %p44 = por %p42, %p43
    %s46 = sadd.s32 %s45, 1
    %p49 = scmp.eq.s32.totalorder %s11, 3
    %p50 = scmp.ne.s32.totalorder %s45, %s47
    %p51 = scmp.eq.s32.totalorder %s11, 0
    %p52 = por %p50, %p51
    %p53 = scmp.ne.s32.totalorder %s45, %s47
    %p54 = scmp.eq.s32.totalorder %s16, 3
    %p55 = por %p53, %p54
    %p56 = scmp.ne.s32.totalorder %s47, %s48
    %p57 = scmp.eq.s32.totalorder %s16, 0
    %p58 = por %p56, %p57
    %p59 = scmp.ne.s32.totalorder %s47, %s48
    %p60 = scmp.eq.s32.totalorder %s17, 3
    %p61 = por %p59, %p60
    %p63 = scmp.ne.s32.totalorder %s48, %s62
    %p64 = scmp.eq.s32.totalorder %s17, 0
    %p65 = por %p63, %p64
    %s67 = sadd.s32 %s66, 1
    %p70 = scmp.eq.s32.totalorder %s11, 3
    %p71 = scmp.ne.s32.totalorder %s66, %s68
    %p72 = scmp.eq.s32.totalorder %s11, 0
    %p73 = por %p71, %p72
    %p74 = scmp.ne.s32.totalorder %s66, %s68
    %p75 = scmp.eq.s32.totalorder %s16, 3
    %p76 = por %p74, %p75
    %p77 = scmp.ne.s32.totalorder %s68, %s69
    %p78 = scmp.eq.s32.totalorder %s16, 0
    %p79 = por %p77, %p78
    %p80 = scmp.ne.s32.totalorder %s68, %s69
    %p81 = scmp.eq.s32.totalorder %s17, 3
    %p82 = por %p80, %p81
    %p84 = scmp.ne.s32.totalorder %s69, %s83
    %p85 = scmp.eq.s32.totalorder %s17, 0
    %p86 = por %p84, %p85
    %s87 = ssub.s32 %s11, %s18
    %p88 = scmp.eq.s32.totalorder %s87, 0
    %s90 = sadd.s32 %s89, 1
    %s91 = scalar_select %p88, %s89, %s90
    %p94 = pneg %p88
    %p95 = scmp.eq.s32.totalorder %s11, 3
    %p96 = por %p94, %p95
    %p97 = scmp.ne.s32.totalorder %s89, %s92
    %p98 = scmp.eq.s32.totalorder %s11, 0
    %p99 = por %p97, %p98
    %p100 = scmp.ne.s32.totalorder %s89, %s92
    %p101 = scmp.eq.s32.totalorder %s16, 3
    %p102 = por %p100, %p101
    %p103 = scmp.ne.s32.totalorder %s92, %s93
    %p104 = scmp.eq.s32.totalorder %s16, 0
    %p105 = por %p103, %p104
    %p106 = scmp.ne.s32.totalorder %s92, %s93
    %p107 = scmp.eq.s32.totalorder %s17, 3
    %p108 = por %p106, %p107
    %p110 = scmp.ne.s32.totalorder %s93, %s109
    %p111 = scmp.eq.s32.totalorder %s17, 0
    %p112 = por %p110, %p111
    %s113 = ssub.s32 %s11, %s18
    %p114 = scmp.eq.s32.totalorder %s113, 0
    %s116 = sadd.s32 %s115, 1
    %s117 = scalar_select %p114, %s115, %s116
    %p120 = pneg %p114
    %p121 = scmp.eq.s32.totalorder %s11, 3
    %p122 = por %p120, %p121
    %p123 = scmp.ne.s32.totalorder %s115, %s118
    %p124 = scmp.eq.s32.totalorder %s11, 0
    %p125 = por %p123, %p124
    %p126 = scmp.ne.s32.totalorder %s115, %s118
    %p127 = scmp.eq.s32.totalorder %s16, 3
    %p128 = por %p126, %p127
    %p129 = scmp.ne.s32.totalorder %s118, %s119
    %p130 = scmp.eq.s32.totalorder %s16, 0
    %p131 = por %p129, %p130
    %p132 = scmp.ne.s32.totalorder %s118, %s119
    %p133 = scmp.eq.s32.totalorder %s17, 3
    %p134 = por %p132, %p133
    %p136 = scmp.ne.s32.totalorder %s119, %s135
    %p137 = scmp.eq.s32.totalorder %s17, 0
    %p138 = por %p136, %p137
    %p139 = scmp.le.s32.totalorder 1, %s11
    %p140 = scmp.lt.s32.totalorder %s11, 5
    %p141 = pnand %p139, %p140
    %p142 = pneg %p141
    // Predicated region
    $region9: #{residual_block_forward.3} parent=5 // pred_check
      _
    $region10: #{residual_block_forward.3} parent=5 // pred_check_branch
      %144 = sbr.rel (%p141) target = $region12
    $region11: #{residual_block_forward.3} parent=5 // pred_region
      %s145 = ssub.s32 %s11, 1
      // Predicated region
      $region13: #{residual_block_forward.3} parent=11 // pred_check
        %p146 = pneg %p58
      $region14: #{residual_block_forward.3} parent=11 // pred_check_branch
        %148 = sbr.rel (%p146) target = $region16
      $region15: #{residual_block_forward.3} parent=11 // pred_region
        _
      $region16: #{residual_block_forward.3} parent=11 // pred_fallthru
        _
      // Predicated region
      $region17: #{residual_block_forward.3} parent=11 // pred_check
        %p149 = pneg %p79
      $region18: #{residual_block_forward.3} parent=11 // pred_check_branch
        %151 = sbr.rel (%p149) target = $region20
      $region19: #{residual_block_forward.3} parent=11 // pred_region
        _
      $region20: #{residual_block_forward.3} parent=11 // pred_fallthru
        _
    $region12: #{residual_block_forward.3} parent=5 // pred_fallthru
      _
    %p152 = scmp.lt.s32.totalorder %s11, 4
    // Predicated region
    $region21: #{residual_block_forward.3} parent=5 // pred_check
      %p153 = pneg %p152
    $region22: #{residual_block_forward.3} parent=5 // pred_check_branch
      %155 = sbr.rel (%p153) target = $region24
    $region23: #{residual_block_forward.3} parent=5 // pred_region
      // Predicated region
      $region25: #{residual_block_forward.3} parent=23 // pred_check
        %p156 = pneg %p31
      $region26: #{residual_block_forward.3} parent=23 // pred_check_branch
        %158 = sbr.rel (%p156) target = $region28
      $region27: #{residual_block_forward.3} parent=23 // pred_region
        %p159 = scmp.lt.s32.totalorder %s11, 3
        %s160 = scalar_select %p159, %s11, 3
        %s161 = smul.addr %s160, 32
        %s162 = smul.addr %s161, 4
        %s163 = scalar_lea.vmem %s0, %s162
      $region28: #{residual_block_forward.3} parent=23 // pred_fallthru
        _
    $region24: #{residual_block_forward.3} parent=5 // pred_fallthru
      _
    %p164 = scmp.le.s32.totalorder 1, %s11
    %p165 = scmp.lt.s32.totalorder %s11, 5
    %p166 = pnand %p164, %p165
    %p167 = pneg %p166
    // Predicated region
    $region29: #{residual_block_forward.3} parent=5 // pred_check
      _
    $region30: #{residual_block_forward.3} parent=5 // pred_check_branch
      %169 = sbr.rel (%p166) target = $region32
    $region31: #{residual_block_forward.3} parent=5 // pred_region
      %s170 = ssub.s32 %s11, 1
      %p171 = scmp.lt.s32.totalorder %s16, 3
      %s172 = scalar_select %p171, %s16, 3
      %s173 = smul.addr %s172, 32
      %s174 = smul.addr %s173, 4
      %s175 = scalar_lea.vmem %s0, %s174
      %p176 = pneg %p37
      %p177 = pneg %p34
      %p178 = pneg %p58
      %p179 = pneg %p55
      %p180 = pneg %p79
      %p181 = pneg %p76
      %p182 = pneg %p105
      %p183 = pneg %p102
      %p184 = scmp.lt.s32.totalorder %s16, 3
      %s185 = scalar_select %p184, %s16, 3
      %s186 = smul.addr %s185, 32
      %s187 = smul.addr %s186, 4
      %s188 = scalar_lea.vmem %s3, %s187
      %p189 = pneg %p131
      %p190 = pneg %p128
      %p191 = scmp.lt.s32.totalorder %s16, 3
      %s192 = scalar_select %p191, %s16, 3
      %s193 = smul.addr %s192, 2
      %s194 = scalar_lea.vmem %s4, %s193
      %p195 = scmp.lt.s32.totalorder %s16, 3
      %s196 = scalar_select %p195, %s16, 3
      %s197 = smul.addr %s196, 32
      %s198 = smul.addr %s197, 4
      %s199 = scalar_lea.vmem %s0, %s198
      %p200 = scmp.lt.s32.totalorder %s16, 3
      %s201 = scalar_select %p200, %s16, 3
      %s202 = smul.addr %s201, 32
      %s203 = smul.addr %s202, 4
      %s204 = scalar_lea.vmem %s3, %s203
      %p205 = scmp.lt.s32.totalorder %s16, 3
      %s206 = scalar_select %p205, %s16, 3
      %s207 = smul.addr %s206, 2
      %s208 = scalar_lea.vmem %s4, %s207
      %v210 = vld [vmem:[%s1] sm:$0x1]
      %v211 = vld [vmem:[%s1 + $0x1] sm:$0x1]
      %v212 = vld [vmem:[%s1 + $0x2] sm:$0x1]
      %v213 = vld [vmem:[%s199] sm:$0xf]
      %v214 = vld [vmem:[%s199 + $0x4] sm:$0xf]
      %v215 = vld [vmem:[%s199 + $0x8] sm:$0xf]
      %v216 = vld [vmem:[%s199 + $0xc] sm:$0xf]
      %v217 = vld [vmem:[%s199 + $0x10] sm:$0xf]
      %v218 = vld [vmem:[%s199 + $0x14] sm:$0xf]
      %v219 = vld [vmem:[%s199 + $0x18] sm:$0xf]
      %v220 = vld [vmem:[%s199 + $0x1c] sm:$0xf]
      %v221 = vld [vmem:[%s199 + $0x20] sm:$0xf]
      %v222 = vld [vmem:[%s199 + $0x24] sm:$0xf]
      %v223 = vld [vmem:[%s199 + $0x28] sm:$0xf]
      %v224 = vld [vmem:[%s199 + $0x2c] sm:$0xf]
      %v225 = vld [vmem:[%s199 + $0x30] sm:$0xf]
      %v226 = vld [vmem:[%s199 + $0x34] sm:$0xf]
      %v227 = vld [vmem:[%s199 + $0x38] sm:$0xf]
      %v228 = vld [vmem:[%s199 + $0x3c] sm:$0xf]
      %v229 = vld [vmem:[%s199 + $0x40] sm:$0xf]
      %v230 = vld [vmem:[%s199 + $0x44] sm:$0xf]
      %v231 = vld [vmem:[%s199 + $0x48] sm:$0xf]
      %v232 = vld [vmem:[%s199 + $0x4c] sm:$0xf]
      %v233 = vld [vmem:[%s199 + $0x50] sm:$0xf]
      %v234 = vld [vmem:[%s199 + $0x54] sm:$0xf]
      %v235 = vld [vmem:[%s199 + $0x58] sm:$0xf]
      %v236 = vld [vmem:[%s199 + $0x5c] sm:$0xf]
      %v237 = vld [vmem:[%s199 + $0x60] sm:$0xf]
      %v238 = vld [vmem:[%s199 + $0x64] sm:$0xf]
      %v239 = vld [vmem:[%s199 + $0x68] sm:$0xf]
      %v240 = vld [vmem:[%s199 + $0x6c] sm:$0xf]
      %v241 = vld [vmem:[%s199 + $0x70] sm:$0xf]
      %v242 = vld [vmem:[%s199 + $0x74] sm:$0xf]
      %v243 = vld [vmem:[%s199 + $0x78] sm:$0xf]
      %v244 = vld [vmem:[%s199 + $0x7c] sm:$0xf]
      %v245 = vunpack.c.l.bf16 %v213
      %v246 = vunpack.c.l.bf16 %v214
      %v247 = vunpack.c.l.bf16 %v215
      %v248 = vunpack.c.l.bf16 %v216
      %v249 = vunpack.c.l.bf16 %v217
      %v250 = vunpack.c.l.bf16 %v218
      %v251 = vunpack.c.l.bf16 %v219
      %v252 = vunpack.c.l.bf16 %v220
      %v253 = vunpack.c.l.bf16 %v221
      %v254 = vunpack.c.l.bf16 %v222
      %v255 = vunpack.c.l.bf16 %v223
      %v256 = vunpack.c.l.bf16 %v224
      %v257 = vunpack.c.l.bf16 %v225
      %v258 = vunpack.c.l.bf16 %v226
      %v259 = vunpack.c.l.bf16 %v227
      %v260 = vunpack.c.l.bf16 %v228
      %v261 = vunpack.c.l.bf16 %v229
      %v262 = vunpack.c.l.bf16 %v230
      %v263 = vunpack.c.l.bf16 %v231
      %v264 = vunpack.c.l.bf16 %v232
      %v265 = vunpack.c.l.bf16 %v233
      %v266 = vunpack.c.l.bf16 %v234
      %v267 = vunpack.c.l.bf16 %v235
      %v268 = vunpack.c.l.bf16 %v236
      %v269 = vunpack.c.l.bf16 %v237
      %v270 = vunpack.c.l.bf16 %v238
      %v271 = vunpack.c.l.bf16 %v239
      %v272 = vunpack.c.l.bf16 %v240
      %v273 = vunpack.c.l.bf16 %v241
      %v274 = vunpack.c.l.bf16 %v242
      %v275 = vunpack.c.l.bf16 %v243
      %v276 = vunpack.c.l.bf16 %v244
      %v277 = vlaneseq
      %v278 = vshrl.u32 %v277, 7
      %v279 = vsub.s32 0, %v278
      %v280 = vrot.slane %v210, %v279
      %v281 = vmul.f32 %v245, %v280
      %v282 = vmul.f32 %v246, %v280
      %v283 = vmul.f32 %v247, %v280
      %v284 = vmul.f32 %v248, %v280
      %v285 = vmul.f32 %v249, %v280
      %v286 = vmul.f32 %v250, %v280
      %v287 = vmul.f32 %v251, %v280
      %v288 = vmul.f32 %v252, %v280
      %v289 = vmul.f32 %v253, %v280
      %v290 = vmul.f32 %v254, %v280
      %v291 = vmul.f32 %v255, %v280
      %v292 = vmul.f32 %v256, %v280
      %v293 = vmul.f32 %v257, %v280
      %v294 = vmul.f32 %v258, %v280
      %v295 = vmul.f32 %v259, %v280
      %v296 = vmul.f32 %v260, %v280
      %v297 = vmul.f32 %v261, %v280
      %v298 = vmul.f32 %v262, %v280
      %v299 = vmul.f32 %v263, %v280
      %v300 = vmul.f32 %v264, %v280
      %v301 = vmul.f32 %v265, %v280
      %v302 = vmul.f32 %v266, %v280
      %v303 = vmul.f32 %v267, %v280
      %v304 = vmul.f32 %v268, %v280
      %v305 = vmul.f32 %v269, %v280
      %v306 = vmul.f32 %v270, %v280
      %v307 = vmul.f32 %v271, %v280
      %v308 = vmul.f32 %v272, %v280
      %v309 = vmul.f32 %v273, %v280
      %v310 = vmul.f32 %v274, %v280
      %v311 = vmul.f32 %v275, %v280
      %v312 = vmul.f32 %v276, %v280
      %v313 = vlaneseq
      %v314 = vshrl.u32 %v313, 7
      %v315 = vsub.s32 0, %v314
      %v316 = vrot.slane %v211, %v315
      %v317 = vadd.f32 %v281, %v316
      %v318 = vadd.f32 %v282, %v316
      %v319 = vadd.f32 %v283, %v316
      %v320 = vadd.f32 %v284, %v316
      %v321 = vadd.f32 %v285, %v316
      %v322 = vadd.f32 %v286, %v316
      %v323 = vadd.f32 %v287, %v316
      %v324 = vadd.f32 %v288, %v316
      %v325 = vadd.f32 %v289, %v316
      %v326 = vadd.f32 %v290, %v316
      %v327 = vadd.f32 %v291, %v316
      %v328 = vadd.f32 %v292, %v316
      %v329 = vadd.f32 %v293, %v316
      %v330 = vadd.f32 %v294, %v316
      %v331 = vadd.f32 %v295, %v316
      %v332 = vadd.f32 %v296, %v316
      %v333 = vadd.f32 %v297, %v316
      %v334 = vadd.f32 %v298, %v316
      %v335 = vadd.f32 %v299, %v316
      %v336 = vadd.f32 %v300, %v316
      %v337 = vadd.f32 %v301, %v316
      %v338 = vadd.f32 %v302, %v316
      %v339 = vadd.f32 %v303, %v316
      %v340 = vadd.f32 %v304, %v316
      %v341 = vadd.f32 %v305, %v316
      %v342 = vadd.f32 %v306, %v316
      %v343 = vadd.f32 %v307, %v316
      %v344 = vadd.f32 %v308, %v316
      %v345 = vadd.f32 %v309, %v316
      %v346 = vadd.f32 %v310, %v316
      %v347 = vadd.f32 %v311, %v316
      %v348 = vadd.f32 %v312, %v316
      %vm349 = vcmp.gt.f32.partialorder %v317, 0.0
      %vm350 = vcmp.gt.f32.partialorder %v318, 0.0
      %vm351 = vcmp.gt.f32.partialorder %v319, 0.0
      %vm352 = vcmp.gt.f32.partialorder %v320, 0.0
      %vm353 = vcmp.gt.f32.partialorder %v321, 0.0
      %vm354 = vcmp.gt.f32.partialorder %v322, 0.0
      %vm355 = vcmp.gt.f32.partialorder %v323, 0.0
      %vm356 = vcmp.gt.f32.partialorder %v324, 0.0
      %vm357 = vcmp.gt.f32.partialorder %v325, 0.0
      %vm358 = vcmp.gt.f32.partialorder %v326, 0.0
      %vm359 = vcmp.gt.f32.partialorder %v327, 0.0
      %vm360 = vcmp.gt.f32.partialorder %v328, 0.0
      %vm361 = vcmp.gt.f32.partialorder %v329, 0.0
      %vm362 = vcmp.gt.f32.partialorder %v330, 0.0
      %vm363 = vcmp.gt.f32.partialorder %v331, 0.0
      %vm364 = vcmp.gt.f32.partialorder %v332, 0.0
      %vm365 = vcmp.gt.f32.partialorder %v333, 0.0
      %vm366 = vcmp.gt.f32.partialorder %v334, 0.0
      %vm367 = vcmp.gt.f32.partialorder %v335, 0.0
      %vm368 = vcmp.gt.f32.partialorder %v336, 0.0
      %vm369 = vcmp.gt.f32.partialorder %v337, 0.0
      %vm370 = vcmp.gt.f32.partialorder %v338, 0.0
      %vm371 = vcmp.gt.f32.partialorder %v339, 0.0
      %vm372 = vcmp.gt.f32.partialorder %v340, 0.0
      %vm373 = vcmp.gt.f32.partialorder %v341, 0.0
      %vm374 = vcmp.gt.f32.partialorder %v342, 0.0
      %vm375 = vcmp.gt.f32.partialorder %v343, 0.0
      %vm376 = vcmp.gt.f32.partialorder %v344, 0.0
      %vm377 = vcmp.gt.f32.partialorder %v345, 0.0
      %vm378 = vcmp.gt.f32.partialorder %v346, 0.0
      %vm379 = vcmp.gt.f32.partialorder %v347, 0.0
      %vm380 = vcmp.gt.f32.partialorder %v348, 0.0
      %v381 = vlaneseq
      %v382 = vshrl.u32 %v381, 7
      %v383 = vsub.s32 0, %v382
      %v384 = vrot.slane %v212, %v383
      %v385 = vmul.f32 %v384, %v317
      %v386 = vmul.f32 %v384, %v318
      %v387 = vmul.f32 %v384, %v319
      %v388 = vmul.f32 %v384, %v320
      %v389 = vmul.f32 %v384, %v321
      %v390 = vmul.f32 %v384, %v322
      %v391 = vmul.f32 %v384, %v323
      %v392 = vmul.f32 %v384, %v324
      %v393 = vmul.f32 %v384, %v325
      %v394 = vmul.f32 %v384, %v326
      %v395 = vmul.f32 %v384, %v327
      %v396 = vmul.f32 %v384, %v328
      %v397 = vmul.f32 %v384, %v329
      %v398 = vmul.f32 %v384, %v330
      %v399 = vmul.f32 %v384, %v331
      %v400 = vmul.f32 %v384, %v332
      %v401 = vmul.f32 %v384, %v333
      %v402 = vmul.f32 %v384, %v334
      %v403 = vmul.f32 %v384, %v335
      %v404 = vmul.f32 %v384, %v336
      %v405 = vmul.f32 %v384, %v337
      %v406 = vmul.f32 %v384, %v338
      %v407 = vmul.f32 %v384, %v339
      %v408 = vmul.f32 %v384, %v340
      %v409 = vmul.f32 %v384, %v341
      %v410 = vmul.f32 %v384, %v342
      %v411 = vmul.f32 %v384, %v343
      %v412 = vmul.f32 %v384, %v344
      %v413 = vmul.f32 %v384, %v345
      %v414 = vmul.f32 %v384, %v346
      %v415 = vmul.f32 %v384, %v347
      %v416 = vmul.f32 %v384, %v348
      %v417 = vsel %vm349, %v317, %v385
      %v418 = vsel %vm350, %v318, %v386
      %v419 = vsel %vm351, %v319, %v387
      %v420 = vsel %vm352, %v320, %v388
      %v421 = vsel %vm353, %v321, %v389
      %v422 = vsel %vm354, %v322, %v390
      %v423 = vsel %vm355, %v323, %v391
      %v424 = vsel %vm356, %v324, %v392
      %v425 = vsel %vm357, %v325, %v393
      %v426 = vsel %vm358, %v326, %v394
      %v427 = vsel %vm359, %v327, %v395
      %v428 = vsel %vm360, %v328, %v396
      %v429 = vsel %vm361, %v329, %v397
      %v430 = vsel %vm362, %v330, %v398
      %v431 = vsel %vm363, %v331, %v399
      %v432 = vsel %vm364, %v332, %v400
      %v433 = vsel %vm365, %v333, %v401
      %v434 = vsel %vm366, %v334, %v402
      %v435 = vsel %vm367, %v335, %v403
      %v436 = vsel %vm368, %v336, %v404
      %v437 = vsel %vm369, %v337, %v405
      %v438 = vsel %vm370, %v338, %v406
      %v439 = vsel %vm371, %v339, %v407
      %v440 = vsel %vm372, %v340, %v408
      %v441 = vsel %vm373, %v341, %v409
      %v442 = vsel %vm374, %v342, %v410
      %v443 = vsel %vm375, %v343, %v411
      %v444 = vsel %vm376, %v344, %v412
      %v445 = vsel %vm377, %v345, %v413
      %v446 = vsel %vm378, %v346, %v414
      %v447 = vsel %vm379, %v347, %v415
      %v448 = vsel %vm380, %v348, %v416
      %v449 = vpack.c.bf16 %v418, %v417
      %v450 = vpack.c.bf16 %v420, %v419
      %v451 = vpack.c.bf16 %v422, %v421
      %v452 = vpack.c.bf16 %v424, %v423
      %v453 = vpack.c.bf16 %v426, %v425
      %v454 = vpack.c.bf16 %v428, %v427
      %v455 = vpack.c.bf16 %v430, %v429
      %v456 = vpack.c.bf16 %v432, %v431
      %v457 = vpack.c.bf16 %v434, %v433
      %v458 = vpack.c.bf16 %v436, %v435
      %v459 = vpack.c.bf16 %v438, %v437
      %v460 = vpack.c.bf16 %v440, %v439
      %v461 = vpack.c.bf16 %v442, %v441
      %v462 = vpack.c.bf16 %v444, %v443
      %v463 = vpack.c.bf16 %v446, %v445
      %v464 = vpack.c.bf16 %v448, %v447
      %vm465 = vcmask 519168
      %466 = vst.msk [vmem:[#allocation2] sm:$0xf] %vm465, 0
      %467 = vst.msk [vmem:[#allocation2 + $0x4] sm:$0xf] %vm465, 0
      %vm468 = vcmask 516096
      %469 = vst.msk [vmem:[#allocation2 + $0x8] sm:$0x1] %vm468, 0
      %470 = vst.msk [vmem:[#allocation2 + $0xc] sm:$0xf] %vm465, 0
      %471 = vst.msk [vmem:[#allocation2 + $0x10] sm:$0xf] %vm465, 0
      %472 = vst.msk [vmem:[#allocation2 + $0x14] sm:$0x1] %vm468, 0
      %473 = vst.msk [vmem:[#allocation2 + $0x18] sm:$0xf] %vm465, 0
      %474 = vst.msk [vmem:[#allocation2 + $0x1c] sm:$0xf] %vm465, 0
      %475 = vst.msk [vmem:[#allocation2 + $0x20] sm:$0x1] %vm468, 0
      %476 = vst.msk [vmem:[#allocation2 + $0x24] sm:$0xf] %vm465, 0
      %477 = vst.msk [vmem:[#allocation2 + $0x28] sm:$0xf] %vm465, 0
      %478 = vst.msk [vmem:[#allocation2 + $0x2c] sm:$0x1] %vm468, 0
      %479 = vst.msk [vmem:[#allocation2 + $0x30] sm:$0xf] %vm465, 0
      %480 = vst.msk [vmem:[#allocation2 + $0x34] sm:$0xf] %vm465, 0
      %481 = vst.msk [vmem:[#allocation2 + $0x38] sm:$0x1] %vm468, 0
      %482 = vst.msk [vmem:[#allocation2 + $0x3c] sm:$0xf] %vm465, 0
      %483 = vst.msk [vmem:[#allocation2 + $0x40] sm:$0xf] %vm465, 0
      %484 = vst.msk [vmem:[#allocation2 + $0x44] sm:$0x1] %vm468, 0
      %485 = vst.msk [vmem:[#allocation2 + $0x48] sm:$0xf] %vm465, 0
      %486 = vst.msk [vmem:[#allocation2 + $0x4c] sm:$0xf] %vm465, 0
      %487 = vst.msk [vmem:[#allocation2 + $0x50] sm:$0x1] %vm468, 0
      %488 = vst.msk [vmem:[#allocation2 + $0x54] sm:$0xf] %vm465, 0
      %489 = vst.msk [vmem:[#allocation2 + $0x58] sm:$0xf] %vm465, 0
      %490 = vst.msk [vmem:[#allocation2 + $0x5c] sm:$0x1] %vm468, 0
      %491 = vst.msk [vmem:[#allocation2 + $0x60] sm:$0xf] %vm465, 0
      %492 = vst.msk [vmem:[#allocation2 + $0x64] sm:$0xf] %vm465, 0
      %493 = vst.msk [vmem:[#allocation2 + $0x68] sm:$0x1] %vm468, 0
      %494 = vst.msk [vmem:[#allocation2 + $0x6c] sm:$0xf] %vm465, 0
      %495 = vst.msk [vmem:[#allocation2 + $0x70] sm:$0xf] %vm465, 0
      %496 = vst.msk [vmem:[#allocation2 + $0x74] sm:$0x1] %vm468, 0
      %497 = vst.msk [vmem:[#allocation2 + $0x78] sm:$0xf] %vm465, 0
      %498 = vst.msk [vmem:[#allocation2 + $0x7c] sm:$0xf] %vm465, 0
      %499 = vst.msk [vmem:[#allocation2 + $0x80] sm:$0x1] %vm468, 0
      %500 = vst.msk [vmem:[#allocation2 + $0x84] sm:$0xf] %vm465, 0
      %501 = vst.msk [vmem:[#allocation2 + $0x88] sm:$0xf] %vm465, 0
      %502 = vst.msk [vmem:[#allocation2 + $0x8c] sm:$0x1] %vm468, 0
      %503 = vst.msk [vmem:[#allocation2 + $0x90] sm:$0xf] %vm465, 0
      %504 = vst.msk [vmem:[#allocation2 + $0x94] sm:$0xf] %vm465, 0
      %505 = vst.msk [vmem:[#allocation2 + $0x98] sm:$0x1] %vm468, 0
      %506 = vst.msk [vmem:[#allocation2 + $0x9c] sm:$0xf] %vm465, 0
      %507 = vst.msk [vmem:[#allocation2 + $0xa0] sm:$0xf] %vm465, 0
      %508 = vst.msk [vmem:[#allocation2 + $0xa4] sm:$0x1] %vm468, 0
      %509 = vst.msk [vmem:[#allocation2 + $0xa8] sm:$0xf] %vm465, 0
      %510 = vst.msk [vmem:[#allocation2 + $0xac] sm:$0xf] %vm465, 0
      %511 = vst.msk [vmem:[#allocation2 + $0xb0] sm:$0x1] %vm468, 0
      %512 = vst.msk [vmem:[#allocation2 + $0xb4] sm:$0xf] %vm465, 0
      %513 = vst.msk [vmem:[#allocation2 + $0xb8] sm:$0xf] %vm465, 0
      %514 = vst.msk [vmem:[#allocation2 + $0xbc] sm:$0x1] %vm468, 0
      %515 = vst.msk [vmem:[#allocation2 + $0xc0] sm:$0xf] %vm465, 0
      %516 = vst.msk [vmem:[#allocation2 + $0xc4] sm:$0xf] %vm465, 0
      %517 = vst.msk [vmem:[#allocation2 + $0xc8] sm:$0x1] %vm468, 0
      %518 = vst.msk [vmem:[#allocation2 + $0xcc] sm:$0xf] %vm465, 0
      %519 = vst.msk [vmem:[#allocation2 + $0xd0] sm:$0xf] %vm465, 0
      %520 = vst.msk [vmem:[#allocation2 + $0xd4] sm:$0x1] %vm468, 0
      %v537 = vunpack.c.l.b16 %v449
      %v538 = vunpack.c.h.b16 %v449
      %v539 = vunpack.c.l.b16 %v450
      %v540 = vunpack.c.h.b16 %v450
      %v541 = vunpack.c.l.b16 %v451
      %v542 = vunpack.c.h.b16 %v451
      %v543 = vunpack.c.l.b16 %v452
      %v544 = vunpack.c.h.b16 %v452
      %v545 = vunpack.c.l.b16 %v453
      %v546 = vunpack.c.h.b16 %v453
      %v547 = vunpack.c.l.b16 %v454
      %v548 = vunpack.c.h.b16 %v454
      %v549 = vunpack.c.l.b16 %v455
      %v550 = vunpack.c.h.b16 %v455
      %v551 = vunpack.c.l.b16 %v456
      %v552 = vunpack.c.h.b16 %v456
      %v553 = vunpack.c.l.b16 %v457
      %v554 = vunpack.c.h.b16 %v457
      %v555 = vunpack.c.l.b16 %v458
      %v556 = vunpack.c.h.b16 %v458
      %v557 = vunpack.c.l.b16 %v459
      %v558 = vunpack.c.h.b16 %v459
      %v559 = vunpack.c.l.b16 %v460
      %v560 = vunpack.c.h.b16 %v460
      %v561 = vunpack.c.l.b16 %v461
      %v562 = vunpack.c.h.b16 %v461
      %v563 = vunpack.c.l.b16 %v462
      %v564 = vunpack.c.h.b16 %v462
      %v565 = vunpack.c.l.b16 %v463
      %v566 = vunpack.c.h.b16 %v463
      %v567 = vunpack.c.l.b16 %v464
      %v568 = vunpack.c.h.b16 %v464
      %v569 = vpack.c.b16 %v537, %v537
      %v570 = vpack.c.b16 %v538, %v538
      %v571 = vpack.c.b16 %v539, %v539
      %v572 = vpack.c.b16 %v540, %v540
      %v573 = vpack.c.b16 %v541, %v541
      %v574 = vpack.c.b16 %v542, %v542
      %v575 = vpack.c.b16 %v543, %v543
      %v576 = vpack.c.b16 %v544, %v544
      %v577 = vpack.c.b16 %v545, %v545
      %v578 = vpack.c.b16 %v546, %v546
      %v579 = vpack.c.b16 %v547, %v547
      %v580 = vpack.c.b16 %v548, %v548
      %v581 = vpack.c.b16 %v549, %v549
      %v582 = vpack.c.b16 %v550, %v550
      %v583 = vpack.c.b16 %v551, %v551
      %v584 = vpack.c.b16 %v552, %v552
      %v585 = vpack.c.b16 %v553, %v553
      %v586 = vpack.c.b16 %v554, %v554
      %v587 = vpack.c.b16 %v555, %v555
      %v588 = vpack.c.b16 %v556, %v556
      %v589 = vpack.c.b16 %v557, %v557
      %v590 = vpack.c.b16 %v558, %v558
      %v591 = vpack.c.b16 %v559, %v559
      %v592 = vpack.c.b16 %v560, %v560
      %v593 = vpack.c.b16 %v561, %v561
      %v594 = vpack.c.b16 %v562, %v562
      %v595 = vpack.c.b16 %v563, %v563
      %v596 = vpack.c.b16 %v564, %v564
      %v597 = vpack.c.b16 %v565, %v565
      %v598 = vpack.c.b16 %v566, %v566
      %v599 = vpack.c.b16 %v567, %v567
      %v600 = vpack.c.b16 %v568, %v568
      %vm601 = vsmask.f32 256
      %vm602 = vsmask.f32 4368
      %vm603 = vmor %vm601, %vm602
      %v605 = vshrl.u32 %v569, 16
      %v607 = vrot.slane %v605, 7
      %v608 = vshll.u32 %v569, 16
      %v610 = vor.u32 %v607, %v608
      %v611 = vrot.slane %v607, 4
      %v613 = vshrl.u32 %v570, 16
      %v615 = vrot.slane %v613, 7
      %v616 = vshll.u32 %v570, 16
      %v618 = vor.u32 %v615, %v616
      %v619 = vsel %vm603, %v611, %v618
      %v620 = vrot.slane %v615, 4
      %v622 = vshrl.u32 %v571, 16
      %v624 = vrot.slane %v622, 7
      %v625 = vshll.u32 %v571, 16
      %v627 = vor.u32 %v624, %v625
      %v628 = vrot.slane %v624, 4
      %v630 = vshrl.u32 %v572, 16
      %v632 = vrot.slane %v630, 7
      %v633 = vshll.u32 %v572, 16
      %v635 = vor.u32 %v632, %v633
      %v636 = vsel %vm603, %v628, %v635
      %v637 = vrot.slane %v632, 4
      %v639 = vshrl.u32 %v573, 16
      %v641 = vrot.slane %v639, 7
      %v642 = vshll.u32 %v573, 16
      %v644 = vor.u32 %v641, %v642
      %v645 = vrot.slane %v641, 4
      %v647 = vshrl.u32 %v574, 16
      %v649 = vrot.slane %v647, 7
      %v650 = vshll.u32 %v574, 16
      %v652 = vor.u32 %v649, %v650
      %v653 = vsel %vm603, %v645, %v652
      %v654 = vrot.slane %v649, 4
      %v656 = vshrl.u32 %v575, 16
      %v658 = vrot.slane %v656, 7
      %v659 = vshll.u32 %v575, 16
      %v661 = vor.u32 %v658, %v659
      %v662 = vrot.slane %v658, 4
      %v664 = vshrl.u32 %v576, 16
      %v666 = vrot.slane %v664, 7
      %v667 = vshll.u32 %v576, 16
      %v669 = vor.u32 %v666, %v667
      %v670 = vsel %vm603, %v662, %v669
      %v671 = vrot.slane %v666, 4
      %v673 = vshrl.u32 %v577, 16
      %v675 = vrot.slane %v673, 7
      %v676 = vshll.u32 %v577, 16
      %v678 = vor.u32 %v675, %v676
      %v679 = vrot.slane %v675, 4
      %v681 = vshrl.u32 %v578, 16
      %v683 = vrot.slane %v681, 7
      %v684 = vshll.u32 %v578, 16
      %v686 = vor.u32 %v683, %v684
      %v687 = vsel %vm603, %v679, %v686
      %v688 = vrot.slane %v683, 4
      %v690 = vshrl.u32 %v579, 16
      %v692 = vrot.slane %v690, 7
      %v693 = vshll.u32 %v579, 16
      %v695 = vor.u32 %v692, %v693
      %v696 = vrot.slane %v692, 4
      %v698 = vshrl.u32 %v580, 16
      %v700 = vrot.slane %v698, 7
      %v701 = vshll.u32 %v580, 16
      %v703 = vor.u32 %v700, %v701
      %v704 = vsel %vm603, %v696, %v703
      %v705 = vrot.slane %v700, 4
      %v707 = vshrl.u32 %v581, 16
      %v709 = vrot.slane %v707, 7
      %v710 = vshll.u32 %v581, 16
      %v712 = vor.u32 %v709, %v710
      %v713 = vrot.slane %v709, 4
      %v715 = vshrl.u32 %v582, 16
      %v717 = vrot.slane %v715, 7
      %v718 = vshll.u32 %v582, 16
      %v720 = vor.u32 %v717, %v718
      %v721 = vsel %vm603, %v713, %v720
      %v722 = vrot.slane %v717, 4
      %v724 = vshrl.u32 %v583, 16
      %v726 = vrot.slane %v724, 7
      %v727 = vshll.u32 %v583, 16
      %v729 = vor.u32 %v726, %v727
      %v730 = vrot.slane %v726, 4
      %v732 = vshrl.u32 %v584, 16
      %v734 = vrot.slane %v732, 7
      %v735 = vshll.u32 %v584, 16
      %v737 = vor.u32 %v734, %v735
      %v738 = vsel %vm603, %v730, %v737
      %v739 = vrot.slane %v734, 4
      %v741 = vshrl.u32 %v585, 16
      %v743 = vrot.slane %v741, 7
      %v744 = vshll.u32 %v585, 16
      %v746 = vor.u32 %v743, %v744
      %v747 = vrot.slane %v743, 4
      %v749 = vshrl.u32 %v586, 16
      %v751 = vrot.slane %v749, 7
      %v752 = vshll.u32 %v586, 16
      %v754 = vor.u32 %v751, %v752
      %v755 = vsel %vm603, %v747, %v754
      %v756 = vrot.slane %v751, 4
      %v758 = vshrl.u32 %v587, 16
      %v760 = vrot.slane %v758, 7
      %v761 = vshll.u32 %v587, 16
      %v763 = vor.u32 %v760, %v761
      %v764 = vrot.slane %v760, 4
      %v766 = vshrl.u32 %v588, 16
      %v768 = vrot.slane %v766, 7
      %v769 = vshll.u32 %v588, 16
      %v771 = vor.u32 %v768, %v769
      %v772 = vsel %vm603, %v764, %v771
      %v773 = vrot.slane %v768, 4
      %v775 = vshrl.u32 %v589, 16
      %v777 = vrot.slane %v775, 7
      %v778 = vshll.u32 %v589, 16
      %v780 = vor.u32 %v777, %v778
      %v781 = vrot.slane %v777, 4
      %v783 = vshrl.u32 %v590, 16
      %v785 = vrot.slane %v783, 7
      %v786 = vshll.u32 %v590, 16
      %v788 = vor.u32 %v785, %v786
      %v789 = vsel %vm603, %v781, %v788
      %v790 = vrot.slane %v785, 4
      %v792 = vshrl.u32 %v591, 16
      %v794 = vrot.slane %v792, 7
      %v795 = vshll.u32 %v591, 16
      %v797 = vor.u32 %v794, %v795
      %v798 = vrot.slane %v794, 4
      %v800 = vshrl.u32 %v592, 16
      %v802 = vrot.slane %v800, 7
      %v803 = vshll.u32 %v592, 16
      %v805 = vor.u32 %v802, %v803
      %v806 = vsel %vm603, %v798, %v805
      %v807 = vrot.slane %v802, 4
      %v809 = vshrl.u32 %v593, 16
      %v811 = vrot.slane %v809, 7
      %v812 = vshll.u32 %v593, 16
      %v814 = vor.u32 %v811, %v812
      %v815 = vrot.slane %v811, 4
      %v817 = vshrl.u32 %v594, 16
      %v819 = vrot.slane %v817, 7
      %v820 = vshll.u32 %v594, 16
      %v822 = vor.u32 %v819, %v820
      %v823 = vsel %vm603, %v815, %v822
      %v824 = vrot.slane %v819, 4
      %v826 = vshrl.u32 %v595, 16
      %v828 = vrot.slane %v826, 7
      %v829 = vshll.u32 %v595, 16
      %v831 = vor.u32 %v828, %v829
      %v832 = vrot.slane %v828, 4
      %v834 = vshrl.u32 %v596, 16
      %v836 = vrot.slane %v834, 7
      %v837 = vshll.u32 %v596, 16
      %v839 = vor.u32 %v836, %v837
      %v840 = vsel %vm603, %v832, %v839
      %v841 = vrot.slane %v836, 4
      %v843 = vshrl.u32 %v597, 16
      %v845 = vrot.slane %v843, 7
      %v846 = vshll.u32 %v597, 16
      %v848 = vor.u32 %v845, %v846
      %v849 = vrot.slane %v845, 4
      %v851 = vshrl.u32 %v598, 16
      %v853 = vrot.slane %v851, 7
      %v854 = vshll.u32 %v598, 16
      %v856 = vor.u32 %v853, %v854
      %v857 = vsel %vm603, %v849, %v856
      %v858 = vrot.slane %v853, 4
      %v860 = vshrl.u32 %v599, 16
      %v862 = vrot.slane %v860, 7
      %v863 = vshll.u32 %v599, 16
      %v865 = vor.u32 %v862, %v863
      %v866 = vrot.slane %v862, 4
      %v868 = vshrl.u32 %v600, 16
      %v870 = vrot.slane %v868, 7
      %v871 = vshll.u32 %v600, 16
      %v873 = vor.u32 %v870, %v871
      %v874 = vsel %vm603, %v866, %v873
      %v875 = vrot.slane %v870, 4
      %s924 = scalar_lea.vmem [#allocation2], 12
      %vm925 = vcmask 519168
      %vm926 = vsmask.f32 7938
      %vm927 = vmand %vm925, %vm926
      %v928 = vld [vmem:[%s924] sm:$0xf]
      %v929 = vsel %vm927, %v610, %v928
      %930 = vst [vmem:[%s924] sm:$0xf] %v929
      %931 = vst.msk [vmem:[%s924 + $0x4] sm:$0xf] %vm465, %v619
      %vm932 = vcmask 516096
      %vm933 = vmand %vm932, %vm601
      %v934 = vld [vmem:[%s924 + $0x8] sm:$0x1]
      %v935 = vsel %vm933, %v620, %v934
      %936 = vst [vmem:[%s924 + $0x8] sm:$0x1] %v935
      %v937 = vld [vmem:[%s924 + $0xc] sm:$0xf]
      %v938 = vsel %vm927, %v627, %v937
      %939 = vst [vmem:[%s924 + $0xc] sm:$0xf] %v938
      %940 = vst.msk [vmem:[%s924 + $0x10] sm:$0xf] %vm465, %v636
      %v941 = vld [vmem:[%s924 + $0x14] sm:$0x1]
      %v942 = vsel %vm933, %v637, %v941
      %943 = vst [vmem:[%s924 + $0x14] sm:$0x1] %v942
      %v944 = vld [vmem:[%s924 + $0x18] sm:$0xf]
      %v945 = vsel %vm927, %v644, %v944
      %946 = vst [vmem:[%s924 + $0x18] sm:$0xf] %v945
      %947 = vst.msk [vmem:[%s924 + $0x1c] sm:$0xf] %vm465, %v653
      %v948 = vld [vmem:[%s924 + $0x20] sm:$0x1]
      %v949 = vsel %vm933, %v654, %v948
      %950 = vst [vmem:[%s924 + $0x20] sm:$0x1] %v949
      %v951 = vld [vmem:[%s924 + $0x24] sm:$0xf]
      %v952 = vsel %vm927, %v661, %v951
      %953 = vst [vmem:[%s924 + $0x24] sm:$0xf] %v952
      %954 = vst.msk [vmem:[%s924 + $0x28] sm:$0xf] %vm465, %v670
      %v955 = vld [vmem:[%s924 + $0x2c] sm:$0x1]
      %v956 = vsel %vm933, %v671, %v955
      %957 = vst [vmem:[%s924 + $0x2c] sm:$0x1] %v956
      %v958 = vld [vmem:[%s924 + $0x30] sm:$0xf]
      %v959 = vsel %vm927, %v678, %v958
      %960 = vst [vmem:[%s924 + $0x30] sm:$0xf] %v959
      %961 = vst.msk [vmem:[%s924 + $0x34] sm:$0xf] %vm465, %v687
      %v962 = vld [vmem:[%s924 + $0x38] sm:$0x1]
      %v963 = vsel %vm933, %v688, %v962
      %964 = vst [vmem:[%s924 + $0x38] sm:$0x1] %v963
      %v965 = vld [vmem:[%s924 + $0x3c] sm:$0xf]
      %v966 = vsel %vm927, %v695, %v965
      %967 = vst [vmem:[%s924 + $0x3c] sm:$0xf] %v966
      %968 = vst.msk [vmem:[%s924 + $0x40] sm:$0xf] %vm465, %v704
      %v969 = vld [vmem:[%s924 + $0x44] sm:$0x1]
      %v970 = vsel %vm933, %v705, %v969
      %971 = vst [vmem:[%s924 + $0x44] sm:$0x1] %v970
      %v972 = vld [vmem:[%s924 + $0x48] sm:$0xf]
      %v973 = vsel %vm927, %v712, %v972
      %974 = vst [vmem:[%s924 + $0x48] sm:$0xf] %v973
      %975 = vst.msk [vmem:[%s924 + $0x4c] sm:$0xf] %vm465, %v721
      %v976 = vld [vmem:[%s924 + $0x50] sm:$0x1]
      %v977 = vsel %vm933, %v722, %v976
      %978 = vst [vmem:[%s924 + $0x50] sm:$0x1] %v977
      %v979 = vld [vmem:[%s924 + $0x54] sm:$0xf]
      %v980 = vsel %vm927, %v729, %v979
      %981 = vst [vmem:[%s924 + $0x54] sm:$0xf] %v980
      %982 = vst.msk [vmem:[%s924 + $0x58] sm:$0xf] %vm465, %v738
      %v983 = vld [vmem:[%s924 + $0x5c] sm:$0x1]
      %v984 = vsel %vm933, %v739, %v983
      %985 = vst [vmem:[%s924 + $0x5c] sm:$0x1] %v984
      %v986 = vld [vmem:[%s924 + $0x60] sm:$0xf]
      %v987 = vsel %vm927, %v746, %v986
      %988 = vst [vmem:[%s924 + $0x60] sm:$0xf] %v987
      %989 = vst.msk [vmem:[%s924 + $0x64] sm:$0xf] %vm465, %v755
      %v990 = vld [vmem:[%s924 + $0x68] sm:$0x1]
      %v991 = vsel %vm933, %v756, %v990
      %992 = vst [vmem:[%s924 + $0x68] sm:$0x1] %v991
      %v993 = vld [vmem:[%s924 + $0x6c] sm:$0xf]
      %v994 = vsel %vm927, %v763, %v993
      %995 = vst [vmem:[%s924 + $0x6c] sm:$0xf] %v994
      %996 = vst.msk [vmem:[%s924 + $0x70] sm:$0xf] %vm465, %v772
      %v997 = vld [vmem:[%s924 + $0x74] sm:$0x1]
      %v998 = vsel %vm933, %v773, %v997
      %999 = vst [vmem:[%s924 + $0x74] sm:$0x1] %v998
      %v1000 = vld [vmem:[%s924 + $0x78] sm:$0xf]
      %v1001 = vsel %vm927, %v780, %v1000
      %1002 = vst [vmem:[%s924 + $0x78] sm:$0xf] %v1001
      %1003 = vst.msk [vmem:[%s924 + $0x7c] sm:$0xf] %vm465, %v789
      %v1004 = vld [vmem:[%s924 + $0x80] sm:$0x1]
      %v1005 = vsel %vm933, %v790, %v1004
      %1006 = vst [vmem:[%s924 + $0x80] sm:$0x1] %v1005
      %v1007 = vld [vmem:[%s924 + $0x84] sm:$0xf]
      %v1008 = vsel %vm927, %v797, %v1007
      %1009 = vst [vmem:[%s924 + $0x84] sm:$0xf] %v1008
      %1010 = vst.msk [vmem:[%s924 + $0x88] sm:$0xf] %vm465, %v806
      %v1011 = vld [vmem:[%s924 + $0x8c] sm:$0x1]
      %v1012 = vsel %vm933, %v807, %v1011
      %1013 = vst [vmem:[%s924 + $0x8c] sm:$0x1] %v1012
      %v1014 = vld [vmem:[%s924 + $0x90] sm:$0xf]
      %v1015 = vsel %vm927, %v814, %v1014
      %1016 = vst [vmem:[%s924 + $0x90] sm:$0xf] %v1015
      %1017 = vst.msk [vmem:[%s924 + $0x94] sm:$0xf] %vm465, %v823
      %v1018 = vld [vmem:[%s924 + $0x98] sm:$0x1]
      %v1019 = vsel %vm933, %v824, %v1018
      %1020 = vst [vmem:[%s924 + $0x98] sm:$0x1] %v1019
      %v1021 = vld [vmem:[%s924 + $0x9c] sm:$0xf]
      %v1022 = vsel %vm927, %v831, %v1021
      %1023 = vst [vmem:[%s924 + $0x9c] sm:$0xf] %v1022
      %1024 = vst.msk [vmem:[%s924 + $0xa0] sm:$0xf] %vm465, %v840
      %v1025 = vld [vmem:[%s924 + $0xa4] sm:$0x1]
      %v1026 = vsel %vm933, %v841, %v1025
      %1027 = vst [vmem:[%s924 + $0xa4] sm:$0x1] %v1026
      %v1028 = vld [vmem:[%s924 + $0xa8] sm:$0xf]
      %v1029 = vsel %vm927, %v848, %v1028
      %1030 = vst [vmem:[%s924 + $0xa8] sm:$0xf] %v1029
      %1031 = vst.msk [vmem:[%s924 + $0xac] sm:$0xf] %vm465, %v857
      %v1032 = vld [vmem:[%s924 + $0xb0] sm:$0x1]
      %v1033 = vsel %vm933, %v858, %v1032
      %1034 = vst [vmem:[%s924 + $0xb0] sm:$0x1] %v1033
      %v1035 = vld [vmem:[%s924 + $0xb4] sm:$0xf]
      %v1036 = vsel %vm927, %v865, %v1035
      %1037 = vst [vmem:[%s924 + $0xb4] sm:$0xf] %v1036
      %1038 = vst.msk [vmem:[%s924 + $0xb8] sm:$0xf] %vm465, %v874
      %v1039 = vld [vmem:[%s924 + $0xbc] sm:$0x1]
      %v1040 = vsel %vm933, %v875, %v1039
      %1041 = vst [vmem:[%s924 + $0xbc] sm:$0x1] %v1040
      %v1042 = vld [vmem:[#allocation2] sm:$0xf]
      %v1043 = vld [vmem:[#allocation2 + $0x4] sm:$0xf]
      %v1044 = vld [vmem:[#allocation2 + $0xc] sm:$0xf]
      %v1045 = vld [vmem:[#allocation2 + $0x10] sm:$0xf]
      %v1046 = vld [vmem:[#allocation2 + $0x18] sm:$0xf]
      %v1047 = vld [vmem:[#allocation2 + $0x1c] sm:$0xf]
      %v1048 = vld [vmem:[#allocation2 + $0x24] sm:$0xf]
      %v1049 = vld [vmem:[#allocation2 + $0x28] sm:$0xf]
      %v1050 = vld [vmem:[#allocation2 + $0x30] sm:$0xf]
      %v1051 = vld [vmem:[#allocation2 + $0x34] sm:$0xf]
      %v1052 = vld [vmem:[#allocation2 + $0x3c] sm:$0xf]
      %v1053 = vld [vmem:[#allocation2 + $0x40] sm:$0xf]
      %v1054 = vld [vmem:[#allocation2 + $0x48] sm:$0xf]
      %v1055 = vld [vmem:[#allocation2 + $0x4c] sm:$0xf]
      %v1056 = vld [vmem:[#allocation2 + $0x54] sm:$0xf]
      %v1057 = vld [vmem:[#allocation2 + $0x58] sm:$0xf]
      %v1058 = vld [vmem:[#allocation2 + $0x60] sm:$0xf]
      %v1059 = vld [vmem:[#allocation2 + $0x64] sm:$0xf]
      %v1060 = vld [vmem:[#allocation2 + $0x6c] sm:$0xf]
      %v1061 = vld [vmem:[#allocation2 + $0x70] sm:$0xf]
      %v1062 = vld [vmem:[#allocation2 + $0x78] sm:$0xf]
      %v1063 = vld [vmem:[#allocation2 + $0x7c] sm:$0xf]
      %v1064 = vld [vmem:[#allocation2 + $0x84] sm:$0xf]
      %v1065 = vld [vmem:[#allocation2 + $0x88] sm:$0xf]
      %v1066 = vld [vmem:[#allocation2 + $0x90] sm:$0xf]
      %v1067 = vld [vmem:[#allocation2 + $0x94] sm:$0xf]
      %v1068 = vld [vmem:[#allocation2 + $0x9c] sm:$0xf]
      %v1069 = vld [vmem:[#allocation2 + $0xa0] sm:$0xf]
      %v1070 = vld [vmem:[#allocation2 + $0xa8] sm:$0xf]
      %v1071 = vld [vmem:[#allocation2 + $0xac] sm:$0xf]
      %v1072 = vld [vmem:[#allocation2 + $0xb4] sm:$0xf]
      %v1073 = vld [vmem:[#allocation2 + $0xb8] sm:$0xf]
      %v1074 = vld [vmem:[#allocation2 + $0x8] sm:$0x1]
      %v1075 = vld [vmem:[#allocation2 + $0x14] sm:$0x1]
      %v1076 = vld [vmem:[#allocation2 + $0x20] sm:$0x1]
      %v1077 = vld [vmem:[#allocation2 + $0x2c] sm:$0x1]
      %v1078 = vld [vmem:[#allocation2 + $0x38] sm:$0x1]
      %v1079 = vld [vmem:[#allocation2 + $0x44] sm:$0x1]
      %v1080 = vld [vmem:[#allocation2 + $0x50] sm:$0x1]
      %v1081 = vld [vmem:[#allocation2 + $0x5c] sm:$0x1]
      %v1082 = vld [vmem:[#allocation2 + $0x68] sm:$0x1]
      %v1083 = vld [vmem:[#allocation2 + $0x74] sm:$0x1]
      %v1084 = vld [vmem:[#allocation2 + $0x80] sm:$0x1]
      %v1085 = vld [vmem:[#allocation2 + $0x8c] sm:$0x1]
      %v1086 = vld [vmem:[#allocation2 + $0x98] sm:$0x1]
      %v1087 = vld [vmem:[#allocation2 + $0xa4] sm:$0x1]
      %v1088 = vld [vmem:[#allocation2 + $0xb0] sm:$0x1]
      %v1089 = vld [vmem:[#allocation2 + $0xbc] sm:$0x1]
      %v1090 = vld [vmem:[#allocation2] sm:$0xe]
      %v1091 = vld [vmem:[#allocation2 + $0xc] sm:$0xe]
      %v1092 = vld [vmem:[#allocation2 + $0x18] sm:$0xe]
      %v1093 = vld [vmem:[#allocation2 + $0x24] sm:$0xe]
      %v1094 = vld [vmem:[#allocation2 + $0x30] sm:$0xe]
      %v1095 = vld [vmem:[#allocation2 + $0x3c] sm:$0xe]
      %v1096 = vld [vmem:[#allocation2 + $0x48] sm:$0xe]
      %v1097 = vld [vmem:[#allocation2 + $0x54] sm:$0xe]
      %v1098 = vld [vmem:[#allocation2 + $0x60] sm:$0xe]
      %v1099 = vld [vmem:[#allocation2 + $0x6c] sm:$0xe]
      %v1100 = vld [vmem:[#allocation2 + $0x78] sm:$0xe]
      %v1101 = vld [vmem:[#allocation2 + $0x84] sm:$0xe]
      %v1102 = vld [vmem:[#allocation2 + $0x90] sm:$0xe]
      %v1103 = vld [vmem:[#allocation2 + $0x9c] sm:$0xe]
      %v1104 = vld [vmem:[#allocation2 + $0xa8] sm:$0xe]
      %v1105 = vld [vmem:[#allocation2 + $0xb4] sm:$0xe]
      %v1138 = vunpack.c.l.b16 %v1042
      %v1139 = vunpack.c.l.b16 %v1043
      %v1140 = vunpack.c.l.b16 %v1044
      %v1141 = vunpack.c.l.b16 %v1045
      %v1142 = vunpack.c.l.b16 %v1046
      %v1143 = vunpack.c.l.b16 %v1047
      %v1144 = vunpack.c.l.b16 %v1048
      %v1145 = vunpack.c.l.b16 %v1049
      %v1146 = vunpack.c.l.b16 %v1050
      %v1147 = vunpack.c.l.b16 %v1051
      %v1148 = vunpack.c.l.b16 %v1052
      %v1149 = vunpack.c.l.b16 %v1053
      %v1150 = vunpack.c.l.b16 %v1054
      %v1151 = vunpack.c.l.b16 %v1055
      %v1152 = vunpack.c.l.b16 %v1056
      %v1153 = vunpack.c.l.b16 %v1057
      %v1154 = vunpack.c.l.b16 %v1058
      %v1155 = vunpack.c.l.b16 %v1059
      %v1156 = vunpack.c.l.b16 %v1060
      %v1157 = vunpack.c.l.b16 %v1061
      %v1158 = vunpack.c.l.b16 %v1062
      %v1159 = vunpack.c.l.b16 %v1063
      %v1160 = vunpack.c.l.b16 %v1064
      %v1161 = vunpack.c.l.b16 %v1065
      %v1162 = vunpack.c.l.b16 %v1066
      %v1163 = vunpack.c.l.b16 %v1067
      %v1164 = vunpack.c.l.b16 %v1068
      %v1165 = vunpack.c.l.b16 %v1069
      %v1166 = vunpack.c.l.b16 %v1070
      %v1167 = vunpack.c.l.b16 %v1071
      %v1168 = vunpack.c.l.b16 %v1072
      %v1169 = vunpack.c.l.b16 %v1073
      %v1170 = vpack.c.b16 %v1139, %v1138
      %v1171 = vpack.c.b16 %v1141, %v1140
      %v1172 = vpack.c.b16 %v1143, %v1142
      %v1173 = vpack.c.b16 %v1145, %v1144
      %v1174 = vpack.c.b16 %v1147, %v1146
      %v1175 = vpack.c.b16 %v1149, %v1148
      %v1176 = vpack.c.b16 %v1151, %v1150
      %v1177 = vpack.c.b16 %v1153, %v1152
      %v1178 = vpack.c.b16 %v1155, %v1154
      %v1179 = vpack.c.b16 %v1157, %v1156
      %v1180 = vpack.c.b16 %v1159, %v1158
      %v1181 = vpack.c.b16 %v1161, %v1160
      %v1182 = vpack.c.b16 %v1163, %v1162
      %v1183 = vpack.c.b16 %v1165, %v1164
      %v1184 = vpack.c.b16 %v1167, %v1166
      %v1185 = vpack.c.b16 %v1169, %v1168
      %v1202 = vunpack.c.l.b16 %v1074
      %v1203 = vunpack.c.l.b16 %v1075
      %v1204 = vunpack.c.l.b16 %v1076
      %v1205 = vunpack.c.l.b16 %v1077
      %v1206 = vunpack.c.l.b16 %v1078
      %v1207 = vunpack.c.l.b16 %v1079
      %v1208 = vunpack.c.l.b16 %v1080
      %v1209 = vunpack.c.l.b16 %v1081
      %v1210 = vunpack.c.l.b16 %v1082
      %v1211 = vunpack.c.l.b16 %v1083
      %v1212 = vunpack.c.l.b16 %v1084
      %v1213 = vunpack.c.l.b16 %v1085
      %v1214 = vunpack.c.l.b16 %v1086
      %v1215 = vunpack.c.l.b16 %v1087
      %v1216 = vunpack.c.l.b16 %v1088
      %v1217 = vunpack.c.l.b16 %v1089
      %v1218 = vpack.c.b16 %v1202, %v1202
      %v1219 = vpack.c.b16 %v1203, %v1203
      %v1220 = vpack.c.b16 %v1204, %v1204
      %v1221 = vpack.c.b16 %v1205, %v1205
      %v1222 = vpack.c.b16 %v1206, %v1206
      %v1223 = vpack.c.b16 %v1207, %v1207
      %v1224 = vpack.c.b16 %v1208, %v1208
      %v1225 = vpack.c.b16 %v1209, %v1209
      %v1226 = vpack.c.b16 %v1210, %v1210
      %v1227 = vpack.c.b16 %v1211, %v1211
      %v1228 = vpack.c.b16 %v1212, %v1212
      %v1229 = vpack.c.b16 %v1213, %v1213
      %v1230 = vpack.c.b16 %v1214, %v1214
      %v1231 = vpack.c.b16 %v1215, %v1215
      %v1232 = vpack.c.b16 %v1216, %v1216
      %v1233 = vpack.c.b16 %v1217, %v1217
      %vm1234 = vsmask.f32 7424
      %v1236 = vshrl.u32 %v1170, 16
      %v1238 = vshll.u32 %v1170, 16
      %v1240 = vrot.slane %v1238, 1
      %v1241 = vor.u32 %v1236, %v1240
      %v1243 = vshll.u32 %v1218, 16
      %v1245 = vrot.slane %v1243, 1
      %v1246 = vsel %vm1234, %v1241, %v1245
      %v1248 = vshrl.u32 %v1171, 16
      %v1250 = vshll.u32 %v1171, 16
      %v1252 = vrot.slane %v1250, 1
      %v1253 = vor.u32 %v1248, %v1252
      %v1255 = vshll.u32 %v1219, 16
      %v1257 = vrot.slane %v1255, 1
      %v1258 = vsel %vm1234, %v1253, %v1257
      %v1260 = vshrl.u32 %v1172, 16
      %v1262 = vshll.u32 %v1172, 16
      %v1264 = vrot.slane %v1262, 1
      %v1265 = vor.u32 %v1260, %v1264
      %v1267 = vshll.u32 %v1220, 16
      %v1269 = vrot.slane %v1267, 1
      %v1270 = vsel %vm1234, %v1265, %v1269
      %v1272 = vshrl.u32 %v1173, 16
      %v1274 = vshll.u32 %v1173, 16
      %v1276 = vrot.slane %v1274, 1
      %v1277 = vor.u32 %v1272, %v1276
      %v1279 = vshll.u32 %v1221, 16
      %v1281 = vrot.slane %v1279, 1
      %v1282 = vsel %vm1234, %v1277, %v1281
      %v1284 = vshrl.u32 %v1174, 16
      %v1286 = vshll.u32 %v1174, 16
      %v1288 = vrot.slane %v1286, 1
      %v1289 = vor.u32 %v1284, %v1288
      %v1291 = vshll.u32 %v1222, 16
      %v1293 = vrot.slane %v1291, 1
      %v1294 = vsel %vm1234, %v1289, %v1293
      %v1296 = vshrl.u32 %v1175, 16
      %v1298 = vshll.u32 %v1175, 16
      %v1300 = vrot.slane %v1298, 1
      %v1301 = vor.u32 %v1296, %v1300
      %v1303 = vshll.u32 %v1223, 16
      %v1305 = vrot.slane %v1303, 1
      %v1306 = vsel %vm1234, %v1301, %v1305
      %v1308 = vshrl.u32 %v1176, 16
      %v1310 = vshll.u32 %v1176, 16
      %v1312 = vrot.slane %v1310, 1
      %v1313 = vor.u32 %v1308, %v1312
      %v1315 = vshll.u32 %v1224, 16
      %v1317 = vrot.slane %v1315, 1
      %v1318 = vsel %vm1234, %v1313, %v1317
      %v1320 = vshrl.u32 %v1177, 16
      %v1322 = vshll.u32 %v1177, 16
      %v1324 = vrot.slane %v1322, 1
      %v1325 = vor.u32 %v1320, %v1324
      %v1327 = vshll.u32 %v1225, 16
      %v1329 = vrot.slane %v1327, 1
      %v1330 = vsel %vm1234, %v1325, %v1329
      %v1332 = vshrl.u32 %v1178, 16
      %v1334 = vshll.u32 %v1178, 16
      %v1336 = vrot.slane %v1334, 1
      %v1337 = vor.u32 %v1332, %v1336
      %v1339 = vshll.u32 %v1226, 16
      %v1341 = vrot.slane %v1339, 1
      %v1342 = vsel %vm1234, %v1337, %v1341
      %v1344 = vshrl.u32 %v1179, 16
      %v1346 = vshll.u32 %v1179, 16
      %v1348 = vrot.slane %v1346, 1
      %v1349 = vor.u32 %v1344, %v1348
      %v1351 = vshll.u32 %v1227, 16
      %v1353 = vrot.slane %v1351, 1
      %v1354 = vsel %vm1234, %v1349, %v1353
      %v1356 = vshrl.u32 %v1180, 16
      %v1358 = vshll.u32 %v1180, 16
      %v1360 = vrot.slane %v1358, 1
      %v1361 = vor.u32 %v1356, %v1360
      %v1363 = vshll.u32 %v1228, 16
      %v1365 = vrot.slane %v1363, 1
      %v1366 = vsel %vm1234, %v1361, %v1365
      %v1368 = vshrl.u32 %v1181, 16
      %v1370 = vshll.u32 %v1181, 16
      %v1372 = vrot.slane %v1370, 1
      %v1373 = vor.u32 %v1368, %v1372
      %v1375 = vshll.u32 %v1229, 16
      %v1377 = vrot.slane %v1375, 1
      %v1378 = vsel %vm1234, %v1373, %v1377
      %v1380 = vshrl.u32 %v1182, 16
      %v1382 = vshll.u32 %v1182, 16
      %v1384 = vrot.slane %v1382, 1
      %v1385 = vor.u32 %v1380, %v1384
      %v1387 = vshll.u32 %v1230, 16
      %v1389 = vrot.slane %v1387, 1
      %v1390 = vsel %vm1234, %v1385, %v1389
      %v1392 = vshrl.u32 %v1183, 16
      %v1394 = vshll.u32 %v1183, 16
      %v1396 = vrot.slane %v1394, 1
      %v1397 = vor.u32 %v1392, %v1396
      %v1399 = vshll.u32 %v1231, 16
      %v1401 = vrot.slane %v1399, 1
      %v1402 = vsel %vm1234, %v1397, %v1401
      %v1404 = vshrl.u32 %v1184, 16
      %v1406 = vshll.u32 %v1184, 16
      %v1408 = vrot.slane %v1406, 1
      %v1409 = vor.u32 %v1404, %v1408
      %v1411 = vshll.u32 %v1232, 16
      %v1413 = vrot.slane %v1411, 1
      %v1414 = vsel %vm1234, %v1409, %v1413
      %v1416 = vshrl.u32 %v1185, 16
      %v1418 = vshll.u32 %v1185, 16
      %v1420 = vrot.slane %v1418, 1
      %v1421 = vor.u32 %v1416, %v1420
      %v1423 = vshll.u32 %v1233, 16
      %v1425 = vrot.slane %v1423, 1
      %v1426 = vsel %vm1234, %v1421, %v1425
      %1427 = vrot.lane.b32.xlu0 %v1246, 64
      %v1428 = vpop.permute.xlu0 %1427
      %1429 = vrot.lane.b32.xlu0 %v1258, 64
      %v1430 = vpop.permute.xlu0 %1429
      %1431 = vrot.lane.b32.xlu0 %v1270, 64
      %v1432 = vpop.permute.xlu0 %1431
      %1433 = vrot.lane.b32.xlu0 %v1282, 64
      %v1434 = vpop.permute.xlu0 %1433
      %1435 = vrot.lane.b32.xlu0 %v1294, 64
      %v1436 = vpop.permute.xlu0 %1435
      %1437 = vrot.lane.b32.xlu0 %v1306, 64
      %v1438 = vpop.permute.xlu0 %1437
      %1439 = vrot.lane.b32.xlu0 %v1318, 64
      %v1440 = vpop.permute.xlu0 %1439
      %1441 = vrot.lane.b32.xlu0 %v1330, 64
      %v1442 = vpop.permute.xlu0 %1441
      %1443 = vrot.lane.b32.xlu0 %v1342, 64
      %v1444 = vpop.permute.xlu0 %1443
      %1445 = vrot.lane.b32.xlu0 %v1354, 64
      %v1446 = vpop.permute.xlu0 %1445
      %1447 = vrot.lane.b32.xlu0 %v1366, 64
      %v1448 = vpop.permute.xlu0 %1447
      %1449 = vrot.lane.b32.xlu0 %v1378, 64
      %v1450 = vpop.permute.xlu0 %1449
      %1451 = vrot.lane.b32.xlu0 %v1390, 64
      %v1452 = vpop.permute.xlu0 %1451
      %1453 = vrot.lane.b32.xlu0 %v1402, 64
      %v1454 = vpop.permute.xlu0 %1453
      %1455 = vrot.lane.b32.xlu0 %v1414, 64
      %v1456 = vpop.permute.xlu0 %1455
      %1457 = vrot.lane.b32.xlu0 %v1426, 64
      %v1458 = vpop.permute.xlu0 %1457
      %v1475 = vunpack.c.l.b16 %v1090
      %v1476 = vunpack.c.l.b16 %v1091
      %v1477 = vunpack.c.l.b16 %v1092
      %v1478 = vunpack.c.l.b16 %v1093
      %v1479 = vunpack.c.l.b16 %v1094
      %v1480 = vunpack.c.l.b16 %v1095
      %v1481 = vunpack.c.l.b16 %v1096
      %v1482 = vunpack.c.l.b16 %v1097
      %v1483 = vunpack.c.l.b16 %v1098
      %v1484 = vunpack.c.l.b16 %v1099
      %v1485 = vunpack.c.l.b16 %v1100
      %v1486 = vunpack.c.l.b16 %v1101
      %v1487 = vunpack.c.l.b16 %v1102
      %v1488 = vunpack.c.l.b16 %v1103
      %v1489 = vunpack.c.l.b16 %v1104
      %v1490 = vunpack.c.l.b16 %v1105
      %v1491 = vpack.c.b16 %v1139, %v1475
      %v1492 = vpack.c.b16 %v1141, %v1476
      %v1493 = vpack.c.b16 %v1143, %v1477
      %v1494 = vpack.c.b16 %v1145, %v1478
      %v1495 = vpack.c.b16 %v1147, %v1479
      %v1496 = vpack.c.b16 %v1149, %v1480
      %v1497 = vpack.c.b16 %v1151, %v1481
      %v1498 = vpack.c.b16 %v1153, %v1482
      %v1499 = vpack.c.b16 %v1155, %v1483
      %v1500 = vpack.c.b16 %v1157, %v1484
      %v1501 = vpack.c.b16 %v1159, %v1485
      %v1502 = vpack.c.b16 %v1161, %v1486
      %v1503 = vpack.c.b16 %v1163, %v1487
      %v1504 = vpack.c.b16 %v1165, %v1488
      %v1505 = vpack.c.b16 %v1167, %v1489
      %v1506 = vpack.c.b16 %v1169, %v1490
      %vm1507 = vcmask 1046528
      %v1508 = vrot.slane %v1491, 1
      %v1509 = vrot.slane %v1218, 1
      %v1510 = vsel %vm1507, %v1508, %v1509
      %v1511 = vrot.slane %v1492, 1
      %v1512 = vrot.slane %v1219, 1
      %v1513 = vsel %vm1507, %v1511, %v1512
      %v1514 = vrot.slane %v1493, 1
      %v1515 = vrot.slane %v1220, 1
      %v1516 = vsel %vm1507, %v1514, %v1515
      %v1517 = vrot.slane %v1494, 1
      %v1518 = vrot.slane %v1221, 1
      %v1519 = vsel %vm1507, %v1517, %v1518
      %v1520 = vrot.slane %v1495, 1
      %v1521 = vrot.slane %v1222, 1
      %v1522 = vsel %vm1507, %v1520, %v1521
      %v1523 = vrot.slane %v1496, 1
      %v1524 = vrot.slane %v1223, 1
      %v1525 = vsel %vm1507, %v1523, %v1524
      %v1526 = vrot.slane %v1497, 1
      %v1527 = vrot.slane %v1224, 1
      %v1528 = vsel %vm1507, %v1526, %v1527
      %v1529 = vrot.slane %v1498, 1
      %v1530 = vrot.slane %v1225, 1
      %v1531 = vsel %vm1507, %v1529, %v1530
      %v1532 = vrot.slane %v1499, 1
      %v1533 = vrot.slane %v1226, 1
      %v1534 = vsel %vm1507, %v1532, %v1533
      %v1535 = vrot.slane %v1500, 1
      %v1536 = vrot.slane %v1227, 1
      %v1537 = vsel %vm1507, %v1535, %v1536
      %v1538 = vrot.slane %v1501, 1
      %v1539 = vrot.slane %v1228, 1
      %v1540 = vsel %vm1507, %v1538, %v1539
      %v1541 = vrot.slane %v1502, 1
      %v1542 = vrot.slane %v1229, 1
      %v1543 = vsel %vm1507, %v1541, %v1542
      %v1544 = vrot.slane %v1503, 1
      %v1545 = vrot.slane %v1230, 1
      %v1546 = vsel %vm1507, %v1544, %v1545
      %v1547 = vrot.slane %v1504, 1
      %v1548 = vrot.slane %v1231, 1
      %v1549 = vsel %vm1507, %v1547, %v1548
      %v1550 = vrot.slane %v1505, 1
      %v1551 = vrot.slane %v1232, 1
      %v1552 = vsel %vm1507, %v1550, %v1551
      %v1553 = vrot.slane %v1506, 1
      %v1554 = vrot.slane %v1233, 1
      %v1555 = vsel %vm1507, %v1553, %v1554
      %vm1556 = vcmask 523264
      %v1558 = vsel %vm1556, %v1170, %v1428
      %v1561 = vsel %vm1556, %v1171, %v1430
      %v1564 = vsel %vm1556, %v1172, %v1432
      %v1567 = vsel %vm1556, %v1173, %v1434
      %v1570 = vsel %vm1556, %v1174, %v1436
      %v1573 = vsel %vm1556, %v1175, %v1438
      %v1576 = vsel %vm1556, %v1176, %v1440
      %v1579 = vsel %vm1556, %v1177, %v1442
      %v1582 = vsel %vm1556, %v1178, %v1444
      %v1585 = vsel %vm1556, %v1179, %v1446
      %v1588 = vsel %vm1556, %v1180, %v1448
      %v1591 = vsel %vm1556, %v1181, %v1450
      %v1594 = vsel %vm1556, %v1182, %v1452
      %v1597 = vsel %vm1556, %v1183, %v1454
      %v1600 = vsel %vm1556, %v1184, %v1456
      %v1603 = vsel %vm1556, %v1185, %v1458
      %v1605 = vld [vmem:[%s2] sm:$0xf]
      %v1606 = vld [vmem:[%s2 + $0x4] sm:$0xf]
      %v1607 = vld [vmem:[%s2 + $0x8] sm:$0xf]
      %v1608 = vld [vmem:[%s2 + $0xc] sm:$0xf]
      %v1609 = vld [vmem:[%s2 + $0x10] sm:$0xf]
      %v1610 = vld [vmem:[%s2 + $0x14] sm:$0xf]
      %v1611 = vld [vmem:[%s2 + $0x18] sm:$0xf]
      %v1612 = vld [vmem:[%s2 + $0x1c] sm:$0xf]
      %v1613 = vld [vmem:[%s2 + $0x20] sm:$0xf]
      %v1614 = vld [vmem:[%s2 + $0x24] sm:$0xf]
      %v1615 = vld [vmem:[%s2 + $0x28] sm:$0xf]
      %v1616 = vld [vmem:[%s2 + $0x2c] sm:$0xf]
      %v1617 = vld [vmem:[%s2 + $0x30] sm:$0xf]
      %v1618 = vld [vmem:[%s2 + $0x34] sm:$0xf]
      %v1619 = vld [vmem:[%s2 + $0x38] sm:$0xf]
      %v1620 = vld [vmem:[%s2 + $0x3c] sm:$0xf]
      %v1621 = vld [vmem:[%s2 + $0x40] sm:$0xf]
      %v1622 = vld [vmem:[%s2 + $0x44] sm:$0xf]
      %v1623 = vld [vmem:[%s2 + $0x48] sm:$0xf]
      %v1624 = vld [vmem:[%s2 + $0x4c] sm:$0xf]
      %v1625 = vld [vmem:[%s2 + $0x50] sm:$0xf]
      %v1626 = vld [vmem:[%s2 + $0x54] sm:$0xf]
      %v1627 = vld [vmem:[%s2 + $0x58] sm:$0xf]
      %v1628 = vld [vmem:[%s2 + $0x5c] sm:$0xf]
      %v1629 = vld [vmem:[%s924] sm:$0xf]
      %v1630 = vld [vmem:[%s924 + $0x4] sm:$0xf]
      %v1631 = vld [vmem:[%s924 + $0xc] sm:$0xf]
      %v1632 = vld [vmem:[%s924 + $0x10] sm:$0xf]
      %v1633 = vld [vmem:[%s924 + $0x18] sm:$0xf]
      %v1634 = vld [vmem:[%s924 + $0x1c] sm:$0xf]
      %v1635 = vld [vmem:[%s924 + $0x24] sm:$0xf]
      %v1636 = vld [vmem:[%s924 + $0x28] sm:$0xf]
      %v1637 = vld [vmem:[%s924 + $0x30] sm:$0xf]
      %v1638 = vld [vmem:[%s924 + $0x34] sm:$0xf]
      %v1639 = vld [vmem:[%s924 + $0x3c] sm:$0xf]
      %v1640 = vld [vmem:[%s924 + $0x40] sm:$0xf]
      %v1641 = vld [vmem:[%s924 + $0x48] sm:$0xf]
      %v1642 = vld [vmem:[%s924 + $0x4c] sm:$0xf]
      %v1643 = vld [vmem:[%s924 + $0x54] sm:$0xf]
      %v1644 = vld [vmem:[%s924 + $0x58] sm:$0xf]
      %v1645 = vld [vmem:[%s924 + $0x60] sm:$0xf]
      %v1646 = vld [vmem:[%s924 + $0x64] sm:$0xf]
      %v1647 = vld [vmem:[%s924 + $0x6c] sm:$0xf]
      %v1648 = vld [vmem:[%s924 + $0x70] sm:$0xf]
      %v1649 = vld [vmem:[%s924 + $0x78] sm:$0xf]
      %v1650 = vld [vmem:[%s924 + $0x7c] sm:$0xf]
      %v1651 = vld [vmem:[%s924 + $0x84] sm:$0xf]
      %v1652 = vld [vmem:[%s924 + $0x88] sm:$0xf]
      %v1653 = vld [vmem:[%s924 + $0x90] sm:$0xf]
      %v1654 = vld [vmem:[%s924 + $0x94] sm:$0xf]
      %v1655 = vld [vmem:[%s924 + $0x9c] sm:$0xf]
      %v1656 = vld [vmem:[%s924 + $0xa0] sm:$0xf]
      %v1657 = vld [vmem:[%s924 + $0xa8] sm:$0xf]
      %v1658 = vld [vmem:[%s924 + $0xac] sm:$0xf]
      %v1659 = vld [vmem:[%s924 + $0xb4] sm:$0xf]
      %v1660 = vld [vmem:[%s924 + $0xb8] sm:$0xf]
      %v1661 = vld [vmem:[%s924 + $0x8] sm:$0x1]
      %v1662 = vld [vmem:[%s924 + $0x14] sm:$0x1]
      %v1663 = vld [vmem:[%s924 + $0x20] sm:$0x1]
      %v1664 = vld [vmem:[%s924 + $0x2c] sm:$0x1]
      %v1665 = vld [vmem:[%s924 + $0x38] sm:$0x1]
      %v1666 = vld [vmem:[%s924 + $0x44] sm:$0x1]
      %v1667 = vld [vmem:[%s924 + $0x50] sm:$0x1]
      %v1668 = vld [vmem:[%s924 + $0x5c] sm:$0x1]
      %v1669 = vld [vmem:[%s924 + $0x68] sm:$0x1]
      %v1670 = vld [vmem:[%s924 + $0x74] sm:$0x1]
      %v1671 = vld [vmem:[%s924 + $0x80] sm:$0x1]
      %v1672 = vld [vmem:[%s924 + $0x8c] sm:$0x1]
      %v1673 = vld [vmem:[%s924 + $0x98] sm:$0x1]
      %v1674 = vld [vmem:[%s924 + $0xa4] sm:$0x1]
      %v1675 = vld [vmem:[%s924 + $0xb0] sm:$0x1]
      %v1676 = vld [vmem:[%s924 + $0xbc] sm:$0x1]
      %v1677 = vld [vmem:[%s924] sm:$0xe]
      %v1678 = vld [vmem:[%s924 + $0xc] sm:$0xe]
      %v1679 = vld [vmem:[%s924 + $0x18] sm:$0xe]
      %v1680 = vld [vmem:[%s924 + $0x24] sm:$0xe]
      %v1681 = vld [vmem:[%s924 + $0x30] sm:$0xe]
      %v1682 = vld [vmem:[%s924 + $0x3c] sm:$0xe]
      %v1683 = vld [vmem:[%s924 + $0x48] sm:$0xe]
      %v1684 = vld [vmem:[%s924 + $0x54] sm:$0xe]
      %v1685 = vld [vmem:[%s924 + $0x60] sm:$0xe]
      %v1686 = vld [vmem:[%s924 + $0x6c] sm:$0xe]
      %v1687 = vld [vmem:[%s924 + $0x78] sm:$0xe]
      %v1688 = vld [vmem:[%s924 + $0x84] sm:$0xe]
      %v1689 = vld [vmem:[%s924 + $0x90] sm:$0xe]
      %v1690 = vld [vmem:[%s924 + $0x9c] sm:$0xe]
      %v1691 = vld [vmem:[%s924 + $0xa8] sm:$0xe]
      %v1692 = vld [vmem:[%s924 + $0xb4] sm:$0xe]
      %v1725 = vunpack.c.l.b16 %v1629
      %v1726 = vunpack.c.l.b16 %v1630
      %v1727 = vunpack.c.l.b16 %v1631
      %v1728 = vunpack.c.l.b16 %v1632
      %v1729 = vunpack.c.l.b16 %v1633
      %v1730 = vunpack.c.l.b16 %v1634
      %v1731 = vunpack.c.l.b16 %v1635
      %v1732 = vunpack.c.l.b16 %v1636
      %v1733 = vunpack.c.l.b16 %v1637
      %v1734 = vunpack.c.l.b16 %v1638
      %v1735 = vunpack.c.l.b16 %v1639
      %v1736 = vunpack.c.l.b16 %v1640
      %v1737 = vunpack.c.l.b16 %v1641
      %v1738 = vunpack.c.l.b16 %v1642
      %v1739 = vunpack.c.l.b16 %v1643
      %v1740 = vunpack.c.l.b16 %v1644
      %v1741 = vunpack.c.l.b16 %v1645
      %v1742 = vunpack.c.l.b16 %v1646
      %v1743 = vunpack.c.l.b16 %v1647
      %v1744 = vunpack.c.l.b16 %v1648
      %v1745 = vunpack.c.l.b16 %v1649
      %v1746 = vunpack.c.l.b16 %v1650
      %v1747 = vunpack.c.l.b16 %v1651
      %v1748 = vunpack.c.l.b16 %v1652
      %v1749 = vunpack.c.l.b16 %v1653
      %v1750 = vunpack.c.l.b16 %v1654
      %v1751 = vunpack.c.l.b16 %v1655
      %v1752 = vunpack.c.l.b16 %v1656
      %v1753 = vunpack.c.l.b16 %v1657
      %v1754 = vunpack.c.l.b16 %v1658
      %v1755 = vunpack.c.l.b16 %v1659
      %v1756 = vunpack.c.l.b16 %v1660
      %v1757 = vpack.c.b16 %v1726, %v1725
      %v1758 = vpack.c.b16 %v1728, %v1727
      %v1759 = vpack.c.b16 %v1730, %v1729
      %v1760 = vpack.c.b16 %v1732, %v1731
      %v1761 = vpack.c.b16 %v1734, %v1733
      %v1762 = vpack.c.b16 %v1736, %v1735
      %v1763 = vpack.c.b16 %v1738, %v1737
      %v1764 = vpack.c.b16 %v1740, %v1739
      %v1765 = vpack.c.b16 %v1742, %v1741
      %v1766 = vpack.c.b16 %v1744, %v1743
      %v1767 = vpack.c.b16 %v1746, %v1745
      %v1768 = vpack.c.b16 %v1748, %v1747
      %v1769 = vpack.c.b16 %v1750, %v1749
      %v1770 = vpack.c.b16 %v1752, %v1751
      %v1771 = vpack.c.b16 %v1754, %v1753
      %v1772 = vpack.c.b16 %v1756, %v1755
      %v1789 = vunpack.c.l.b16 %v1661
      %v1790 = vunpack.c.l.b16 %v1662
      %v1791 = vunpack.c.l.b16 %v1663
      %v1792 = vunpack.c.l.b16 %v1664
      %v1793 = vunpack.c.l.b16 %v1665
      %v1794 = vunpack.c.l.b16 %v1666
      %v1795 = vunpack.c.l.b16 %v1667
      %v1796 = vunpack.c.l.b16 %v1668
      %v1797 = vunpack.c.l.b16 %v1669
      %v1798 = vunpack.c.l.b16 %v1670
      %v1799 = vunpack.c.l.b16 %v1671
      %v1800 = vunpack.c.l.b16 %v1672
      %v1801 = vunpack.c.l.b16 %v1673
      %v1802 = vunpack.c.l.b16 %v1674
      %v1803 = vunpack.c.l.b16 %v1675
      %v1804 = vunpack.c.l.b16 %v1676
      %v1805 = vpack.c.b16 %v1789, %v1789
      %v1806 = vpack.c.b16 %v1790, %v1790
      %v1807 = vpack.c.b16 %v1791, %v1791
      %v1808 = vpack.c.b16 %v1792, %v1792
      %v1809 = vpack.c.b16 %v1793, %v1793
      %v1810 = vpack.c.b16 %v1794, %v1794
      %v1811 = vpack.c.b16 %v1795, %v1795
      %v1812 = vpack.c.b16 %v1796, %v1796
      %v1813 = vpack.c.b16 %v1797, %v1797
      %v1814 = vpack.c.b16 %v1798, %v1798
      %v1815 = vpack.c.b16 %v1799, %v1799
      %v1816 = vpack.c.b16 %v1800, %v1800
      %v1817 = vpack.c.b16 %v1801, %v1801
      %v1818 = vpack.c.b16 %v1802, %v1802
      %v1819 = vpack.c.b16 %v1803, %v1803
      %v1820 = vpack.c.b16 %v1804, %v1804
      %v1822 = vshrl.u32 %v1757, 16
      %v1824 = vshll.u32 %v1757, 16
      %v1826 = vrot.slane %v1824, 1
      %v1827 = vor.u32 %v1822, %v1826
      %v1829 = vshll.u32 %v1805, 16
      %v1831 = vrot.slane %v1829, 1
      %v1832 = vsel %vm1234, %v1827, %v1831
      %v1834 = vshrl.u32 %v1758, 16
      %v1836 = vshll.u32 %v1758, 16
      %v1838 = vrot.slane %v1836, 1
      %v1839 = vor.u32 %v1834, %v1838
      %v1841 = vshll.u32 %v1806, 16
      %v1843 = vrot.slane %v1841, 1
      %v1844 = vsel %vm1234, %v1839, %v1843
      %v1846 = vshrl.u32 %v1759, 16
      %v1848 = vshll.u32 %v1759, 16
      %v1850 = vrot.slane %v1848, 1
      %v1851 = vor.u32 %v1846, %v1850
      %v1853 = vshll.u32 %v1807, 16
      %v1855 = vrot.slane %v1853, 1
      %v1856 = vsel %vm1234, %v1851, %v1855
      %v1858 = vshrl.u32 %v1760, 16
      %v1860 = vshll.u32 %v1760, 16
      %v1862 = vrot.slane %v1860, 1
      %v1863 = vor.u32 %v1858, %v1862
      %v1865 = vshll.u32 %v1808, 16
      %v1867 = vrot.slane %v1865, 1
      %v1868 = vsel %vm1234, %v1863, %v1867
      %v1870 = vshrl.u32 %v1761, 16
      %v1872 = vshll.u32 %v1761, 16
      %v1874 = vrot.slane %v1872, 1
      %v1875 = vor.u32 %v1870, %v1874
      %v1877 = vshll.u32 %v1809, 16
      %v1879 = vrot.slane %v1877, 1
      %v1880 = vsel %vm1234, %v1875, %v1879
      %v1882 = vshrl.u32 %v1762, 16
      %v1884 = vshll.u32 %v1762, 16
      %v1886 = vrot.slane %v1884, 1
      %v1887 = vor.u32 %v1882, %v1886
      %v1889 = vshll.u32 %v1810, 16
      %v1891 = vrot.slane %v1889, 1
      %v1892 = vsel %vm1234, %v1887, %v1891
      %v1894 = vshrl.u32 %v1763, 16
      %v1896 = vshll.u32 %v1763, 16
      %v1898 = vrot.slane %v1896, 1
      %v1899 = vor.u32 %v1894, %v1898
      %v1901 = vshll.u32 %v1811, 16
      %v1903 = vrot.slane %v1901, 1
      %v1904 = vsel %vm1234, %v1899, %v1903
      %v1906 = vshrl.u32 %v1764, 16
      %v1908 = vshll.u32 %v1764, 16
      %v1910 = vrot.slane %v1908, 1
      %v1911 = vor.u32 %v1906, %v1910
      %v1913 = vshll.u32 %v1812, 16
      %v1915 = vrot.slane %v1913, 1
      %v1916 = vsel %vm1234, %v1911, %v1915
      %v1918 = vshrl.u32 %v1765, 16
      %v1920 = vshll.u32 %v1765, 16
      %v1922 = vrot.slane %v1920, 1
      %v1923 = vor.u32 %v1918, %v1922
      %v1925 = vshll.u32 %v1813, 16
      %v1927 = vrot.slane %v1925, 1
      %v1928 = vsel %vm1234, %v1923, %v1927
      %v1930 = vshrl.u32 %v1766, 16
      %v1932 = vshll.u32 %v1766, 16
      %v1934 = vrot.slane %v1932, 1
      %v1935 = vor.u32 %v1930, %v1934
      %v1937 = vshll.u32 %v1814, 16
      %v1939 = vrot.slane %v1937, 1
      %v1940 = vsel %vm1234, %v1935, %v1939
      %v1942 = vshrl.u32 %v1767, 16
      %v1944 = vshll.u32 %v1767, 16
      %v1946 = vrot.slane %v1944, 1
      %v1947 = vor.u32 %v1942, %v1946
      %v1949 = vshll.u32 %v1815, 16
      %v1951 = vrot.slane %v1949, 1
      %v1952 = vsel %vm1234, %v1947, %v1951
      %v1954 = vshrl.u32 %v1768, 16
      %v1956 = vshll.u32 %v1768, 16
      %v1958 = vrot.slane %v1956, 1
      %v1959 = vor.u32 %v1954, %v1958
      %v1961 = vshll.u32 %v1816, 16
      %v1963 = vrot.slane %v1961, 1
      %v1964 = vsel %vm1234, %v1959, %v1963
      %v1966 = vshrl.u32 %v1769, 16
      %v1968 = vshll.u32 %v1769, 16
      %v1970 = vrot.slane %v1968, 1
      %v1971 = vor.u32 %v1966, %v1970
      %v1973 = vshll.u32 %v1817, 16
      %v1975 = vrot.slane %v1973, 1
      %v1976 = vsel %vm1234, %v1971, %v1975
      %v1978 = vshrl.u32 %v1770, 16
      %v1980 = vshll.u32 %v1770, 16
      %v1982 = vrot.slane %v1980, 1
      %v1983 = vor.u32 %v1978, %v1982
      %v1985 = vshll.u32 %v1818, 16
      %v1987 = vrot.slane %v1985, 1
      %v1988 = vsel %vm1234, %v1983, %v1987
      %v1990 = vshrl.u32 %v1771, 16
      %v1992 = vshll.u32 %v1771, 16
      %v1994 = vrot.slane %v1992, 1
      %v1995 = vor.u32 %v1990, %v1994
      %v1997 = vshll.u32 %v1819, 16
      %v1999 = vrot.slane %v1997, 1
      %v2000 = vsel %vm1234, %v1995, %v1999
      %v2002 = vshrl.u32 %v1772, 16
      %v2004 = vshll.u32 %v1772, 16
      %v2006 = vrot.slane %v2004, 1
      %v2007 = vor.u32 %v2002, %v2006
      %v2009 = vshll.u32 %v1820, 16
      %v2011 = vrot.slane %v2009, 1
      %v2012 = vsel %vm1234, %v2007, %v2011
      %2013 = vrot.lane.b32.xlu0 %v1832, 64
      %v2014 = vpop.permute.xlu0 %2013
      %2015 = vrot.lane.b32.xlu0 %v1844, 64
      %v2016 = vpop.permute.xlu0 %2015
      %2017 = vrot.lane.b32.xlu0 %v1856, 64
      %v2018 = vpop.permute.xlu0 %2017
      %2019 = vrot.lane.b32.xlu0 %v1868, 64
      %v2020 = vpop.permute.xlu0 %2019
      %2021 = vrot.lane.b32.xlu0 %v1880, 64
      %v2022 = vpop.permute.xlu0 %2021
      %2023 = vrot.lane.b32.xlu0 %v1892, 64
      %v2024 = vpop.permute.xlu0 %2023
      %2025 = vrot.lane.b32.xlu0 %v1904, 64
      %v2026 = vpop.permute.xlu0 %2025
      %2027 = vrot.lane.b32.xlu0 %v1916, 64
      %v2028 = vpop.permute.xlu0 %2027
      %2029 = vrot.lane.b32.xlu0 %v1928, 64
      %v2030 = vpop.permute.xlu0 %2029
      %2031 = vrot.lane.b32.xlu0 %v1940, 64
      %v2032 = vpop.permute.xlu0 %2031
      %2033 = vrot.lane.b32.xlu0 %v1952, 64
      %v2034 = vpop.permute.xlu0 %2033
      %2035 = vrot.lane.b32.xlu0 %v1964, 64
      %v2036 = vpop.permute.xlu0 %2035
      %2037 = vrot.lane.b32.xlu0 %v1976, 64
      %v2038 = vpop.permute.xlu0 %2037
      %2039 = vrot.lane.b32.xlu0 %v1988, 64
      %v2040 = vpop.permute.xlu0 %2039
      %2041 = vrot.lane.b32.xlu0 %v2000, 64
      %v2042 = vpop.permute.xlu0 %2041
      %2043 = vrot.lane.b32.xlu0 %v2012, 64
      %v2044 = vpop.permute.xlu0 %2043
      %v2061 = vunpack.c.l.b16 %v1677
      %v2062 = vunpack.c.l.b16 %v1678
      %v2063 = vunpack.c.l.b16 %v1679
      %v2064 = vunpack.c.l.b16 %v1680
      %v2065 = vunpack.c.l.b16 %v1681
      %v2066 = vunpack.c.l.b16 %v1682
      %v2067 = vunpack.c.l.b16 %v1683
      %v2068 = vunpack.c.l.b16 %v1684
      %v2069 = vunpack.c.l.b16 %v1685
      %v2070 = vunpack.c.l.b16 %v1686
      %v2071 = vunpack.c.l.b16 %v1687
      %v2072 = vunpack.c.l.b16 %v1688
      %v2073 = vunpack.c.l.b16 %v1689
      %v2074 = vunpack.c.l.b16 %v1690
      %v2075 = vunpack.c.l.b16 %v1691
      %v2076 = vunpack.c.l.b16 %v1692
      %v2077 = vpack.c.b16 %v1726, %v2061
      %v2078 = vpack.c.b16 %v1728, %v2062
      %v2079 = vpack.c.b16 %v1730, %v2063
      %v2080 = vpack.c.b16 %v1732, %v2064
      %v2081 = vpack.c.b16 %v1734, %v2065
      %v2082 = vpack.c.b16 %v1736, %v2066
      %v2083 = vpack.c.b16 %v1738, %v2067
      %v2084 = vpack.c.b16 %v1740, %v2068
      %v2085 = vpack.c.b16 %v1742, %v2069
      %v2086 = vpack.c.b16 %v1744, %v2070
      %v2087 = vpack.c.b16 %v1746, %v2071
      %v2088 = vpack.c.b16 %v1748, %v2072
      %v2089 = vpack.c.b16 %v1750, %v2073
      %v2090 = vpack.c.b16 %v1752, %v2074
      %v2091 = vpack.c.b16 %v1754, %v2075
      %v2092 = vpack.c.b16 %v1756, %v2076
      %v2093 = vrot.slane %v2077, 1
      %v2094 = vrot.slane %v1805, 1
      %v2095 = vsel %vm1507, %v2093, %v2094
      %v2096 = vrot.slane %v2078, 1
      %v2097 = vrot.slane %v1806, 1
      %v2098 = vsel %vm1507, %v2096, %v2097
      %v2099 = vrot.slane %v2079, 1
      %v2100 = vrot.slane %v1807, 1
      %v2101 = vsel %vm1507, %v2099, %v2100
      %v2102 = vrot.slane %v2080, 1
      %v2103 = vrot.slane %v1808, 1
      %v2104 = vsel %vm1507, %v2102, %v2103
      %v2105 = vrot.slane %v2081, 1
      %v2106 = vrot.slane %v1809, 1
      %v2107 = vsel %vm1507, %v2105, %v2106
      %v2108 = vrot.slane %v2082, 1
      %v2109 = vrot.slane %v1810, 1
      %v2110 = vsel %vm1507, %v2108, %v2109
      %v2111 = vrot.slane %v2083, 1
      %v2112 = vrot.slane %v1811, 1
      %v2113 = vsel %vm1507, %v2111, %v2112
      %v2114 = vrot.slane %v2084, 1
      %v2115 = vrot.slane %v1812, 1
      %v2116 = vsel %vm1507, %v2114, %v2115
      %v2117 = vrot.slane %v2085, 1
      %v2118 = vrot.slane %v1813, 1
      %v2119 = vsel %vm1507, %v2117, %v2118
      %v2120 = vrot.slane %v2086, 1
      %v2121 = vrot.slane %v1814, 1
      %v2122 = vsel %vm1507, %v2120, %v2121
      %v2123 = vrot.slane %v2087, 1
      %v2124 = vrot.slane %v1815, 1
      %v2125 = vsel %vm1507, %v2123, %v2124
      %v2126 = vrot.slane %v2088, 1
      %v2127 = vrot.slane %v1816, 1
      %v2128 = vsel %vm1507, %v2126, %v2127
      %v2129 = vrot.slane %v2089, 1
      %v2130 = vrot.slane %v1817, 1
      %v2131 = vsel %vm1507, %v2129, %v2130
      %v2132 = vrot.slane %v2090, 1
      %v2133 = vrot.slane %v1818, 1
      %v2134 = vsel %vm1507, %v2132, %v2133
      %v2135 = vrot.slane %v2091, 1
      %v2136 = vrot.slane %v1819, 1
      %v2137 = vsel %vm1507, %v2135, %v2136
      %v2138 = vrot.slane %v2092, 1
      %v2139 = vrot.slane %v1820, 1
      %v2140 = vsel %vm1507, %v2138, %v2139
      %v2142 = vsel %vm1556, %v1757, %v2014
      %v2145 = vsel %vm1556, %v1758, %v2016
      %v2148 = vsel %vm1556, %v1759, %v2018
      %v2151 = vsel %vm1556, %v1760, %v2020
      %v2154 = vsel %vm1556, %v1761, %v2022
      %v2157 = vsel %vm1556, %v1762, %v2024
      %v2160 = vsel %vm1556, %v1763, %v2026
      %v2163 = vsel %vm1556, %v1764, %v2028
      %v2166 = vsel %vm1556, %v1765, %v2030
      %v2169 = vsel %vm1556, %v1766, %v2032
      %v2172 = vsel %vm1556, %v1767, %v2034
      %v2175 = vsel %vm1556, %v1768, %v2036
      %v2178 = vsel %vm1556, %v1769, %v2038
      %v2181 = vsel %vm1556, %v1770, %v2040
      %v2184 = vsel %vm1556, %v1771, %v2042
      %v2187 = vsel %vm1556, %v1772, %v2044
      %s2189 = scalar_lea.vmem %s2, 96
      %v2190 = vld [vmem:[%s2189] sm:$0xf]
      %v2191 = vld [vmem:[%s2189 + $0x4] sm:$0xf]
      %v2192 = vld [vmem:[%s2189 + $0x8] sm:$0xf]
      %v2193 = vld [vmem:[%s2189 + $0xc] sm:$0xf]
      %v2194 = vld [vmem:[%s2189 + $0x10] sm:$0xf]
      %v2195 = vld [vmem:[%s2189 + $0x14] sm:$0xf]
      %v2196 = vld [vmem:[%s2189 + $0x18] sm:$0xf]
      %v2197 = vld [vmem:[%s2189 + $0x1c] sm:$0xf]
      %v2198 = vld [vmem:[%s2189 + $0x20] sm:$0xf]
      %v2199 = vld [vmem:[%s2189 + $0x24] sm:$0xf]
      %v2200 = vld [vmem:[%s2189 + $0x28] sm:$0xf]
      %v2201 = vld [vmem:[%s2189 + $0x2c] sm:$0xf]
      %v2202 = vld [vmem:[%s2189 + $0x30] sm:$0xf]
      %v2203 = vld [vmem:[%s2189 + $0x34] sm:$0xf]
      %v2204 = vld [vmem:[%s2189 + $0x38] sm:$0xf]
      %v2205 = vld [vmem:[%s2189 + $0x3c] sm:$0xf]
      %v2206 = vld [vmem:[%s2189 + $0x40] sm:$0xf]
      %v2207 = vld [vmem:[%s2189 + $0x44] sm:$0xf]
      %v2208 = vld [vmem:[%s2189 + $0x48] sm:$0xf]
      %v2209 = vld [vmem:[%s2189 + $0x4c] sm:$0xf]
      %v2210 = vld [vmem:[%s2189 + $0x50] sm:$0xf]
      %v2211 = vld [vmem:[%s2189 + $0x54] sm:$0xf]
      %v2212 = vld [vmem:[%s2189 + $0x58] sm:$0xf]
      %v2213 = vld [vmem:[%s2189 + $0x5c] sm:$0xf]
      %v2238 = vunpack.c.l.b16 %v2190
      %v2239 = vunpack.c.l.b16 %v2191
      %v2240 = vunpack.c.l.b16 %v2192
      %v2241 = vunpack.c.l.b16 %v2193
      %v2242 = vunpack.c.l.b16 %v2194
      %v2243 = vunpack.c.l.b16 %v2195
      %v2244 = vunpack.c.l.b16 %v2196
      %v2245 = vunpack.c.l.b16 %v2197
      %v2246 = vunpack.c.l.b16 %v2198
      %v2247 = vunpack.c.l.b16 %v2199
      %v2248 = vunpack.c.l.b16 %v2200
      %v2249 = vunpack.c.l.b16 %v2201
      %v2250 = vunpack.c.l.b16 %v2202
      %v2251 = vunpack.c.l.b16 %v2203
      %v2252 = vunpack.c.l.b16 %v2204
      %v2253 = vunpack.c.l.b16 %v2205
      %v2254 = vunpack.c.l.b16 %v2206
      %v2255 = vunpack.c.l.b16 %v2207
      %v2256 = vunpack.c.l.b16 %v2208
      %v2257 = vunpack.c.l.b16 %v2209
      %v2258 = vunpack.c.l.b16 %v2210
      %v2259 = vunpack.c.l.b16 %v2211
      %v2260 = vunpack.c.l.b16 %v2212
      %v2261 = vunpack.c.l.b16 %v2213
      %v2262 = vpack.c.b16 %v2239, %v2238
      %v2263 = vpack.c.b16 %v2241, %v2240
      %v2264 = vpack.c.b16 %v2243, %v2242
      %v2265 = vpack.c.b16 %v2245, %v2244
      %v2266 = vpack.c.b16 %v2247, %v2246
      %v2267 = vpack.c.b16 %v2249, %v2248
      %v2268 = vpack.c.b16 %v2251, %v2250
      %v2269 = vpack.c.b16 %v2253, %v2252
      %v2270 = vpack.c.b16 %v2255, %v2254
      %v2271 = vpack.c.b16 %v2257, %v2256
      %v2272 = vpack.c.b16 %v2259, %v2258
      %v2273 = vpack.c.b16 %v2261, %v2260
      %v2287 = vsel %vm1556, %v2095, 0
      %v2290 = vsel %vm1556, %v2098, 0
      %v2293 = vsel %vm1556, %v2101, 0
      %v2296 = vsel %vm1556, %v2104, 0
      %v2299 = vsel %vm1556, %v2107, 0
      %v2302 = vsel %vm1556, %v2110, 0
      %v2305 = vsel %vm1556, %v2113, 0
      %v2308 = vsel %vm1556, %v2116, 0
      %v2311 = vsel %vm1556, %v2119, 0
      %v2314 = vsel %vm1556, %v2122, 0
      %v2317 = vsel %vm1556, %v2125, 0
      %v2320 = vsel %vm1556, %v2128, 0
      %v2323 = vsel %vm1556, %v2131, 0
      %v2326 = vsel %vm1556, %v2134, 0
      %v2329 = vsel %vm1556, %v2137, 0
      %v2332 = vsel %vm1556, %v2140, 0
      %2334 = vmatprep.subr.bf16.mxu0 0
      %2335 = vmatpush1.bf16.msra.mxu0 %v2262
      %2336 = vmatprep.subr.bf16.mxu0 0
      %2337 = vmatpush1.bf16.msra.mxu0 %v2263
      %2338 = vmatprep.subr.bf16.mxu0 0
      %2339 = vmatpush1.bf16.msra.mxu0 %v2264
      %2340 = vmatprep.subr.bf16.mxu0 0
      %2341 = vmatpush1.bf16.msra.mxu0 %v2265
      %2342 = vmatprep.subr.bf16.mxu0 0
      %2343 = vmatpush1.bf16.msra.mxu0 %v2266
      %2344 = vmatprep.subr.bf16.mxu0 0
      %2345 = vmatpush1.bf16.msra.mxu0 %v2267
      %2346 = vmatprep.subr.bf16.mxu0 0
      %2347 = vmatpush1.bf16.msra.mxu0 %v2268
      %2348 = vmatprep.subr.bf16.mxu0 0
      %2349 = vmatpush1.bf16.msra.mxu0 %v2269
      %2350 = vmatprep.subr.bf16.mxu0 0
      %2351 = vmatpush1.bf16.msra.mxu0 %v2270
      %2352 = vmatprep.subr.bf16.mxu0 0
      %2353 = vmatpush1.bf16.msra.mxu0 %v2271
      %2354 = vmatprep.subr.bf16.mxu0 0
      %2355 = vmatpush1.bf16.msra.mxu0 %v2272
      %2356 = vmatprep.subr.bf16.mxu0 0
      %2357 = vmatpush1.bf16.msra.mxu0 %v2273
      %2358 = vmatprep.subr.bf16.mxu0 0
      %2359 = vmatpush1.bf16.msra.mxu0 0
      %2360 = vmatprep.subr.bf16.mxu0 0
      %2361 = vmatpush1.bf16.msra.mxu0 0
      %2362 = vmatprep.subr.bf16.mxu0 0
      %2363 = vmatpush1.bf16.msra.mxu0 0
      %2364 = vmatprep.subr.bf16.mxu0 0
      %2365 = vmatpush1.bf16.msra.mxu0 0
      %2366 = vmatprep.mubr.bf16.mxu0 %v2287
      %2367 = vmatmul.mubr.bf16.gmra.mrb[0].mxu0 %v2142
      %v2368 = vpop.f32.mrb[0].mxu0
      %v2369 = vadd.f32 0.0, %v2368
      %v2370 = vpop.f32.mrb[0].mxu0
      %v2371 = vpop.f32.mrb[0].mxu0
      %v2372 = vadd.f32 0.0, %v2371
      %v2373 = vpop.f32.mrb[0].mxu0
      %2374 = vmatprep.mubr.bf16.mxu0 %v2290
      %2375 = vmatmul.mubr.bf16.gmra.mrb[0].mxu0 %v2145
      %v2376 = vpop.f32.mrb[0].mxu0
      %v2377 = vadd.f32 0.0, %v2376
      %v2378 = vpop.f32.mrb[0].mxu0
      %v2379 = vpop.f32.mrb[0].mxu0
      %v2380 = vadd.f32 0.0, %v2379
      %v2381 = vpop.f32.mrb[0].mxu0
      %2382 = vmatprep.mubr.bf16.mxu0 %v2293
      %2383 = vmatmul.mubr.bf16.gmra.mrb[0].mxu0 %v2148
      %v2384 = vpop.f32.mrb[0].mxu0
      %v2385 = vadd.f32 0.0, %v2384
      %v2386 = vpop.f32.mrb[0].mxu0
      %v2387 = vpop.f32.mrb[0].mxu0
      %v2388 = vadd.f32 0.0, %v2387
      %v2389 = vpop.f32.mrb[0].mxu0
      %2390 = vmatprep.mubr.bf16.mxu0 %v2296
      %2391 = vmatmul.mubr.bf16.gmra.mrb[0].mxu0 %v2151
      %v2392 = vpop.f32.mrb[0].mxu0
      %v2393 = vadd.f32 0.0, %v2392
      %v2394 = vpop.f32.mrb[0].mxu0
      %v2395 = vpop.f32.mrb[0].mxu0
      %v2396 = vadd.f32 0.0, %v2395
      %v2397 = vpop.f32.mrb[0].mxu0
      %2398 = vmatprep.mubr.bf16.mxu0 %v2299
      %2399 = vmatmul.mubr.bf16.gmra.mrb[0].mxu0 %v2154
      %v2400 = vpop.f32.mrb[0].mxu0
      %v2401 = vadd.f32 0.0, %v2400
      %v2402 = vpop.f32.mrb[0].mxu0
      %v2403 = vpop.f32.mrb[0].mxu0
      %v2404 = vadd.f32 0.0, %v2403
      %v2405 = vpop.f32.mrb[0].mxu0
      %2406 = vmatprep.mubr.bf16.mxu0 %v2302
      %2407 = vmatmul.mubr.bf16.gmra.mrb[0].mxu0 %v2157
      %v2408 = vpop.f32.mrb[0].mxu0
      %v2409 = vadd.f32 0.0, %v2408
      %v2410 = vpop.f32.mrb[0].mxu0
      %v2411 = vpop.f32.mrb[0].mxu0
      %v2412 = vadd.f32 0.0, %v2411
      %v2413 = vpop.f32.mrb[0].mxu0
      %2414 = vmatprep.mubr.bf16.mxu0 %v2305
      %2415 = vmatmul.mubr.bf16.gmra.mrb[0].mxu0 %v2160
      %v2416 = vpop.f32.mrb[0].mxu0
      %v2417 = vadd.f32 0.0, %v2416
      %v2418 = vpop.f32.mrb[0].mxu0
      %v2419 = vpop.f32.mrb[0].mxu0
      %v2420 = vadd.f32 0.0, %v2419
      %v2421 = vpop.f32.mrb[0].mxu0
      %2422 = vmatprep.mubr.bf16.mxu0 %v2308
      %2423 = vmatmul.mubr.bf16.gmra.mrb[0].mxu0 %v2163
      %v2424 = vpop.f32.mrb[0].mxu0
      %v2425 = vadd.f32 0.0, %v2424
      %v2426 = vpop.f32.mrb[0].mxu0
      %v2427 = vpop.f32.mrb[0].mxu0
      %v2428 = vadd.f32 0.0, %v2427
      %v2429 = vpop.f32.mrb[0].mxu0
      %2430 = vmatprep.mubr.bf16.mxu0 %v2311
      %2431 = vmatmul.mubr.bf16.gmra.mrb[0].mxu0 %v2166
      %v2432 = vpop.f32.mrb[0].mxu0
      %v2433 = vadd.f32 0.0, %v2432
      %v2434 = vpop.f32.mrb[0].mxu0
      %v2435 = vpop.f32.mrb[0].mxu0
      %v2436 = vadd.f32 0.0, %v2435
      %v2437 = vpop.f32.mrb[0].mxu0
      %2438 = vmatprep.mubr.bf16.mxu0 %v2314
      %2439 = vmatmul.mubr.bf16.gmra.mrb[0].mxu0 %v2169
      %v2440 = vpop.f32.mrb[0].mxu0
      %v2441 = vadd.f32 0.0, %v2440
      %v2442 = vpop.f32.mrb[0].mxu0
      %v2443 = vpop.f32.mrb[0].mxu0
      %v2444 = vadd.f32 0.0, %v2443
      %v2445 = vpop.f32.mrb[0].mxu0
      %2446 = vmatprep.mubr.bf16.mxu0 %v2317
      %2447 = vmatmul.mubr.bf16.gmra.mrb[0].mxu0 %v2172
      %v2448 = vpop.f32.mrb[0].mxu0
      %v2449 = vadd.f32 0.0, %v2448
      %v2450 = vpop.f32.mrb[0].mxu0
      %v2451 = vpop.f32.mrb[0].mxu0
      %v2452 = vadd.f32 0.0, %v2451
      %v2453 = vpop.f32.mrb[0].mxu0
      %2454 = vmatprep.mubr.bf16.mxu0 %v2320
      %2455 = vmatmul.mubr.bf16.gmra.mrb[0].mxu0 %v2175
      %v2456 = vpop.f32.mrb[0].mxu0
      %v2457 = vadd.f32 0.0, %v2456
      %v2458 = vpop.f32.mrb[0].mxu0
      %v2459 = vpop.f32.mrb[0].mxu0
      %v2460 = vadd.f32 0.0, %v2459
      %v2461 = vpop.f32.mrb[0].mxu0
      %2462 = vmatprep.mubr.bf16.mxu0 %v2323
      %2463 = vmatmul.mubr.bf16.gmra.mrb[0].mxu0 %v2178
      %v2464 = vpop.f32.mrb[0].mxu0
      %v2465 = vadd.f32 0.0, %v2464
      %v2466 = vpop.f32.mrb[0].mxu0
      %v2467 = vpop.f32.mrb[0].mxu0
      %v2468 = vadd.f32 0.0, %v2467
      %v2469 = vpop.f32.mrb[0].mxu0
      %2470 = vmatprep.mubr.bf16.mxu0 %v2326
      %2471 = vmatmul.mubr.bf16.gmra.mrb[0].mxu0 %v2181
      %v2472 = vpop.f32.mrb[0].mxu0
      %v2473 = vadd.f32 0.0, %v2472
      %v2474 = vpop.f32.mrb[0].mxu0
      %v2475 = vpop.f32.mrb[0].mxu0
      %v2476 = vadd.f32 0.0, %v2475
      %v2477 = vpop.f32.mrb[0].mxu0
      %2478 = vmatprep.mubr.bf16.mxu0 %v2329
      %2479 = vmatmul.mubr.bf16.gmra.mrb[0].mxu0 %v2184
      %v2480 = vpop.f32.mrb[0].mxu0
      %v2481 = vadd.f32 0.0, %v2480
      %v2482 = vpop.f32.mrb[0].mxu0
      %v2483 = vpop.f32.mrb[0].mxu0
      %v2484 = vadd.f32 0.0, %v2483
      %v2485 = vpop.f32.mrb[0].mxu0
      %2486 = vmatprep.mubr.bf16.mxu0 %v2332
      %2487 = vmatmul.mubr.bf16.gmra.mrb[0].mxu0 %v2187
      %v2488 = vpop.f32.mrb[0].mxu0
      %v2489 = vadd.f32 0.0, %v2488
      %v2490 = vpop.f32.mrb[0].mxu0
      %v2491 = vpop.f32.mrb[0].mxu0
      %v2492 = vadd.f32 0.0, %v2491
      %v2493 = vpop.f32.mrb[0].mxu0
      %2494 = vdwg.mxu0
      %v2519 = vunpack.c.l.b16 %v1605
      %v2520 = vunpack.c.l.b16 %v1606
      %v2521 = vunpack.c.l.b16 %v1607
      %v2522 = vunpack.c.l.b16 %v1608
      %v2523 = vunpack.c.l.b16 %v1609
      %v2524 = vunpack.c.l.b16 %v1610
      %v2525 = vunpack.c.l.b16 %v1611
      %v2526 = vunpack.c.l.b16 %v1612
      %v2527 = vunpack.c.l.b16 %v1613
      %v2528 = vunpack.c.l.b16 %v1614
      %v2529 = vunpack.c.l.b16 %v1615
      %v2530 = vunpack.c.l.b16 %v1616
      %v2531 = vunpack.c.l.b16 %v1617
      %v2532 = vunpack.c.l.b16 %v1618
      %v2533 = vunpack.c.l.b16 %v1619
      %v2534 = vunpack.c.l.b16 %v1620
      %v2535 = vunpack.c.l.b16 %v1621
      %v2536 = vunpack.c.l.b16 %v1622
      %v2537 = vunpack.c.l.b16 %v1623
      %v2538 = vunpack.c.l.b16 %v1624
      %v2539 = vunpack.c.l.b16 %v1625
      %v2540 = vunpack.c.l.b16 %v1626
      %v2541 = vunpack.c.l.b16 %v1627
      %v2542 = vunpack.c.l.b16 %v1628
      %v2543 = vpack.c.b16 %v2520, %v2519
      %v2544 = vpack.c.b16 %v2522, %v2521
      %v2545 = vpack.c.b16 %v2524, %v2523
      %v2546 = vpack.c.b16 %v2526, %v2525
      %v2547 = vpack.c.b16 %v2528, %v2527
      %v2548 = vpack.c.b16 %v2530, %v2529
      %v2549 = vpack.c.b16 %v2532, %v2531
      %v2550 = vpack.c.b16 %v2534, %v2533
      %v2551 = vpack.c.b16 %v2536, %v2535
      %v2552 = vpack.c.b16 %v2538, %v2537
      %v2553 = vpack.c.b16 %v2540, %v2539
      %v2554 = vpack.c.b16 %v2542, %v2541
      %v2568 = vsel %vm1556, %v1510, 0
      %v2571 = vsel %vm1556, %v1513, 0
      %v2574 = vsel %vm1556, %v1516, 0
      %v2577 = vsel %vm1556, %v1519, 0
      %v2580 = vsel %vm1556, %v1522, 0
      %v2583 = vsel %vm1556, %v1525, 0
      %v2586 = vsel %vm1556, %v1528, 0
      %v2589 = vsel %vm1556, %v1531, 0
      %v2592 = vsel %vm1556, %v1534, 0
      %v2595 = vsel %vm1556, %v1537, 0
      %v2598 = vsel %vm1556, %v1540, 0
      %v2601 = vsel %vm1556, %v1543, 0
      %v2604 = vsel %vm1556, %v1546, 0
      %v2607 = vsel %vm1556, %v1549, 0
      %v2610 = vsel %vm1556, %v1552, 0
      %v2613 = vsel %vm1556, %v1555, 0
      %2615 = vmatprep.subr.bf16.mxu0 0
      %2616 = vmatpush1.bf16.msra.mxu0 %v2543
      %2617 = vmatprep.subr.bf16.mxu0 0
      %2618 = vmatpush1.bf16.msra.mxu0 %v2544
      %2619 = vmatprep.subr.bf16.mxu0 0
      %2620 = vmatpush1.bf16.msra.mxu0 %v2545
      %2621 = vmatprep.subr.bf16.mxu0 0
      %2622 = vmatpush1.bf16.msra.mxu0 %v2546
      %2623 = vmatprep.subr.bf16.mxu0 0
      %2624 = vmatpush1.bf16.msra.mxu0 %v2547
      %2625 = vmatprep.subr.bf16.mxu0 0
      %2626 = vmatpush1.bf16.msra.mxu0 %v2548
      %2627 = vmatprep.subr.bf16.mxu0 0
      %2628 = vmatpush1.bf16.msra.mxu0 %v2549
      %2629 = vmatprep.subr.bf16.mxu0 0
      %2630 = vmatpush1.bf16.msra.mxu0 %v2550
      %2631 = vmatprep.subr.bf16.mxu0 0
      %2632 = vmatpush1.bf16.msra.mxu0 %v2551
      %2633 = vmatprep.subr.bf16.mxu0 0
      %2634 = vmatpush1.bf16.msra.mxu0 %v2552
      %2635 = vmatprep.subr.bf16.mxu0 0
      %2636 = vmatpush1.bf16.msra.mxu0 %v2553
      %2637 = vmatprep.subr.bf16.mxu0 0
      %2638 = vmatpush1.bf16.msra.mxu0 %v2554
      %2639 = vmatprep.subr.bf16.mxu0 0
      %2640 = vmatpush1.bf16.msra.mxu0 0
      %2641 = vmatprep.subr.bf16.mxu0 0
      %2642 = vmatpush1.bf16.msra.mxu0 0
      %2643 = vmatprep.subr.bf16.mxu0 0
      %2644 = vmatpush1.bf16.msra.mxu0 0
      %2645 = vmatprep.subr.bf16.mxu0 0
      %2646 = vmatpush1.bf16.msra.mxu0 0
      %2647 = vmatprep.mubr.bf16.mxu0 %v2568
      %2648 = vmatmul.mubr.bf16.gmra.mrb[0].mxu0 %v1558
      %v2649 = vpop.f32.mrb[0].mxu0
      %v2650 = vadd.f32 %v2369, %v2649
      %v2651 = vpop.f32.mrb[0].mxu0
      %v2652 = vpop.f32.mrb[0].mxu0
      %v2653 = vadd.f32 %v2372, %v2652
      %v2654 = vpop.f32.mrb[0].mxu0
      %2655 = vmatprep.mubr.bf16.mxu0 %v2571
      %2656 = vmatmul.mubr.bf16.gmra.mrb[0].mxu0 %v1561
      %v2657 = vpop.f32.mrb[0].mxu0
      %v2658 = vadd.f32 %v2377, %v2657
      %v2659 = vpop.f32.mrb[0].mxu0
      %v2660 = vpop.f32.mrb[0].mxu0
      %v2661 = vadd.f32 %v2380, %v2660
      %v2662 = vpop.f32.mrb[0].mxu0
      %2663 = vmatprep.mubr.bf16.mxu0 %v2574
      %2664 = vmatmul.mubr.bf16.gmra.mrb[0].mxu0 %v1564
      %v2665 = vpop.f32.mrb[0].mxu0
      %v2666 = vadd.f32 %v2385, %v2665
      %v2667 = vpop.f32.mrb[0].mxu0
      %v2668 = vpop.f32.mrb[0].mxu0
      %v2669 = vadd.f32 %v2388, %v2668
      %v2670 = vpop.f32.mrb[0].mxu0
      %2671 = vmatprep.mubr.bf16.mxu0 %v2577
      %2672 = vmatmul.mubr.bf16.gmra.mrb[0].mxu0 %v1567
      %v2673 = vpop.f32.mrb[0].mxu0
      %v2674 = vadd.f32 %v2393, %v2673
      %v2675 = vpop.f32.mrb[0].mxu0
      %v2676 = vpop.f32.mrb[0].mxu0
      %v2677 = vadd.f32 %v2396, %v2676
      %v2678 = vpop.f32.mrb[0].mxu0
      %2679 = vmatprep.mubr.bf16.mxu0 %v2580
      %2680 = vmatmul.mubr.bf16.gmra.mrb[0].mxu0 %v1570
      %v2681 = vpop.f32.mrb[0].mxu0
      %v2682 = vadd.f32 %v2401, %v2681
      %v2683 = vpop.f32.mrb[0].mxu0
      %v2684 = vpop.f32.mrb[0].mxu0
      %v2685 = vadd.f32 %v2404, %v2684
      %v2686 = vpop.f32.mrb[0].mxu0
      %2687 = vmatprep.mubr.bf16.mxu0 %v2583
      %2688 = vmatmul.mubr.bf16.gmra.mrb[0].mxu0 %v1573
      %v2689 = vpop.f32.mrb[0].mxu0
      %v2690 = vadd.f32 %v2409, %v2689
      %v2691 = vpop.f32.mrb[0].mxu0
      %v2692 = vpop.f32.mrb[0].mxu0
      %v2693 = vadd.f32 %v2412, %v2692
      %v2694 = vpop.f32.mrb[0].mxu0
      %2695 = vmatprep.mubr.bf16.mxu0 %v2586
      %2696 = vmatmul.mubr.bf16.gmra.mrb[0].mxu0 %v1576
      %v2697 = vpop.f32.mrb[0].mxu0
      %v2698 = vadd.f32 %v2417, %v2697
      %v2699 = vpop.f32.mrb[0].mxu0
      %v2700 = vpop.f32.mrb[0].mxu0
      %v2701 = vadd.f32 %v2420, %v2700
      %v2702 = vpop.f32.mrb[0].mxu0
      %2703 = vmatprep.mubr.bf16.mxu0 %v2589
      %2704 = vmatmul.mubr.bf16.gmra.mrb[0].mxu0 %v1579
      %v2705 = vpop.f32.mrb[0].mxu0
      %v2706 = vadd.f32 %v2425, %v2705
      %v2707 = vpop.f32.mrb[0].mxu0
      %v2708 = vpop.f32.mrb[0].mxu0
      %v2709 = vadd.f32 %v2428, %v2708
      %v2710 = vpop.f32.mrb[0].mxu0
      %2711 = vmatprep.mubr.bf16.mxu0 %v2592
      %2712 = vmatmul.mubr.bf16.gmra.mrb[0].mxu0 %v1582
      %v2713 = vpop.f32.mrb[0].mxu0
      %v2714 = vadd.f32 %v2433, %v2713
      %v2715 = vpop.f32.mrb[0].mxu0
      %v2716 = vpop.f32.mrb[0].mxu0
      %v2717 = vadd.f32 %v2436, %v2716
      %v2718 = vpop.f32.mrb[0].mxu0
      %2719 = vmatprep.mubr.bf16.mxu0 %v2595
      %2720 = vmatmul.mubr.bf16.gmra.mrb[0].mxu0 %v1585
      %v2721 = vpop.f32.mrb[0].mxu0
      %v2722 = vadd.f32 %v2441, %v2721
      %v2723 = vpop.f32.mrb[0].mxu0
      %v2724 = vpop.f32.mrb[0].mxu0
      %v2725 = vadd.f32 %v2444, %v2724
      %v2726 = vpop.f32.mrb[0].mxu0
      %2727 = vmatprep.mubr.bf16.mxu0 %v2598
      %2728 = vmatmul.mubr.bf16.gmra.mrb[0].mxu0 %v1588
      %v2729 = vpop.f32.mrb[0].mxu0
      %v2730 = vadd.f32 %v2449, %v2729
      %v2731 = vpop.f32.mrb[0].mxu0
      %v2732 = vpop.f32.mrb[0].mxu0
      %v2733 = vadd.f32 %v2452, %v2732
      %v2734 = vpop.f32.mrb[0].mxu0
      %2735 = vmatprep.mubr.bf16.mxu0 %v2601
      %2736 = vmatmul.mubr.bf16.gmra.mrb[0].mxu0 %v1591
      %v2737 = vpop.f32.mrb[0].mxu0
      %v2738 = vadd.f32 %v2457, %v2737
      %v2739 = vpop.f32.mrb[0].mxu0
      %v2740 = vpop.f32.mrb[0].mxu0
      %v2741 = vadd.f32 %v2460, %v2740
      %v2742 = vpop.f32.mrb[0].mxu0
      %2743 = vmatprep.mubr.bf16.mxu0 %v2604
      %2744 = vmatmul.mubr.bf16.gmra.mrb[0].mxu0 %v1594
      %v2745 = vpop.f32.mrb[0].mxu0
      %v2746 = vadd.f32 %v2465, %v2745
      %v2747 = vpop.f32.mrb[0].mxu0
      %v2748 = vpop.f32.mrb[0].mxu0
      %v2749 = vadd.f32 %v2468, %v2748
      %v2750 = vpop.f32.mrb[0].mxu0
      %2751 = vmatprep.mubr.bf16.mxu0 %v2607
      %2752 = vmatmul.mubr.bf16.gmra.mrb[0].mxu0 %v1597
      %v2753 = vpop.f32.mrb[0].mxu0
      %v2754 = vadd.f32 %v2473, %v2753
      %v2755 = vpop.f32.mrb[0].mxu0
      %v2756 = vpop.f32.mrb[0].mxu0
      %v2757 = vadd.f32 %v2476, %v2756
      %v2758 = vpop.f32.mrb[0].mxu0
      %2759 = vmatprep.mubr.bf16.mxu0 %v2610
      %2760 = vmatmul.mubr.bf16.gmra.mrb[0].mxu0 %v1600
      %v2761 = vpop.f32.mrb[0].mxu0
      %v2762 = vadd.f32 %v2481, %v2761
      %v2763 = vpop.f32.mrb[0].mxu0
      %v2764 = vpop.f32.mrb[0].mxu0
      %v2765 = vadd.f32 %v2484, %v2764
      %v2766 = vpop.f32.mrb[0].mxu0
      %2767 = vmatprep.mubr.bf16.mxu0 %v2613
      %2768 = vmatmul.mubr.bf16.gmra.mrb[0].mxu0 %v1603
      %v2769 = vpop.f32.mrb[0].mxu0
      %v2770 = vadd.f32 %v2489, %v2769
      %v2771 = vpop.f32.mrb[0].mxu0
      %v2772 = vpop.f32.mrb[0].mxu0
      %v2773 = vadd.f32 %v2492, %v2772
      %v2774 = vpop.f32.mrb[0].mxu0
      %2775 = vdwg.mxu0
      %s2776 = scalar_lea.vmem [#allocation2], 24
      %v2777 = vld [vmem:[%s2776] sm:$0xf]
      %v2778 = vld [vmem:[%s2776 + $0x4] sm:$0xf]
      %v2779 = vld [vmem:[%s2776 + $0xc] sm:$0xf]
      %v2780 = vld [vmem:[%s2776 + $0x10] sm:$0xf]
      %v2781 = vld [vmem:[%s2776 + $0x18] sm:$0xf]
      %v2782 = vld [vmem:[%s2776 + $0x1c] sm:$0xf]
      %v2783 = vld [vmem:[%s2776 + $0x24] sm:$0xf]
      %v2784 = vld [vmem:[%s2776 + $0x28] sm:$0xf]
      %v2785 = vld [vmem:[%s2776 + $0x30] sm:$0xf]
      %v2786 = vld [vmem:[%s2776 + $0x34] sm:$0xf]
      %v2787 = vld [vmem:[%s2776 + $0x3c] sm:$0xf]
      %v2788 = vld [vmem:[%s2776 + $0x40] sm:$0xf]
      %v2789 = vld [vmem:[%s2776 + $0x48] sm:$0xf]
      %v2790 = vld [vmem:[%s2776 + $0x4c] sm:$0xf]
      %v2791 = vld [vmem:[%s2776 + $0x54] sm:$0xf]
      %v2792 = vld [vmem:[%s2776 + $0x58] sm:$0xf]
      %v2793 = vld [vmem:[%s2776 + $0x60] sm:$0xf]
      %v2794 = vld [vmem:[%s2776 + $0x64] sm:$0xf]
      %v2795 = vld [vmem:[%s2776 + $0x6c] sm:$0xf]
      %v2796 = vld [vmem:[%s2776 + $0x70] sm:$0xf]
      %v2797 = vld [vmem:[%s2776 + $0x78] sm:$0xf]
      %v2798 = vld [vmem:[%s2776 + $0x7c] sm:$0xf]
      %v2799 = vld [vmem:[%s2776 + $0x84] sm:$0xf]
      %v2800 = vld [vmem:[%s2776 + $0x88] sm:$0xf]
      %v2801 = vld [vmem:[%s2776 + $0x90] sm:$0xf]
      %v2802 = vld [vmem:[%s2776 + $0x94] sm:$0xf]
      %v2803 = vld [vmem:[%s2776 + $0x9c] sm:$0xf]
      %v2804 = vld [vmem:[%s2776 + $0xa0] sm:$0xf]
      %v2805 = vld [vmem:[%s2776 + $0xa8] sm:$0xf]
      %v2806 = vld [vmem:[%s2776 + $0xac] sm:$0xf]
      %v2807 = vld [vmem:[%s2776 + $0xb4] sm:$0xf]
      %v2808 = vld [vmem:[%s2776 + $0xb8] sm:$0xf]
      %v2809 = vld [vmem:[%s2776 + $0x8] sm:$0x1]
      %v2810 = vld [vmem:[%s2776 + $0x14] sm:$0x1]
      %v2811 = vld [vmem:[%s2776 + $0x20] sm:$0x1]
      %v2812 = vld [vmem:[%s2776 + $0x2c] sm:$0x1]
      %v2813 = vld [vmem:[%s2776 + $0x38] sm:$0x1]
      %v2814 = vld [vmem:[%s2776 + $0x44] sm:$0x1]
      %v2815 = vld [vmem:[%s2776 + $0x50] sm:$0x1]
      %v2816 = vld [vmem:[%s2776 + $0x5c] sm:$0x1]
      %v2817 = vld [vmem:[%s2776 + $0x68] sm:$0x1]
      %v2818 = vld [vmem:[%s2776 + $0x74] sm:$0x1]
      %v2819 = vld [vmem:[%s2776 + $0x80] sm:$0x1]
      %v2820 = vld [vmem:[%s2776 + $0x8c] sm:$0x1]
      %v2821 = vld [vmem:[%s2776 + $0x98] sm:$0x1]
      %v2822 = vld [vmem:[%s2776 + $0xa4] sm:$0x1]
      %v2823 = vld [vmem:[%s2776 + $0xb0] sm:$0x1]
      %v2824 = vld [vmem:[%s2776 + $0xbc] sm:$0x1]
      %v2825 = vld [vmem:[%s2776] sm:$0xe]
      %v2826 = vld [vmem:[%s2776 + $0xc] sm:$0xe]
      %v2827 = vld [vmem:[%s2776 + $0x18] sm:$0xe]
      %v2828 = vld [vmem:[%s2776 + $0x24] sm:$0xe]
      %v2829 = vld [vmem:[%s2776 + $0x30] sm:$0xe]
      %v2830 = vld [vmem:[%s2776 + $0x3c] sm:$0xe]
      %v2831 = vld [vmem:[%s2776 + $0x48] sm:$0xe]
      %v2832 = vld [vmem:[%s2776 + $0x54] sm:$0xe]
      %v2833 = vld [vmem:[%s2776 + $0x60] sm:$0xe]
      %v2834 = vld [vmem:[%s2776 + $0x6c] sm:$0xe]
      %v2835 = vld [vmem:[%s2776 + $0x78] sm:$0xe]
      %v2836 = vld [vmem:[%s2776 + $0x84] sm:$0xe]
      %v2837 = vld [vmem:[%s2776 + $0x90] sm:$0xe]
      %v2838 = vld [vmem:[%s2776 + $0x9c] sm:$0xe]
      %v2839 = vld [vmem:[%s2776 + $0xa8] sm:$0xe]
      %v2840 = vld [vmem:[%s2776 + $0xb4] sm:$0xe]
      %v2873 = vunpack.c.l.b16 %v2777
      %v2874 = vunpack.c.l.b16 %v2778
      %v2875 = vunpack.c.l.b16 %v2779
      %v2876 = vunpack.c.l.b16 %v2780
      %v2877 = vunpack.c.l.b16 %v2781
      %v2878 = vunpack.c.l.b16 %v2782
      %v2879 = vunpack.c.l.b16 %v2783
      %v2880 = vunpack.c.l.b16 %v2784
      %v2881 = vunpack.c.l.b16 %v2785
      %v2882 = vunpack.c.l.b16 %v2786
      %v2883 = vunpack.c.l.b16 %v2787
      %v2884 = vunpack.c.l.b16 %v2788
      %v2885 = vunpack.c.l.b16 %v2789
      %v2886 = vunpack.c.l.b16 %v2790
      %v2887 = vunpack.c.l.b16 %v2791
      %v2888 = vunpack.c.l.b16 %v2792
      %v2889 = vunpack.c.l.b16 %v2793
      %v2890 = vunpack.c.l.b16 %v2794
      %v2891 = vunpack.c.l.b16 %v2795
      %v2892 = vunpack.c.l.b16 %v2796
      %v2893 = vunpack.c.l.b16 %v2797
      %v2894 = vunpack.c.l.b16 %v2798
      %v2895 = vunpack.c.l.b16 %v2799
      %v2896 = vunpack.c.l.b16 %v2800
      %v2897 = vunpack.c.l.b16 %v2801
      %v2898 = vunpack.c.l.b16 %v2802
      %v2899 = vunpack.c.l.b16 %v2803
      %v2900 = vunpack.c.l.b16 %v2804
      %v2901 = vunpack.c.l.b16 %v2805
      %v2902 = vunpack.c.l.b16 %v2806
      %v2903 = vunpack.c.l.b16 %v2807
      %v2904 = vunpack.c.l.b16 %v2808
      %v2905 = vpack.c.b16 %v2874, %v2873
      %v2906 = vpack.c.b16 %v2876, %v2875
      %v2907 = vpack.c.b16 %v2878, %v2877
      %v2908 = vpack.c.b16 %v2880, %v2879
      %v2909 = vpack.c.b16 %v2882, %v2881
      %v2910 = vpack.c.b16 %v2884, %v2883
      %v2911 = vpack.c.b16 %v2886, %v2885
      %v2912 = vpack.c.b16 %v2888, %v2887
      %v2913 = vpack.c.b16 %v2890, %v2889
      %v2914 = vpack.c.b16 %v2892, %v2891
      %v2915 = vpack.c.b16 %v2894, %v2893
      %v2916 = vpack.c.b16 %v2896, %v2895
      %v2917 = vpack.c.b16 %v2898, %v2897
      %v2918 = vpack.c.b16 %v2900, %v2899
      %v2919 = vpack.c.b16 %v2902, %v2901
      %v2920 = vpack.c.b16 %v2904, %v2903
      %v2937 = vunpack.c.l.b16 %v2809
      %v2938 = vunpack.c.l.b16 %v2810
      %v2939 = vunpack.c.l.b16 %v2811
      %v2940 = vunpack.c.l.b16 %v2812
      %v2941 = vunpack.c.l.b16 %v2813
      %v2942 = vunpack.c.l.b16 %v2814
      %v2943 = vunpack.c.l.b16 %v2815
      %v2944 = vunpack.c.l.b16 %v2816
      %v2945 = vunpack.c.l.b16 %v2817
      %v2946 = vunpack.c.l.b16 %v2818
      %v2947 = vunpack.c.l.b16 %v2819
      %v2948 = vunpack.c.l.b16 %v2820
      %v2949 = vunpack.c.l.b16 %v2821
      %v2950 = vunpack.c.l.b16 %v2822
      %v2951 = vunpack.c.l.b16 %v2823
      %v2952 = vunpack.c.l.b16 %v2824
      %v2953 = vpack.c.b16 %v2937, %v2937
      %v2954 = vpack.c.b16 %v2938, %v2938
      %v2955 = vpack.c.b16 %v2939, %v2939
      %v2956 = vpack.c.b16 %v2940, %v2940
      %v2957 = vpack.c.b16 %v2941, %v2941
      %v2958 = vpack.c.b16 %v2942, %v2942
      %v2959 = vpack.c.b16 %v2943, %v2943
      %v2960 = vpack.c.b16 %v2944, %v2944
      %v2961 = vpack.c.b16 %v2945, %v2945
      %v2962 = vpack.c.b16 %v2946, %v2946
      %v2963 = vpack.c.b16 %v2947, %v2947
      %v2964 = vpack.c.b16 %v2948, %v2948
      %v2965 = vpack.c.b16 %v2949, %v2949
      %v2966 = vpack.c.b16 %v2950, %v2950
      %v2967 = vpack.c.b16 %v2951, %v2951
      %v2968 = vpack.c.b16 %v2952, %v2952
      %v2970 = vshrl.u32 %v2905, 16
      %v2972 = vshll.u32 %v2905, 16
      %v2974 = vrot.slane %v2972, 1
      %v2975 = vor.u32 %v2970, %v2974
      %v2977 = vshll.u32 %v2953, 16
      %v2979 = vrot.slane %v2977, 1
      %v2980 = vsel %vm1234, %v2975, %v2979
      %v2982 = vshrl.u32 %v2906, 16
      %v2984 = vshll.u32 %v2906, 16
      %v2986 = vrot.slane %v2984, 1
      %v2987 = vor.u32 %v2982, %v2986
      %v2989 = vshll.u32 %v2954, 16
      %v2991 = vrot.slane %v2989, 1
      %v2992 = vsel %vm1234, %v2987, %v2991
      %v2994 = vshrl.u32 %v2907, 16
      %v2996 = vshll.u32 %v2907, 16
      %v2998 = vrot.slane %v2996, 1
      %v2999 = vor.u32 %v2994, %v2998
      %v3001 = vshll.u32 %v2955, 16
      %v3003 = vrot.slane %v3001, 1
      %v3004 = vsel %vm1234, %v2999, %v3003
      %v3006 = vshrl.u32 %v2908, 16
      %v3008 = vshll.u32 %v2908, 16
      %v3010 = vrot.slane %v3008, 1
      %v3011 = vor.u32 %v3006, %v3010
      %v3013 = vshll.u32 %v2956, 16
      %v3015 = vrot.slane %v3013, 1
      %v3016 = vsel %vm1234, %v3011, %v3015
      %v3018 = vshrl.u32 %v2909, 16
      %v3020 = vshll.u32 %v2909, 16
      %v3022 = vrot.slane %v3020, 1
      %v3023 = vor.u32 %v3018, %v3022
      %v3025 = vshll.u32 %v2957, 16
      %v3027 = vrot.slane %v3025, 1
      %v3028 = vsel %vm1234, %v3023, %v3027
      %v3030 = vshrl.u32 %v2910, 16
      %v3032 = vshll.u32 %v2910, 16
      %v3034 = vrot.slane %v3032, 1
      %v3035 = vor.u32 %v3030, %v3034
      %v3037 = vshll.u32 %v2958, 16
      %v3039 = vrot.slane %v3037, 1
      %v3040 = vsel %vm1234, %v3035, %v3039
      %v3042 = vshrl.u32 %v2911, 16
      %v3044 = vshll.u32 %v2911, 16
      %v3046 = vrot.slane %v3044, 1
      %v3047 = vor.u32 %v3042, %v3046
      %v3049 = vshll.u32 %v2959, 16
      %v3051 = vrot.slane %v3049, 1
      %v3052 = vsel %vm1234, %v3047, %v3051
      %v3054 = vshrl.u32 %v2912, 16
      %v3056 = vshll.u32 %v2912, 16
      %v3058 = vrot.slane %v3056, 1
      %v3059 = vor.u32 %v3054, %v3058
      %v3061 = vshll.u32 %v2960, 16
      %v3063 = vrot.slane %v3061, 1
      %v3064 = vsel %vm1234, %v3059, %v3063
      %v3066 = vshrl.u32 %v2913, 16
      %v3068 = vshll.u32 %v2913, 16
      %v3070 = vrot.slane %v3068, 1
      %v3071 = vor.u32 %v3066, %v3070
      %v3073 = vshll.u32 %v2961, 16
      %v3075 = vrot.slane %v3073, 1
      %v3076 = vsel %vm1234, %v3071, %v3075
      %v3078 = vshrl.u32 %v2914, 16
      %v3080 = vshll.u32 %v2914, 16
      %v3082 = vrot.slane %v3080, 1
      %v3083 = vor.u32 %v3078, %v3082
      %v3085 = vshll.u32 %v2962, 16
      %v3087 = vrot.slane %v3085, 1
      %v3088 = vsel %vm1234, %v3083, %v3087
      %v3090 = vshrl.u32 %v2915, 16
      %v3092 = vshll.u32 %v2915, 16
      %v3094 = vrot.slane %v3092, 1
      %v3095 = vor.u32 %v3090, %v3094
      %v3097 = vshll.u32 %v2963, 16
      %v3099 = vrot.slane %v3097, 1
      %v3100 = vsel %vm1234, %v3095, %v3099
      %v3102 = vshrl.u32 %v2916, 16
      %v3104 = vshll.u32 %v2916, 16
      %v3106 = vrot.slane %v3104, 1
      %v3107 = vor.u32 %v3102, %v3106
      %v3109 = vshll.u32 %v2964, 16
      %v3111 = vrot.slane %v3109, 1
      %v3112 = vsel %vm1234, %v3107, %v3111
      %v3114 = vshrl.u32 %v2917, 16
      %v3116 = vshll.u32 %v2917, 16
      %v3118 = vrot.slane %v3116, 1
      %v3119 = vor.u32 %v3114, %v3118
      %v3121 = vshll.u32 %v2965, 16
      %v3123 = vrot.slane %v3121, 1
      %v3124 = vsel %vm1234, %v3119, %v3123
      %v3126 = vshrl.u32 %v2918, 16
      %v3128 = vshll.u32 %v2918, 16
      %v3130 = vrot.slane %v3128, 1
      %v3131 = vor.u32 %v3126, %v3130
      %v3133 = vshll.u32 %v2966, 16
      %v3135 = vrot.slane %v3133, 1
      %v3136 = vsel %vm1234, %v3131, %v3135
      %v3138 = vshrl.u32 %v2919, 16
      %v3140 = vshll.u32 %v2919, 16
      %v3142 = vrot.slane %v3140, 1
      %v3143 = vor.u32 %v3138, %v3142
      %v3145 = vshll.u32 %v2967, 16
      %v3147 = vrot.slane %v3145, 1
      %v3148 = vsel %vm1234, %v3143, %v3147
      %v3150 = vshrl.u32 %v2920, 16
      %v3152 = vshll.u32 %v2920, 16
      %v3154 = vrot.slane %v3152, 1
      %v3155 = vor.u32 %v3150, %v3154
      %v3157 = vshll.u32 %v2968, 16
      %v3159 = vrot.slane %v3157, 1
      %v3160 = vsel %vm1234, %v3155, %v3159
      %3161 = vrot.lane.b32.xlu0 %v2980, 64
      %v3162 = vpop.permute.xlu0 %3161
      %3163 = vrot.lane.b32.xlu0 %v2992, 64
      %v3164 = vpop.permute.xlu0 %3163
      %3165 = vrot.lane.b32.xlu0 %v3004, 64
      %v3166 = vpop.permute.xlu0 %3165
      %3167 = vrot.lane.b32.xlu0 %v3016, 64
      %v3168 = vpop.permute.xlu0 %3167
      %3169 = vrot.lane.b32.xlu0 %v3028, 64
      %v3170 = vpop.permute.xlu0 %3169
      %3171 = vrot.lane.b32.xlu0 %v3040, 64
      %v3172 = vpop.permute.xlu0 %3171
      %3173 = vrot.lane.b32.xlu0 %v3052, 64
      %v3174 = vpop.permute.xlu0 %3173
      %3175 = vrot.lane.b32.xlu0 %v3064, 64
      %v3176 = vpop.permute.xlu0 %3175
      %3177 = vrot.lane.b32.xlu0 %v3076, 64
      %v3178 = vpop.permute.xlu0 %3177
      %3179 = vrot.lane.b32.xlu0 %v3088, 64
      %v3180 = vpop.permute.xlu0 %3179
      %3181 = vrot.lane.b32.xlu0 %v3100, 64
      %v3182 = vpop.permute.xlu0 %3181
      %3183 = vrot.lane.b32.xlu0 %v3112, 64
      %v3184 = vpop.permute.xlu0 %3183
      %3185 = vrot.lane.b32.xlu0 %v3124, 64
      %v3186 = vpop.permute.xlu0 %3185
      %3187 = vrot.lane.b32.xlu0 %v3136, 64
      %v3188 = vpop.permute.xlu0 %3187
      %3189 = vrot.lane.b32.xlu0 %v3148, 64
      %v3190 = vpop.permute.xlu0 %3189
      %3191 = vrot.lane.b32.xlu0 %v3160, 64
      %v3192 = vpop.permute.xlu0 %3191
      %v3209 = vunpack.c.l.b16 %v2825
      %v3210 = vunpack.c.l.b16 %v2826
      %v3211 = vunpack.c.l.b16 %v2827
      %v3212 = vunpack.c.l.b16 %v2828
      %v3213 = vunpack.c.l.b16 %v2829
      %v3214 = vunpack.c.l.b16 %v2830
      %v3215 = vunpack.c.l.b16 %v2831
      %v3216 = vunpack.c.l.b16 %v2832
      %v3217 = vunpack.c.l.b16 %v2833
      %v3218 = vunpack.c.l.b16 %v2834
      %v3219 = vunpack.c.l.b16 %v2835
      %v3220 = vunpack.c.l.b16 %v2836
      %v3221 = vunpack.c.l.b16 %v2837
      %v3222 = vunpack.c.l.b16 %v2838
      %v3223 = vunpack.c.l.b16 %v2839
      %v3224 = vunpack.c.l.b16 %v2840
      %v3225 = vpack.c.b16 %v2874, %v3209
      %v3226 = vpack.c.b16 %v2876, %v3210
      %v3227 = vpack.c.b16 %v2878, %v3211
      %v3228 = vpack.c.b16 %v2880, %v3212
      %v3229 = vpack.c.b16 %v2882, %v3213
      %v3230 = vpack.c.b16 %v2884, %v3214
      %v3231 = vpack.c.b16 %v2886, %v3215
      %v3232 = vpack.c.b16 %v2888, %v3216
      %v3233 = vpack.c.b16 %v2890, %v3217
      %v3234 = vpack.c.b16 %v2892, %v3218
      %v3235 = vpack.c.b16 %v2894, %v3219
      %v3236 = vpack.c.b16 %v2896, %v3220
      %v3237 = vpack.c.b16 %v2898, %v3221
      %v3238 = vpack.c.b16 %v2900, %v3222
      %v3239 = vpack.c.b16 %v2902, %v3223
      %v3240 = vpack.c.b16 %v2904, %v3224
      %v3241 = vrot.slane %v3225, 1
      %v3242 = vrot.slane %v2953, 1
      %v3243 = vsel %vm1507, %v3241, %v3242
      %v3244 = vrot.slane %v3226, 1
      %v3245 = vrot.slane %v2954, 1
      %v3246 = vsel %vm1507, %v3244, %v3245
      %v3247 = vrot.slane %v3227, 1
      %v3248 = vrot.slane %v2955, 1
      %v3249 = vsel %vm1507, %v3247, %v3248
      %v3250 = vrot.slane %v3228, 1
      %v3251 = vrot.slane %v2956, 1
      %v3252 = vsel %vm1507, %v3250, %v3251
      %v3253 = vrot.slane %v3229, 1
      %v3254 = vrot.slane %v2957, 1
      %v3255 = vsel %vm1507, %v3253, %v3254
      %v3256 = vrot.slane %v3230, 1
      %v3257 = vrot.slane %v2958, 1
      %v3258 = vsel %vm1507, %v3256, %v3257
      %v3259 = vrot.slane %v3231, 1
      %v3260 = vrot.slane %v2959, 1
      %v3261 = vsel %vm1507, %v3259, %v3260
      %v3262 = vrot.slane %v3232, 1
      %v3263 = vrot.slane %v2960, 1
      %v3264 = vsel %vm1507, %v3262, %v3263
      %v3265 = vrot.slane %v3233, 1
      %v3266 = vrot.slane %v2961, 1
      %v3267 = vsel %vm1507, %v3265, %v3266
      %v3268 = vrot.slane %v3234, 1
      %v3269 = vrot.slane %v2962, 1
      %v3270 = vsel %vm1507, %v3268, %v3269
      %v3271 = vrot.slane %v3235, 1
      %v3272 = vrot.slane %v2963, 1
      %v3273 = vsel %vm1507, %v3271, %v3272
      %v3274 = vrot.slane %v3236, 1
      %v3275 = vrot.slane %v2964, 1
      %v3276 = vsel %vm1507, %v3274, %v3275
      %v3277 = vrot.slane %v3237, 1
      %v3278 = vrot.slane %v2965, 1
      %v3279 = vsel %vm1507, %v3277, %v3278
      %v3280 = vrot.slane %v3238, 1
      %v3281 = vrot.slane %v2966, 1
      %v3282 = vsel %vm1507, %v3280, %v3281
      %v3283 = vrot.slane %v3239, 1
      %v3284 = vrot.slane %v2967, 1
      %v3285 = vsel %vm1507, %v3283, %v3284
      %v3286 = vrot.slane %v3240, 1
      %v3287 = vrot.slane %v2968, 1
      %v3288 = vsel %vm1507, %v3286, %v3287
      %v3290 = vsel %vm1556, %v2905, %v3162
      %v3293 = vsel %vm1556, %v2906, %v3164
      %v3296 = vsel %vm1556, %v2907, %v3166
      %v3299 = vsel %vm1556, %v2908, %v3168
      %v3302 = vsel %vm1556, %v2909, %v3170
      %v3305 = vsel %vm1556, %v2910, %v3172
      %v3308 = vsel %vm1556, %v2911, %v3174
      %v3311 = vsel %vm1556, %v2912, %v3176
      %v3314 = vsel %vm1556, %v2913, %v3178
      %v3317 = vsel %vm1556, %v2914, %v3180
      %v3320 = vsel %vm1556, %v2915, %v3182
      %v3323 = vsel %vm1556, %v2916, %v3184
      %v3326 = vsel %vm1556, %v2917, %v3186
      %v3329 = vsel %vm1556, %v2918, %v3188
      %v3332 = vsel %vm1556, %v2919, %v3190
      %v3335 = vsel %vm1556, %v2920, %v3192
      %s3337 = scalar_lea.vmem %s2, 192
      %v3338 = vld [vmem:[%s3337] sm:$0xf]
      %v3339 = vld [vmem:[%s3337 + $0x4] sm:$0xf]
      %v3340 = vld [vmem:[%s3337 + $0x8] sm:$0xf]
      %v3341 = vld [vmem:[%s3337 + $0xc] sm:$0xf]
      %v3342 = vld [vmem:[%s3337 + $0x10] sm:$0xf]
      %v3343 = vld [vmem:[%s3337 + $0x14] sm:$0xf]
      %v3344 = vld [vmem:[%s3337 + $0x18] sm:$0xf]
      %v3345 = vld [vmem:[%s3337 + $0x1c] sm:$0xf]
      %v3346 = vld [vmem:[%s3337 + $0x20] sm:$0xf]
      %v3347 = vld [vmem:[%s3337 + $0x24] sm:$0xf]
      %v3348 = vld [vmem:[%s3337 + $0x28] sm:$0xf]
      %v3349 = vld [vmem:[%s3337 + $0x2c] sm:$0xf]
      %v3350 = vld [vmem:[%s3337 + $0x30] sm:$0xf]
      %v3351 = vld [vmem:[%s3337 + $0x34] sm:$0xf]
      %v3352 = vld [vmem:[%s3337 + $0x38] sm:$0xf]
      %v3353 = vld [vmem:[%s3337 + $0x3c] sm:$0xf]
      %v3354 = vld [vmem:[%s3337 + $0x40] sm:$0xf]
      %v3355 = vld [vmem:[%s3337 + $0x44] sm:$0xf]
      %v3356 = vld [vmem:[%s3337 + $0x48] sm:$0xf]
      %v3357 = vld [vmem:[%s3337 + $0x4c] sm:$0xf]
      %v3358 = vld [vmem:[%s3337 + $0x50] sm:$0xf]
      %v3359 = vld [vmem:[%s3337 + $0x54] sm:$0xf]
      %v3360 = vld [vmem:[%s3337 + $0x58] sm:$0xf]
      %v3361 = vld [vmem:[%s3337 + $0x5c] sm:$0xf]
      %v3386 = vunpack.c.l.b16 %v3338
      %v3387 = vunpack.c.l.b16 %v3339
      %v3388 = vunpack.c.l.b16 %v3340
      %v3389 = vunpack.c.l.b16 %v3341
      %v3390 = vunpack.c.l.b16 %v3342
      %v3391 = vunpack.c.l.b16 %v3343
      %v3392 = vunpack.c.l.b16 %v3344
      %v3393 = vunpack.c.l.b16 %v3345
      %v3394 = vunpack.c.l.b16 %v3346
      %v3395 = vunpack.c.l.b16 %v3347
      %v3396 = vunpack.c.l.b16 %v3348
      %v3397 = vunpack.c.l.b16 %v3349
      %v3398 = vunpack.c.l.b16 %v3350
      %v3399 = vunpack.c.l.b16 %v3351
      %v3400 = vunpack.c.l.b16 %v3352
      %v3401 = vunpack.c.l.b16 %v3353
      %v3402 = vunpack.c.l.b16 %v3354
      %v3403 = vunpack.c.l.b16 %v3355
      %v3404 = vunpack.c.l.b16 %v3356
      %v3405 = vunpack.c.l.b16 %v3357
      %v3406 = vunpack.c.l.b16 %v3358
      %v3407 = vunpack.c.l.b16 %v3359
      %v3408 = vunpack.c.l.b16 %v3360
      %v3409 = vunpack.c.l.b16 %v3361
      %v3410 = vpack.c.b16 %v3387, %v3386
      %v3411 = vpack.c.b16 %v3389, %v3388
      %v3412 = vpack.c.b16 %v3391, %v3390
      %v3413 = vpack.c.b16 %v3393, %v3392
      %v3414 = vpack.c.b16 %v3395, %v3394
      %v3415 = vpack.c.b16 %v3397, %v3396
      %v3416 = vpack.c.b16 %v3399, %v3398
      %v3417 = vpack.c.b16 %v3401, %v3400
      %v3418 = vpack.c.b16 %v3403, %v3402
      %v3419 = vpack.c.b16 %v3405, %v3404
      %v3420 = vpack.c.b16 %v3407, %v3406
      %v3421 = vpack.c.b16 %v3409, %v3408
      %v3435 = vsel %vm1556, %v3243, 0
      %v3438 = vsel %vm1556, %v3246, 0
      %v3441 = vsel %vm1556, %v3249, 0
      %v3444 = vsel %vm1556, %v3252, 0
      %v3447 = vsel %vm1556, %v3255, 0
      %v3450 = vsel %vm1556, %v3258, 0
      %v3453 = vsel %vm1556, %v3261, 0
      %v3456 = vsel %vm1556, %v3264, 0
      %v3459 = vsel %vm1556, %v3267, 0
      %v3462 = vsel %vm1556, %v3270, 0
      %v3465 = vsel %vm1556, %v3273, 0
      %v3468 = vsel %vm1556, %v3276, 0
      %v3471 = vsel %vm1556, %v3279, 0
      %v3474 = vsel %vm1556, %v3282, 0
      %v3477 = vsel %vm1556, %v3285, 0
      %v3480 = vsel %vm1556, %v3288, 0
      %3482 = vmatprep.subr.bf16.mxu0 0
      %3483 = vmatpush1.bf16.msra.mxu0 %v3410
      %3484 = vmatprep.subr.bf16.mxu0 0
      %3485 = vmatpush1.bf16.msra.mxu0 %v3411
      %3486 = vmatprep.subr.bf16.mxu0 0
      %3487 = vmatpush1.bf16.msra.mxu0 %v3412
      %3488 = vmatprep.subr.bf16.mxu0 0
      %3489 = vmatpush1.bf16.msra.mxu0 %v3413
      %3490 = vmatprep.subr.bf16.mxu0 0
      %3491 = vmatpush1.bf16.msra.mxu0 %v3414
      %3492 = vmatprep.subr.bf16.mxu0 0
      %3493 = vmatpush1.bf16.msra.mxu0 %v3415
      %3494 = vmatprep.subr.bf16.mxu0 0
      %3495 = vmatpush1.bf16.msra.mxu0 %v3416
      %3496 = vmatprep.subr.bf16.mxu0 0
      %3497 = vmatpush1.bf16.msra.mxu0 %v3417
      %3498 = vmatprep.subr.bf16.mxu0 0
      %3499 = vmatpush1.bf16.msra.mxu0 %v3418
      %3500 = vmatprep.subr.bf16.mxu0 0
      %3501 = vmatpush1.bf16.msra.mxu0 %v3419
      %3502 = vmatprep.subr.bf16.mxu0 0
      %3503 = vmatpush1.bf16.msra.mxu0 %v3420
      %3504 = vmatprep.subr.bf16.mxu0 0
      %3505 = vmatpush1.bf16.msra.mxu0 %v3421
      %3506 = vmatprep.subr.bf16.mxu0 0
      %3507 = vmatpush1.bf16.msra.mxu0 0
      %3508 = vmatprep.subr.bf16.mxu0 0
      %3509 = vmatpush1.bf16.msra.mxu0 0
      %3510 = vmatprep.subr.bf16.mxu0 0
      %3511 = vmatpush1.bf16.msra.mxu0 0
      %3512 = vmatprep.subr.bf16.mxu0 0
      %3513 = vmatpush1.bf16.msra.mxu0 0
      %3514 = vmatprep.mubr.bf16.mxu0 %v3435
      %3515 = vmatmul.mubr.bf16.gmra.mrb[0].mxu0 %v3290
      %v3516 = vpop.f32.mrb[0].mxu0
      %v3517 = vadd.f32 0.0, %v3516
      %v3518 = vpop.f32.mrb[0].mxu0
      %v3519 = vpop.f32.mrb[0].mxu0
      %v3520 = vadd.f32 0.0, %v3519
      %v3521 = vpop.f32.mrb[0].mxu0
      %3522 = vmatprep.mubr.bf16.mxu0 %v3438
      %3523 = vmatmul.mubr.bf16.gmra.mrb[0].mxu0 %v3293
      %v3524 = vpop.f32.mrb[0].mxu0
      %v3525 = vadd.f32 0.0, %v3524
      %v3526 = vpop.f32.mrb[0].mxu0
      %v3527 = vpop.f32.mrb[0].mxu0
      %v3528 = vadd.f32 0.0, %v3527
      %v3529 = vpop.f32.mrb[0].mxu0
      %3530 = vmatprep.mubr.bf16.mxu0 %v3441
      %3531 = vmatmul.mubr.bf16.gmra.mrb[0].mxu0 %v3296
      %v3532 = vpop.f32.mrb[0].mxu0
      %v3533 = vadd.f32 0.0, %v3532
      %v3534 = vpop.f32.mrb[0].mxu0
      %v3535 = vpop.f32.mrb[0].mxu0
      %v3536 = vadd.f32 0.0, %v3535
      %v3537 = vpop.f32.mrb[0].mxu0
      %3538 = vmatprep.mubr.bf16.mxu0 %v3444
      %3539 = vmatmul.mubr.bf16.gmra.mrb[0].mxu0 %v3299
      %v3540 = vpop.f32.mrb[0].mxu0
      %v3541 = vadd.f32 0.0, %v3540
      %v3542 = vpop.f32.mrb[0].mxu0
      %v3543 = vpop.f32.mrb[0].mxu0
      %v3544 = vadd.f32 0.0, %v3543
      %v3545 = vpop.f32.mrb[0].mxu0
      %3546 = vmatprep.mubr.bf16.mxu0 %v3447
      %3547 = vmatmul.mubr.bf16.gmra.mrb[0].mxu0 %v3302
      %v3548 = vpop.f32.mrb[0].mxu0
      %v3549 = vadd.f32 0.0, %v3548
      %v3550 = vpop.f32.mrb[0].mxu0
      %v3551 = vpop.f32.mrb[0].mxu0
      %v3552 = vadd.f32 0.0, %v3551
      %v3553 = vpop.f32.mrb[0].mxu0
      %3554 = vmatprep.mubr.bf16.mxu0 %v3450
      %3555 = vmatmul.mubr.bf16.gmra.mrb[0].mxu0 %v3305
      %v3556 = vpop.f32.mrb[0].mxu0
      %v3557 = vadd.f32 0.0, %v3556
      %v3558 = vpop.f32.mrb[0].mxu0
      %v3559 = vpop.f32.mrb[0].mxu0
      %v3560 = vadd.f32 0.0, %v3559
      %v3561 = vpop.f32.mrb[0].mxu0
      %3562 = vmatprep.mubr.bf16.mxu0 %v3453
      %3563 = vmatmul.mubr.bf16.gmra.mrb[0].mxu0 %v3308
      %v3564 = vpop.f32.mrb[0].mxu0
      %v3565 = vadd.f32 0.0, %v3564
      %v3566 = vpop.f32.mrb[0].mxu0
      %v3567 = vpop.f32.mrb[0].mxu0
      %v3568 = vadd.f32 0.0, %v3567
      %v3569 = vpop.f32.mrb[0].mxu0
      %3570 = vmatprep.mubr.bf16.mxu0 %v3456
      %3571 = vmatmul.mubr.bf16.gmra.mrb[0].mxu0 %v3311
      %v3572 = vpop.f32.mrb[0].mxu0
      %v3573 = vadd.f32 0.0, %v3572
      %v3574 = vpop.f32.mrb[0].mxu0
      %v3575 = vpop.f32.mrb[0].mxu0
      %v3576 = vadd.f32 0.0, %v3575
      %v3577 = vpop.f32.mrb[0].mxu0
      %3578 = vmatprep.mubr.bf16.mxu0 %v3459
      %3579 = vmatmul.mubr.bf16.gmra.mrb[0].mxu0 %v3314
      %v3580 = vpop.f32.mrb[0].mxu0
      %v3581 = vadd.f32 0.0, %v3580
      %v3582 = vpop.f32.mrb[0].mxu0
      %v3583 = vpop.f32.mrb[0].mxu0
      %v3584 = vadd.f32 0.0, %v3583
      %v3585 = vpop.f32.mrb[0].mxu0
      %3586 = vmatprep.mubr.bf16.mxu0 %v3462
      %3587 = vmatmul.mubr.bf16.gmra.mrb[0].mxu0 %v3317
      %v3588 = vpop.f32.mrb[0].mxu0
      %v3589 = vadd.f32 0.0, %v3588
      %v3590 = vpop.f32.mrb[0].mxu0
      %v3591 = vpop.f32.mrb[0].mxu0
      %v3592 = vadd.f32 0.0, %v3591
      %v3593 = vpop.f32.mrb[0].mxu0
      %3594 = vmatprep.mubr.bf16.mxu0 %v3465
      %3595 = vmatmul.mubr.bf16.gmra.mrb[0].mxu0 %v3320
      %v3596 = vpop.f32.mrb[0].mxu0
      %v3597 = vadd.f32 0.0, %v3596
      %v3598 = vpop.f32.mrb[0].mxu0
      %v3599 = vpop.f32.mrb[0].mxu0
      %v3600 = vadd.f32 0.0, %v3599
      %v3601 = vpop.f32.mrb[0].mxu0
      %3602 = vmatprep.mubr.bf16.mxu0 %v3468
      %3603 = vmatmul.mubr.bf16.gmra.mrb[0].mxu0 %v3323
      %v3604 = vpop.f32.mrb[0].mxu0
      %v3605 = vadd.f32 0.0, %v3604
      %v3606 = vpop.f32.mrb[0].mxu0
      %v3607 = vpop.f32.mrb[0].mxu0
      %v3608 = vadd.f32 0.0, %v3607
      %v3609 = vpop.f32.mrb[0].mxu0
      %3610 = vmatprep.mubr.bf16.mxu0 %v3471
      %3611 = vmatmul.mubr.bf16.gmra.mrb[0].mxu0 %v3326
      %v3612 = vpop.f32.mrb[0].mxu0
      %v3613 = vadd.f32 0.0, %v3612
      %v3614 = vpop.f32.mrb[0].mxu0
      %v3615 = vpop.f32.mrb[0].mxu0
      %v3616 = vadd.f32 0.0, %v3615
      %v3617 = vpop.f32.mrb[0].mxu0
      %3618 = vmatprep.mubr.bf16.mxu0 %v3474
      %3619 = vmatmul.mubr.bf16.gmra.mrb[0].mxu0 %v3329
      %v3620 = vpop.f32.mrb[0].mxu0
      %v3621 = vadd.f32 0.0, %v3620
      %v3622 = vpop.f32.mrb[0].mxu0
      %v3623 = vpop.f32.mrb[0].mxu0
      %v3624 = vadd.f32 0.0, %v3623
      %v3625 = vpop.f32.mrb[0].mxu0
      %3626 = vmatprep.mubr.bf16.mxu0 %v3477
      %3627 = vmatmul.mubr.bf16.gmra.mrb[0].mxu0 %v3332
      %v3628 = vpop.f32.mrb[0].mxu0
      %v3629 = vadd.f32 0.0, %v3628
      %v3630 = vpop.f32.mrb[0].mxu0
      %v3631 = vpop.f32.mrb[0].mxu0
      %v3632 = vadd.f32 0.0, %v3631
      %v3633 = vpop.f32.mrb[0].mxu0
      %3634 = vmatprep.mubr.bf16.mxu0 %v3480
      %3635 = vmatmul.mubr.bf16.gmra.mrb[0].mxu0 %v3335
      %v3636 = vpop.f32.mrb[0].mxu0
      %v3637 = vadd.f32 0.0, %v3636
      %v3638 = vpop.f32.mrb[0].mxu0
      %v3639 = vpop.f32.mrb[0].mxu0
      %v3640 = vadd.f32 0.0, %v3639
      %v3641 = vpop.f32.mrb[0].mxu0
      %3642 = vdwg.mxu0
      %v3643 = vadd.f32 %v2650, %v3517
      %v3644 = vadd.f32 %v2653, %v3520
      %v3645 = vadd.f32 %v2658, %v3525
      %v3646 = vadd.f32 %v2661, %v3528
      %v3647 = vadd.f32 %v2666, %v3533
      %v3648 = vadd.f32 %v2669, %v3536
      %v3649 = vadd.f32 %v2674, %v3541
      %v3650 = vadd.f32 %v2677, %v3544
      %v3651 = vadd.f32 %v2682, %v3549
      %v3652 = vadd.f32 %v2685, %v3552
      %v3653 = vadd.f32 %v2690, %v3557
      %v3654 = vadd.f32 %v2693, %v3560
      %v3655 = vadd.f32 %v2698, %v3565
      %v3656 = vadd.f32 %v2701, %v3568
      %v3657 = vadd.f32 %v2706, %v3573
      %v3658 = vadd.f32 %v2709, %v3576
      %v3659 = vadd.f32 %v2714, %v3581
      %v3660 = vadd.f32 %v2717, %v3584
      %v3661 = vadd.f32 %v2722, %v3589
      %v3662 = vadd.f32 %v2725, %v3592
      %v3663 = vadd.f32 %v2730, %v3597
      %v3664 = vadd.f32 %v2733, %v3600
      %v3665 = vadd.f32 %v2738, %v3605
      %v3666 = vadd.f32 %v2741, %v3608
      %v3667 = vadd.f32 %v2746, %v3613
      %v3668 = vadd.f32 %v2749, %v3616
      %v3669 = vadd.f32 %v2754, %v3621
      %v3670 = vadd.f32 %v2757, %v3624
      %v3671 = vadd.f32 %v2762, %v3629
      %v3672 = vadd.f32 %v2765, %v3632
      %v3673 = vadd.f32 %v2770, %v3637
      %v3674 = vadd.f32 %v2773, %v3640
      %v3675 = vpack.c.bf16 %v3644, %v3643
      %v3676 = vpack.c.bf16 %v3646, %v3645
      %v3677 = vpack.c.bf16 %v3648, %v3647
      %v3678 = vpack.c.bf16 %v3650, %v3649
      %v3679 = vpack.c.bf16 %v3652, %v3651
      %v3680 = vpack.c.bf16 %v3654, %v3653
      %v3681 = vpack.c.bf16 %v3656, %v3655
      %v3682 = vpack.c.bf16 %v3658, %v3657
      %v3683 = vpack.c.bf16 %v3660, %v3659
      %v3684 = vpack.c.bf16 %v3662, %v3661
      %v3685 = vpack.c.bf16 %v3664, %v3663
      %v3686 = vpack.c.bf16 %v3666, %v3665
      %v3687 = vpack.c.bf16 %v3668, %v3667
      %v3688 = vpack.c.bf16 %v3670, %v3669
      %v3689 = vpack.c.bf16 %v3672, %v3671
      %v3690 = vpack.c.bf16 %v3674, %v3673
      %v3707 = vunpack.c.l.b16 %v3675
      %v3708 = vunpack.c.h.b16 %v3675
      %v3709 = vunpack.c.l.b16 %v3676
      %v3710 = vunpack.c.h.b16 %v3676
      %v3711 = vunpack.c.l.b16 %v3677
      %v3712 = vunpack.c.h.b16 %v3677
      %v3713 = vunpack.c.l.b16 %v3678
      %v3714 = vunpack.c.h.b16 %v3678
      %v3715 = vunpack.c.l.b16 %v3679
      %v3716 = vunpack.c.h.b16 %v3679
      %v3717 = vunpack.c.l.b16 %v3680
      %v3718 = vunpack.c.h.b16 %v3680
      %v3719 = vunpack.c.l.b16 %v3681
      %v3720 = vunpack.c.h.b16 %v3681
      %v3721 = vunpack.c.l.b16 %v3682
      %v3722 = vunpack.c.h.b16 %v3682
      %v3723 = vunpack.c.l.b16 %v3683
      %v3724 = vunpack.c.h.b16 %v3683
      %v3725 = vunpack.c.l.b16 %v3684
      %v3726 = vunpack.c.h.b16 %v3684
      %v3727 = vunpack.c.l.b16 %v3685
      %v3728 = vunpack.c.h.b16 %v3685
      %v3729 = vunpack.c.l.b16 %v3686
      %v3730 = vunpack.c.h.b16 %v3686
      %v3731 = vunpack.c.l.b16 %v3687
      %v3732 = vunpack.c.h.b16 %v3687
      %v3733 = vunpack.c.l.b16 %v3688
      %v3734 = vunpack.c.h.b16 %v3688
      %v3735 = vunpack.c.l.b16 %v3689
      %v3736 = vunpack.c.h.b16 %v3689
      %v3737 = vunpack.c.l.b16 %v3690
      %v3738 = vunpack.c.h.b16 %v3690
      %v3739 = vpack.c.b16 %v3707, %v3707
      %v3740 = vpack.c.b16 %v3708, %v3708
      %v3741 = vpack.c.b16 %v3709, %v3709
      %v3742 = vpack.c.b16 %v3710, %v3710
      %v3743 = vpack.c.b16 %v3711, %v3711
      %v3744 = vpack.c.b16 %v3712, %v3712
      %v3745 = vpack.c.b16 %v3713, %v3713
      %v3746 = vpack.c.b16 %v3714, %v3714
      %v3747 = vpack.c.b16 %v3715, %v3715
      %v3748 = vpack.c.b16 %v3716, %v3716
      %v3749 = vpack.c.b16 %v3717, %v3717
      %v3750 = vpack.c.b16 %v3718, %v3718
      %v3751 = vpack.c.b16 %v3719, %v3719
      %v3752 = vpack.c.b16 %v3720, %v3720
      %v3753 = vpack.c.b16 %v3721, %v3721
      %v3754 = vpack.c.b16 %v3722, %v3722
      %v3755 = vpack.c.b16 %v3723, %v3723
      %v3756 = vpack.c.b16 %v3724, %v3724
      %v3757 = vpack.c.b16 %v3725, %v3725
      %v3758 = vpack.c.b16 %v3726, %v3726
      %v3759 = vpack.c.b16 %v3727, %v3727
      %v3760 = vpack.c.b16 %v3728, %v3728
      %v3761 = vpack.c.b16 %v3729, %v3729
      %v3762 = vpack.c.b16 %v3730, %v3730
      %v3763 = vpack.c.b16 %v3731, %v3731
      %v3764 = vpack.c.b16 %v3732, %v3732
      %v3765 = vpack.c.b16 %v3733, %v3733
      %v3766 = vpack.c.b16 %v3734, %v3734
      %v3767 = vpack.c.b16 %v3735, %v3735
      %v3768 = vpack.c.b16 %v3736, %v3736
      %v3769 = vpack.c.b16 %v3737, %v3737
      %v3770 = vpack.c.b16 %v3738, %v3738
      %3803 = vst.msk [vmem:[%s204] sm:$0xf] %vm465, %v3739
      %3804 = vst.msk [vmem:[%s204 + $0x4] sm:$0xf] %vm465, %v3740
      %3805 = vst.msk [vmem:[%s204 + $0x8] sm:$0xf] %vm465, %v3741
      %3806 = vst.msk [vmem:[%s204 + $0xc] sm:$0xf] %vm465, %v3742
      %3807 = vst.msk [vmem:[%s204 + $0x10] sm:$0xf] %vm465, %v3743
      %3808 = vst.msk [vmem:[%s204 + $0x14] sm:$0xf] %vm465, %v3744
      %3809 = vst.msk [vmem:[%s204 + $0x18] sm:$0xf] %vm465, %v3745
      %3810 = vst.msk [vmem:[%s204 + $0x1c] sm:$0xf] %vm465, %v3746
      %3811 = vst.msk [vmem:[%s204 + $0x20] sm:$0xf] %vm465, %v3747
      %3812 = vst.msk [vmem:[%s204 + $0x24] sm:$0xf] %vm465, %v3748
      %3813 = vst.msk [vmem:[%s204 + $0x28] sm:$0xf] %vm465, %v3749
      %3814 = vst.msk [vmem:[%s204 + $0x2c] sm:$0xf] %vm465, %v3750
      %3815 = vst.msk [vmem:[%s204 + $0x30] sm:$0xf] %vm465, %v3751
      %3816 = vst.msk [vmem:[%s204 + $0x34] sm:$0xf] %vm465, %v3752
      %3817 = vst.msk [vmem:[%s204 + $0x38] sm:$0xf] %vm465, %v3753
      %3818 = vst.msk [vmem:[%s204 + $0x3c] sm:$0xf] %vm465, %v3754
      %3819 = vst.msk [vmem:[%s204 + $0x40] sm:$0xf] %vm465, %v3755
      %3820 = vst.msk [vmem:[%s204 + $0x44] sm:$0xf] %vm465, %v3756
      %3821 = vst.msk [vmem:[%s204 + $0x48] sm:$0xf] %vm465, %v3757
      %3822 = vst.msk [vmem:[%s204 + $0x4c] sm:$0xf] %vm465, %v3758
      %3823 = vst.msk [vmem:[%s204 + $0x50] sm:$0xf] %vm465, %v3759
      %3824 = vst.msk [vmem:[%s204 + $0x54] sm:$0xf] %vm465, %v3760
      %3825 = vst.msk [vmem:[%s204 + $0x58] sm:$0xf] %vm465, %v3761
      %3826 = vst.msk [vmem:[%s204 + $0x5c] sm:$0xf] %vm465, %v3762
      %3827 = vst.msk [vmem:[%s204 + $0x60] sm:$0xf] %vm465, %v3763
      %3828 = vst.msk [vmem:[%s204 + $0x64] sm:$0xf] %vm465, %v3764
      %3829 = vst.msk [vmem:[%s204 + $0x68] sm:$0xf] %vm465, %v3765
      %3830 = vst.msk [vmem:[%s204 + $0x6c] sm:$0xf] %vm465, %v3766
      %3831 = vst.msk [vmem:[%s204 + $0x70] sm:$0xf] %vm465, %v3767
      %3832 = vst.msk [vmem:[%s204 + $0x74] sm:$0xf] %vm465, %v3768
      %3833 = vst.msk [vmem:[%s204 + $0x78] sm:$0xf] %vm465, %v3769
      %3834 = vst.msk [vmem:[%s204 + $0x7c] sm:$0xf] %vm465, %v3770
      %v3835 = vsel %vm1556, %v3643, 0.0
      %v3836 = vsel %vm1556, %v3644, 0.0
      %v3837 = vadd.f32 %v3835, %v3836
      %v3838 = vsel %vm1556, %v3645, 0.0
      %v3839 = vadd.f32 %v3837, %v3838
      %v3840 = vsel %vm1556, %v3646, 0.0
      %v3841 = vadd.f32 %v3839, %v3840
      %v3842 = vsel %vm1556, %v3647, 0.0
      %v3843 = vadd.f32 %v3841, %v3842
      %v3844 = vsel %vm1556, %v3648, 0.0
      %v3845 = vadd.f32 %v3843, %v3844
      %v3846 = vsel %vm1556, %v3649, 0.0
      %v3847 = vadd.f32 %v3845, %v3846
      %v3848 = vsel %vm1556, %v3650, 0.0
      %v3849 = vadd.f32 %v3847, %v3848
      %v3850 = vsel %vm1556, %v3651, 0.0
      %v3851 = vadd.f32 %v3849, %v3850
      %v3852 = vsel %vm1556, %v3652, 0.0
      %v3853 = vadd.f32 %v3851, %v3852
      %v3854 = vsel %vm1556, %v3653, 0.0
      %v3855 = vadd.f32 %v3853, %v3854
      %v3856 = vsel %vm1556, %v3654, 0.0
      %v3857 = vadd.f32 %v3855, %v3856
      %v3858 = vsel %vm1556, %v3655, 0.0
      %v3859 = vadd.f32 %v3857, %v3858
      %v3860 = vsel %vm1556, %v3656, 0.0
      %v3861 = vadd.f32 %v3859, %v3860
      %v3862 = vsel %vm1556, %v3657, 0.0
      %v3863 = vadd.f32 %v3861, %v3862
      %v3864 = vsel %vm1556, %v3658, 0.0
      %v3865 = vadd.f32 %v3863, %v3864
      %v3866 = vsel %vm1556, %v3659, 0.0
      %v3867 = vadd.f32 %v3865, %v3866
      %v3868 = vsel %vm1556, %v3660, 0.0
      %v3869 = vadd.f32 %v3867, %v3868
      %v3870 = vsel %vm1556, %v3661, 0.0
      %v3871 = vadd.f32 %v3869, %v3870
      %v3872 = vsel %vm1556, %v3662, 0.0
      %v3873 = vadd.f32 %v3871, %v3872
      %v3874 = vsel %vm1556, %v3663, 0.0
      %v3875 = vadd.f32 %v3873, %v3874
      %v3876 = vsel %vm1556, %v3664, 0.0
      %v3877 = vadd.f32 %v3875, %v3876
      %v3878 = vsel %vm1556, %v3665, 0.0
      %v3879 = vadd.f32 %v3877, %v3878
      %v3880 = vsel %vm1556, %v3666, 0.0
      %v3881 = vadd.f32 %v3879, %v3880
      %v3882 = vsel %vm1556, %v3667, 0.0
      %v3883 = vadd.f32 %v3881, %v3882
      %v3884 = vsel %vm1556, %v3668, 0.0
      %v3885 = vadd.f32 %v3883, %v3884
      %v3886 = vsel %vm1556, %v3669, 0.0
      %v3887 = vadd.f32 %v3885, %v3886
      %v3888 = vsel %vm1556, %v3670, 0.0
      %v3889 = vadd.f32 %v3887, %v3888
      %v3890 = vsel %vm1556, %v3671, 0.0
      %v3891 = vadd.f32 %v3889, %v3890
      %v3892 = vsel %vm1556, %v3672, 0.0
      %v3893 = vadd.f32 %v3891, %v3892
      %v3894 = vsel %vm1556, %v3673, 0.0
      %v3895 = vadd.f32 %v3893, %v3894
      %v3896 = vsel %vm1556, %v3674, 0.0
      %v3897 = vadd.f32 %v3895, %v3896
      %v3898 = vrot.slane %v3897, 4
      %v3899 = vadd.f32 %v3897, %v3898
      %v3900 = vrot.slane %v3899, 2
      %v3901 = vadd.f32 %v3899, %v3900
      %v3902 = vrot.slane %v3901, 1
      %v3903 = vadd.f32 %v3901, %v3902
      %v3904 = vmul.f32 %v3903, 0.00390625
      %v3905 = vsub.f32 %v3643, %v3904
      %v3906 = vsub.f32 %v3644, %v3904
      %v3907 = vsub.f32 %v3645, %v3904
      %v3908 = vsub.f32 %v3646, %v3904
      %v3909 = vsub.f32 %v3647, %v3904
      %v3910 = vsub.f32 %v3648, %v3904
      %v3911 = vsub.f32 %v3649, %v3904
      %v3912 = vsub.f32 %v3650, %v3904
      %v3913 = vsub.f32 %v3651, %v3904
      %v3914 = vsub.f32 %v3652, %v3904
      %v3915 = vsub.f32 %v3653, %v3904
      %v3916 = vsub.f32 %v3654, %v3904
      %v3917 = vsub.f32 %v3655, %v3904
      %v3918 = vsub.f32 %v3656, %v3904
      %v3919 = vsub.f32 %v3657, %v3904
      %v3920 = vsub.f32 %v3658, %v3904
      %v3921 = vsub.f32 %v3659, %v3904
      %v3922 = vsub.f32 %v3660, %v3904
      %v3923 = vsub.f32 %v3661, %v3904
      %v3924 = vsub.f32 %v3662, %v3904
      %v3925 = vsub.f32 %v3663, %v3904
      %v3926 = vsub.f32 %v3664, %v3904
      %v3927 = vsub.f32 %v3665, %v3904
      %v3928 = vsub.f32 %v3666, %v3904
      %v3929 = vsub.f32 %v3667, %v3904
      %v3930 = vsub.f32 %v3668, %v3904
      %v3931 = vsub.f32 %v3669, %v3904
      %v3932 = vsub.f32 %v3670, %v3904
      %v3933 = vsub.f32 %v3671, %v3904
      %v3934 = vsub.f32 %v3672, %v3904
      %v3935 = vsub.f32 %v3673, %v3904
      %v3936 = vsub.f32 %v3674, %v3904
      %v3937 = vmul.f32 %v3905, %v3905
      %v3938 = vmul.f32 %v3906, %v3906
      %v3939 = vmul.f32 %v3907, %v3907
      %v3940 = vmul.f32 %v3908, %v3908
      %v3941 = vmul.f32 %v3909, %v3909
      %v3942 = vmul.f32 %v3910, %v3910
      %v3943 = vmul.f32 %v3911, %v3911
      %v3944 = vmul.f32 %v3912, %v3912
      %v3945 = vmul.f32 %v3913, %v3913
      %v3946 = vmul.f32 %v3914, %v3914
      %v3947 = vmul.f32 %v3915, %v3915
      %v3948 = vmul.f32 %v3916, %v3916
      %v3949 = vmul.f32 %v3917, %v3917
      %v3950 = vmul.f32 %v3918, %v3918
      %v3951 = vmul.f32 %v3919, %v3919
      %v3952 = vmul.f32 %v3920, %v3920
      %v3953 = vmul.f32 %v3921, %v3921
      %v3954 = vmul.f32 %v3922, %v3922
      %v3955 = vmul.f32 %v3923, %v3923
      %v3956 = vmul.f32 %v3924, %v3924
      %v3957 = vmul.f32 %v3925, %v3925
      %v3958 = vmul.f32 %v3926, %v3926
      %v3959 = vmul.f32 %v3927, %v3927
      %v3960 = vmul.f32 %v3928, %v3928
      %v3961 = vmul.f32 %v3929, %v3929
      %v3962 = vmul.f32 %v3930, %v3930
      %v3963 = vmul.f32 %v3931, %v3931
      %v3964 = vmul.f32 %v3932, %v3932
      %v3965 = vmul.f32 %v3933, %v3933
      %v3966 = vmul.f32 %v3934, %v3934
      %v3967 = vmul.f32 %v3935, %v3935
      %v3968 = vmul.f32 %v3936, %v3936
      %v3969 = vsel %vm1556, %v3937, 0.0
      %v3970 = vsel %vm1556, %v3938, 0.0
      %v3971 = vadd.f32 %v3969, %v3970
      %v3972 = vsel %vm1556, %v3939, 0.0
      %v3973 = vadd.f32 %v3971, %v3972
      %v3974 = vsel %vm1556, %v3940, 0.0
      %v3975 = vadd.f32 %v3973, %v3974
      %v3976 = vsel %vm1556, %v3941, 0.0
      %v3977 = vadd.f32 %v3975, %v3976
      %v3978 = vsel %vm1556, %v3942, 0.0
      %v3979 = vadd.f32 %v3977, %v3978
      %v3980 = vsel %vm1556, %v3943, 0.0
      %v3981 = vadd.f32 %v3979, %v3980
      %v3982 = vsel %vm1556, %v3944, 0.0
      %v3983 = vadd.f32 %v3981, %v3982
      %v3984 = vsel %vm1556, %v3945, 0.0
      %v3985 = vadd.f32 %v3983, %v3984
      %v3986 = vsel %vm1556, %v3946, 0.0
      %v3987 = vadd.f32 %v3985, %v3986
      %v3988 = vsel %vm1556, %v3947, 0.0
      %v3989 = vadd.f32 %v3987, %v3988
      %v3990 = vsel %vm1556, %v3948, 0.0
      %v3991 = vadd.f32 %v3989, %v3990
      %v3992 = vsel %vm1556, %v3949, 0.0
      %v3993 = vadd.f32 %v3991, %v3992
      %v3994 = vsel %vm1556, %v3950, 0.0
      %v3995 = vadd.f32 %v3993, %v3994
      %v3996 = vsel %vm1556, %v3951, 0.0
      %v3997 = vadd.f32 %v3995, %v3996
      %v3998 = vsel %vm1556, %v3952, 0.0
      %v3999 = vadd.f32 %v3997, %v3998
      %v4000 = vsel %vm1556, %v3953, 0.0
      %v4001 = vadd.f32 %v3999, %v4000
      %v4002 = vsel %vm1556, %v3954, 0.0
      %v4003 = vadd.f32 %v4001, %v4002
      %v4004 = vsel %vm1556, %v3955, 0.0
      %v4005 = vadd.f32 %v4003, %v4004
      %v4006 = vsel %vm1556, %v3956, 0.0
      %v4007 = vadd.f32 %v4005, %v4006
      %v4008 = vsel %vm1556, %v3957, 0.0
      %v4009 = vadd.f32 %v4007, %v4008
      %v4010 = vsel %vm1556, %v3958, 0.0
      %v4011 = vadd.f32 %v4009, %v4010
      %v4012 = vsel %vm1556, %v3959, 0.0
      %v4013 = vadd.f32 %v4011, %v4012
      %v4014 = vsel %vm1556, %v3960, 0.0
      %v4015 = vadd.f32 %v4013, %v4014
      %v4016 = vsel %vm1556, %v3961, 0.0
      %v4017 = vadd.f32 %v4015, %v4016
      %v4018 = vsel %vm1556, %v3962, 0.0
      %v4019 = vadd.f32 %v4017, %v4018
      %v4020 = vsel %vm1556, %v3963, 0.0
      %v4021 = vadd.f32 %v4019, %v4020
      %v4022 = vsel %vm1556, %v3964, 0.0
      %v4023 = vadd.f32 %v4021, %v4022
      %v4024 = vsel %vm1556, %v3965, 0.0
      %v4025 = vadd.f32 %v4023, %v4024
      %v4026 = vsel %vm1556, %v3966, 0.0
      %v4027 = vadd.f32 %v4025, %v4026
      %v4028 = vsel %vm1556, %v3967, 0.0
      %v4029 = vadd.f32 %v4027, %v4028
      %v4030 = vsel %vm1556, %v3968, 0.0
      %v4031 = vadd.f32 %v4029, %v4030
      %v4032 = vrot.slane %v4031, 4
      %v4033 = vadd.f32 %v4031, %v4032
      %v4034 = vrot.slane %v4033, 2
      %v4035 = vadd.f32 %v4033, %v4034
      %v4036 = vrot.slane %v4035, 1
      %v4037 = vadd.f32 %v4035, %v4036
      %vm4038 = vcmask 1040384
      %v4039 = vsel %vm4038, %v3903, %v4037
      %vm4040 = vcmask 517120
      %4041 = vst.msk [vmem:[%s208] sm:$0x3] %vm4040, %v4039
      %p4042 = scmp.lt.s32.totalorder %s16, 3
      %s4043 = scalar_select %p4042, %s16, 3
      %s4044 = smul.addr %s4043, 32
      %s4045 = smul.addr %s4044, 4
      %s4046 = scalar_lea.vmem %s3, %s4045
      %p4047 = scmp.lt.s32.totalorder %s16, 3
      %s4048 = scalar_select %p4047, %s16, 3
      %s4049 = smul.addr %s4048, 2
      %s4050 = scalar_lea.vmem %s4, %s4049
      // Predicated region
      $region33: #{residual_block_forward.3} parent=31 // pred_check
        %p4051 = pneg %p102
      $region34: #{residual_block_forward.3} parent=31 // pred_check_branch
        %4053 = sbr.rel (%p4051) target = $region36
      $region35: #{residual_block_forward.3} parent=31 // pred_region
        _
      $region36: #{residual_block_forward.3} parent=31 // pred_fallthru
        _
      // Predicated region
      $region37: #{residual_block_forward.3} parent=31 // pred_check
        %p4054 = pneg %p128
      $region38: #{residual_block_forward.3} parent=31 // pred_check_branch
        %4056 = sbr.rel (%p4054) target = $region40
      $region39: #{residual_block_forward.3} parent=31 // pred_region
        _
      $region40: #{residual_block_forward.3} parent=31 // pred_fallthru
        _
    $region32: #{residual_block_forward.3} parent=5 // pred_fallthru
      _
    %p4057 = scmp.le.s32.totalorder 2, %s11
    // Predicated region
    $region41: #{residual_block_forward.3} parent=5 // pred_check
      %p4058 = pneg %p4057
    $region42: #{residual_block_forward.3} parent=5 // pred_check_branch
      %4060 = sbr.rel (%p4058) target = $region44
    $region43: #{residual_block_forward.3} parent=5 // pred_region
      %s4061 = ssub.s32 %s11, 2
      // Predicated region
      $region45: #{residual_block_forward.3} parent=43 // pred_check
        %p4062 = pneg %p108
      $region46: #{residual_block_forward.3} parent=43 // pred_check_branch
        %4064 = sbr.rel (%p4062) target = $region48
      $region47: #{residual_block_forward.3} parent=43 // pred_region
        %p4065 = scmp.lt.s32.totalorder %s17, 3
        %s4066 = scalar_select %p4065, %s17, 3
        %s4067 = smul.addr %s4066, 32
        %s4068 = smul.addr %s4067, 4
        %s4069 = scalar_lea.vmem %s3, %s4068
      $region48: #{residual_block_forward.3} parent=43 // pred_fallthru
        _
      // Predicated region
      $region49: #{residual_block_forward.3} parent=43 // pred_check
        %p4070 = pneg %p134
      $region50: #{residual_block_forward.3} parent=43 // pred_check_branch
        %4072 = sbr.rel (%p4070) target = $region52
      $region51: #{residual_block_forward.3} parent=43 // pred_region
        %p4073 = scmp.lt.s32.totalorder %s17, 3
        %s4074 = scalar_select %p4073, %s17, 3
        %s4075 = smul.addr %s4074, 2
        %s4076 = scalar_lea.vmem %s4, %s4075
      $region52: #{residual_block_forward.3} parent=43 // pred_fallthru
        _
    $region44: #{residual_block_forward.3} parent=5 // pred_fallthru
      _
  $region6: #{residual_block_forward.3} parent=0 // loop_footer
    %s15 = sadd.s32 1, %s11
  $region7: #{residual_block_forward.3} parent=0 // loop_footer_branch
    %10 = sbr.rel target = $region3
  $region8: #{residual_block_forward.3} parent=0 // loop_exit
    _

</llo_original>
